<compile_context>
chip_gen: v7x
topology: tpu7x:2x2x1
jax: 0.10.0
libtpu: 0.0.40
codegen_flags: <defaults>
</compile_context>

<pallas_src>
import jax
import jax.numpy as jnp
from jax.experimental import pallas as pl
from jax.experimental.pallas import tpu as pltpu  # noqa: F401  (TPU backend assumed)


# ----------------------------------------------------------------------------
# Pallas kernels
# ----------------------------------------------------------------------------
def _conv_pool_kernel(a_ref, w_ref, b_ref, o_ref):
    """Fused conv-as-matmul + bias + ReLU + 2x2 max-pool.

    a_ref : (4, Mp, K) bf16  im2col patches, one plane per pool tap (di, dj);
            row m of each plane corresponds to pooled position
            m = n*Hp*Wp + hp*Wp + wp.
    w_ref : (K, Cout) bf16
    b_ref : (1, Cout) f32
    o_ref : (Mp, Cout) bf16  pooled activations (NHWC row order)
    """
    w = w_ref[...]
    b = b_ref[...]

    def tap(t):
        acc = jnp.dot(a_ref[t], w, preferred_element_type=jnp.float32)
        return jnp.maximum(acc + b, 0.0)          # fused bias + ReLU (per tap)

    # relu is monotonic, so max over taps of relu(conv+b) == maxpool(relu(conv+b)).
    pooled = jnp.maximum(jnp.maximum(tap(0), tap(1)),
                         jnp.maximum(tap(2), tap(3)))
    o_ref[...] = pooled.astype(o_ref.dtype)


def _mlp_kernel(x_ref, w1_ref, b1_ref, w2_ref, b2_ref, o_ref):
    """Fused fc1 + ReLU + fc2 (everything resident in VMEM; tiny shapes)."""
    h = jnp.dot(x_ref[...], w1_ref[...], preferred_element_type=jnp.float32)
    h = jnp.maximum(h + b1_ref[...], 0.0)
    o_ref[...] = (jnp.dot(h.astype(jnp.bfloat16), w2_ref[...],
                          preferred_element_type=jnp.float32) + b2_ref[...])


# ----------------------------------------------------------------------------
# Wrappers
# ----------------------------------------------------------------------------
def conv_relu_pool(x_bf16, w, b):
    """x: [N,H,W,Cin] bf16; w: [KH,KW,Cin,Cout] f32; b: [Cout] f32.
    Returns maxpool2x2(relu(conv_valid(x, w) + b)) as [N, Hp, Wp, Cout] bf16."""
    N, H, W, Cin = x_bf16.shape
    KH, KW, _, Cout = w.shape
    Ho, Wo = H - KH + 1, W - KW + 1
    Hp, Wp = Ho // 2, Wo // 2
    K = KH * KW * Cin
    Mp = N * Hp * Wp

    # im2col (XLA glue, bf16, < 250 KB at these sizes), grouped by pool tap so
    # the kernel consumes one contiguous [4, Mp, K] operand and never re-reads
    # strided pool slices from HBM. Tap order (ki, kj, ci) matches
    # w.reshape(K, Cout).
    taps = [x_bf16[:, ki:ki + Ho, kj:kj + Wo, :]
            for ki in range(KH) for kj in range(KW)]
    pat = jnp.concatenate(taps, axis=-1)                       # [N, Ho, Wo, K]
    a = jnp.stack(
        [pat[:, di:2 * Hp:2, dj:2 * Wp:2, :].reshape(Mp, K)
         for di in (0, 1) for dj in (0, 1)], axis=0)           # [4, Mp, K]

    out = pl.pallas_call(
        _conv_pool_kernel,
        out_shape=jax.ShapeDtypeStruct((Mp, Cout), jnp.bfloat16),
    )(a,
      w.reshape(K, Cout).astype(jnp.bfloat16),
      b.reshape(1, Cout).astype(jnp.float32))
    return out.reshape(N, Hp, Wp, Cout)


def mlp_head(x_bf16, w1, b1, w2, b2):
    """Fused fc1 + ReLU + fc2 in a single Pallas call (whole arrays in VMEM)."""
    N = x_bf16.shape[0]
    return pl.pallas_call(
        _mlp_kernel,
        out_shape=jax.ShapeDtypeStruct((N, w2.shape[1]), jnp.float32),
    )(x_bf16,
      w1.astype(jnp.bfloat16), b1.reshape(1, -1).astype(jnp.float32),
      w2.astype(jnp.bfloat16), b2.reshape(1, -1).astype(jnp.float32))


# ----------------------------------------------------------------------------
# Parameters (deterministic synthetic init matching the module's init scheme)
# ----------------------------------------------------------------------------
def init_params(key):
    k = jax.random.split(key, 4)
    return {
        # nn.init.normal_(weight, mean=0, std=1) for conv layers (HWIO layout;
        # real PyTorch OIHW weights would need a transpose).
        'conv1_w': jax.random.normal(k[0], (5, 5, 3, 32), jnp.float32),
        'conv1_b': jnp.zeros((32,), jnp.float32),
        'conv2_w': jax.random.normal(k[1], (5, 5, 32, 32), jnp.float32),
        'conv2_b': jnp.zeros((32,), jnp.float32),
        # kaiming_normal_ for linear layers (std = sqrt(2 / fan_in)), [in, out].
        'fc1_w': jax.random.normal(k[2], (800, 256), jnp.float32) * (2.0 / 800) ** 0.5,
        'fc1_b': jnp.zeros((256,), jnp.float32),
        'fc2_w': jax.random.normal(k[3], (256, 10), jnp.float32) * (2.0 / 256) ** 0.5,
        'fc2_b': jnp.zeros((10,), jnp.float32),
    }


# ----------------------------------------------------------------------------
# Forward pass (matches CNN3.forward semantics)
# ----------------------------------------------------------------------------
def cnn3_forward(x_nchw, params):
    # NCHW -> NHWC, cast once to bf16 (all MXU inputs are bf16, f32 accumulate).
    x = jnp.transpose(x_nchw, (0, 2, 3, 1)).astype(jnp.bfloat16)

    x = conv_relu_pool(x, params['conv1_w'], params['conv1_b'])   # [N,14,14,32] bf16
    x = conv_relu_pool(x, params['conv2_w'], params['conv2_b'])   # [N, 5, 5,32] bf16

    # PyTorch flattens NCHW, i.e. (C, H, W) order -> transpose back first.
    N = x.shape[0]
    x = jnp.transpose(x, (0, 3, 1, 2)).reshape(N, -1)             # [N, 800] bf16

    return mlp_head(x, params['fc1_w'], params['fc1_b'],
                    params['fc2_w'], params['fc2_b'])             # [N, 10] f32


# ----------------------------------------------------------------------------
if __name__ == "__main__":
    key = jax.random.PRNGKey(0)
    pkey, xkey = jax.random.split(key)
    params = init_params(pkey)

    # fc1 expects 800 = 32 * 5 * 5 features -> 3x32x32 input (CIFAR-like).
    x = jax.random.normal(xkey, (2, 3, 32, 32), jnp.float32)

    fwd = jax.jit(lambda inp: cnn3_forward(inp, params))
    out = fwd(x)
    jax.block_until_ready(out)
    assert out.shape == (2, 10) and out.dtype == jnp.float32
    print("KERNEL_OK")
</pallas_src>

<mosaic_0001>
module attributes {stable_mosaic.version = 11 : i64} {
  func.func @_conv_pool_kernel(%arg0: memref<4x392x75xbf16, #tpu.memory_space<vmem>>, %arg1: memref<75x32xbf16, #tpu.memory_space<vmem>>, %arg2: memref<1x32xf32, #tpu.memory_space<vmem>>, %arg3: memref<392x32xbf16, #tpu.memory_space<vmem>>) attributes {dimension_semantics = [], scalar_prefetch = 0 : i64, scratch_operands = 0 : i64, tpu.core_type = #tpu.core_type<tc>} {
    %c0 = arith.constant 0 : index
    %c0_0 = arith.constant 0 : index
    %0 = vector.load %arg1[%c0, %c0_0] : memref<75x32xbf16, #tpu.memory_space<vmem>>, vector<75x32xbf16>
    %c0_1 = arith.constant 0 : index
    %c0_2 = arith.constant 0 : index
    %1 = vector.load %arg2[%c0_1, %c0_2] : memref<1x32xf32, #tpu.memory_space<vmem>>, vector<1x32xf32>
    %c0_3 = arith.constant 0 : index
    %c0_4 = arith.constant 0 : index
    %c0_5 = arith.constant 0 : index
    %2 = vector.load %arg0[%c0_3, %c0_4, %c0_5] : memref<4x392x75xbf16, #tpu.memory_space<vmem>>, vector<1x392x75xbf16>
    %3 = vector.shape_cast %2 : vector<1x392x75xbf16> to vector<392x75xbf16>
    %cst = arith.constant dense<0.000000e+00> : vector<392x32xf32>
    %4 = tpu.matmul %3, %0, %cst {dimension_numbers = #tpu.dot_dimension_numbers<[1], [0], [0], [1], [0, 0, 1, 1], [], []>} : vector<392x75xbf16>, vector<75x32xbf16>, vector<392x32xf32> -> vector<392x32xf32>
    %5 = vector.broadcast %1 : vector<1x32xf32> to vector<392x32xf32>
    %6 = arith.addf %4, %5 : vector<392x32xf32>
    %cst_6 = arith.constant 0.000000e+00 : f32
    %7 = vector.broadcast %cst_6 : f32 to vector<392x32xf32>
    %8 = arith.maximumf %6, %7 : vector<392x32xf32>
    %c1 = arith.constant 1 : index
    %c0_7 = arith.constant 0 : index
    %c0_8 = arith.constant 0 : index
    %9 = vector.load %arg0[%c1, %c0_7, %c0_8] : memref<4x392x75xbf16, #tpu.memory_space<vmem>>, vector<1x392x75xbf16>
    %10 = vector.shape_cast %9 : vector<1x392x75xbf16> to vector<392x75xbf16>
    %cst_9 = arith.constant dense<0.000000e+00> : vector<392x32xf32>
    %11 = tpu.matmul %10, %0, %cst_9 {dimension_numbers = #tpu.dot_dimension_numbers<[1], [0], [0], [1], [0, 0, 1, 1], [], []>} : vector<392x75xbf16>, vector<75x32xbf16>, vector<392x32xf32> -> vector<392x32xf32>
    %12 = vector.broadcast %1 : vector<1x32xf32> to vector<392x32xf32>
    %13 = arith.addf %11, %12 : vector<392x32xf32>
    %cst_10 = arith.constant 0.000000e+00 : f32
    %14 = vector.broadcast %cst_10 : f32 to vector<392x32xf32>
    %15 = arith.maximumf %13, %14 : vector<392x32xf32>
    %16 = arith.maximumf %8, %15 : vector<392x32xf32>
    %c2 = arith.constant 2 : index
    %c0_11 = arith.constant 0 : index
    %c0_12 = arith.constant 0 : index
    %17 = vector.load %arg0[%c2, %c0_11, %c0_12] : memref<4x392x75xbf16, #tpu.memory_space<vmem>>, vector<1x392x75xbf16>
    %18 = vector.shape_cast %17 : vector<1x392x75xbf16> to vector<392x75xbf16>
    %cst_13 = arith.constant dense<0.000000e+00> : vector<392x32xf32>
    %19 = tpu.matmul %18, %0, %cst_13 {dimension_numbers = #tpu.dot_dimension_numbers<[1], [0], [0], [1], [0, 0, 1, 1], [], []>} : vector<392x75xbf16>, vector<75x32xbf16>, vector<392x32xf32> -> vector<392x32xf32>
    %20 = vector.broadcast %1 : vector<1x32xf32> to vector<392x32xf32>
    %21 = arith.addf %19, %20 : vector<392x32xf32>
    %cst_14 = arith.constant 0.000000e+00 : f32
    %22 = vector.broadcast %cst_14 : f32 to vector<392x32xf32>
    %23 = arith.maximumf %21, %22 : vector<392x32xf32>
    %c3 = arith.constant 3 : index
    %c0_15 = arith.constant 0 : index
    %c0_16 = arith.constant 0 : index
    %24 = vector.load %arg0[%c3, %c0_15, %c0_16] : memref<4x392x75xbf16, #tpu.memory_space<vmem>>, vector<1x392x75xbf16>
    %25 = vector.shape_cast %24 : vector<1x392x75xbf16> to vector<392x75xbf16>
    %cst_17 = arith.constant dense<0.000000e+00> : vector<392x32xf32>
    %26 = tpu.matmul %25, %0, %cst_17 {dimension_numbers = #tpu.dot_dimension_numbers<[1], [0], [0], [1], [0, 0, 1, 1], [], []>} : vector<392x75xbf16>, vector<75x32xbf16>, vector<392x32xf32> -> vector<392x32xf32>
    %27 = vector.broadcast %1 : vector<1x32xf32> to vector<392x32xf32>
    %28 = arith.addf %26, %27 : vector<392x32xf32>
    %cst_18 = arith.constant 0.000000e+00 : f32
    %29 = vector.broadcast %cst_18 : f32 to vector<392x32xf32>
    %30 = arith.maximumf %28, %29 : vector<392x32xf32>
    %31 = arith.maximumf %23, %30 : vector<392x32xf32>
    %32 = arith.maximumf %16, %31 : vector<392x32xf32>
    %33 = arith.truncf %32 : vector<392x32xf32> to vector<392x32xbf16>
    %c0_19 = arith.constant 0 : index
    %c0_20 = arith.constant 0 : index
    %34 = vector.load %arg3[%c0_19, %c0_20] : memref<392x32xbf16, #tpu.memory_space<vmem>>, vector<392x32xbf16>
    tpu.vector_store %arg3[%c0_19, %c0_20], %33 {strides = array<i32>} : memref<392x32xbf16, #tpu.memory_space<vmem>>, vector<392x32xbf16>,
    return
  }
}

module attributes {stable_mosaic.version = 11 : i64} {
  func.func @_conv_pool_kernel(%arg0: memref<4x50x800xbf16, #tpu.memory_space<vmem>>, %arg1: memref<800x32xbf16, #tpu.memory_space<vmem>>, %arg2: memref<1x32xf32, #tpu.memory_space<vmem>>, %arg3: memref<50x32xbf16, #tpu.memory_space<vmem>>) attributes {dimension_semantics = [], scalar_prefetch = 0 : i64, scratch_operands = 0 : i64, tpu.core_type = #tpu.core_type<tc>} {
    %c0 = arith.constant 0 : index
    %c0_0 = arith.constant 0 : index
    %0 = vector.load %arg1[%c0, %c0_0] : memref<800x32xbf16, #tpu.memory_space<vmem>>, vector<800x32xbf16>
    %c0_1 = arith.constant 0 : index
    %c0_2 = arith.constant 0 : index
    %1 = vector.load %arg2[%c0_1, %c0_2] : memref<1x32xf32, #tpu.memory_space<vmem>>, vector<1x32xf32>
    %c0_3 = arith.constant 0 : index
    %c0_4 = arith.constant 0 : index
    %c0_5 = arith.constant 0 : index
    %2 = vector.load %arg0[%c0_3, %c0_4, %c0_5] : memref<4x50x800xbf16, #tpu.memory_space<vmem>>, vector<1x50x800xbf16>
    %3 = vector.shape_cast %2 : vector<1x50x800xbf16> to vector<50x800xbf16>
    %cst = arith.constant dense<0.000000e+00> : vector<50x32xf32>
    %4 = tpu.matmul %3, %0, %cst {dimension_numbers = #tpu.dot_dimension_numbers<[1], [0], [0], [1], [0, 0, 1, 1], [], []>} : vector<50x800xbf16>, vector<800x32xbf16>, vector<50x32xf32> -> vector<50x32xf32>
    %5 = vector.broadcast %1 : vector<1x32xf32> to vector<50x32xf32>
    %6 = arith.addf %4, %5 : vector<50x32xf32>
    %cst_6 = arith.constant 0.000000e+00 : f32
    %7 = vector.broadcast %cst_6 : f32 to vector<50x32xf32>
    %8 = arith.maximumf %6, %7 : vector<50x32xf32>
    %c1 = arith.constant 1 : index
    %c0_7 = arith.constant 0 : index
    %c0_8 = arith.constant 0 : index
    %9 = vector.load %arg0[%c1, %c0_7, %c0_8] : memref<4x50x800xbf16, #tpu.memory_space<vmem>>, vector<1x50x800xbf16>
    %10 = vector.shape_cast %9 : vector<1x50x800xbf16> to vector<50x800xbf16>
    %cst_9 = arith.constant dense<0.000000e+00> : vector<50x32xf32>
    %11 = tpu.matmul %10, %0, %cst_9 {dimension_numbers = #tpu.dot_dimension_numbers<[1], [0], [0], [1], [0, 0, 1, 1], [], []>} : vector<50x800xbf16>, vector<800x32xbf16>, vector<50x32xf32> -> vector<50x32xf32>
    %12 = vector.broadcast %1 : vector<1x32xf32> to vector<50x32xf32>
    %13 = arith.addf %11, %12 : vector<50x32xf32>
    %cst_10 = arith.constant 0.000000e+00 : f32
    %14 = vector.broadcast %cst_10 : f32 to vector<50x32xf32>
    %15 = arith.maximumf %13, %14 : vector<50x32xf32>
    %16 = arith.maximumf %8, %15 : vector<50x32xf32>
    %c2 = arith.constant 2 : index
    %c0_11 = arith.constant 0 : index
    %c0_12 = arith.constant 0 : index
    %17 = vector.load %arg0[%c2, %c0_11, %c0_12] : memref<4x50x800xbf16, #tpu.memory_space<vmem>>, vector<1x50x800xbf16>
    %18 = vector.shape_cast %17 : vector<1x50x800xbf16> to vector<50x800xbf16>
    %cst_13 = arith.constant dense<0.000000e+00> : vector<50x32xf32>
    %19 = tpu.matmul %18, %0, %cst_13 {dimension_numbers = #tpu.dot_dimension_numbers<[1], [0], [0], [1], [0, 0, 1, 1], [], []>} : vector<50x800xbf16>, vector<800x32xbf16>, vector<50x32xf32> -> vector<50x32xf32>
    %20 = vector.broadcast %1 : vector<1x32xf32> to vector<50x32xf32>
    %21 = arith.addf %19, %20 : vector<50x32xf32>
    %cst_14 = arith.constant 0.000000e+00 : f32
    %22 = vector.broadcast %cst_14 : f32 to vector<50x32xf32>
    %23 = arith.maximumf %21, %22 : vector<50x32xf32>
    %c3 = arith.constant 3 : index
    %c0_15 = arith.constant 0 : index
    %c0_16 = arith.constant 0 : index
    %24 = vector.load %arg0[%c3, %c0_15, %c0_16] : memref<4x50x800xbf16, #tpu.memory_space<vmem>>, vector<1x50x800xbf16>
    %25 = vector.shape_cast %24 : vector<1x50x800xbf16> to vector<50x800xbf16>
    %cst_17 = arith.constant dense<0.000000e+00> : vector<50x32xf32>
    %26 = tpu.matmul %25, %0, %cst_17 {dimension_numbers = #tpu.dot_dimension_numbers<[1], [0], [0], [1], [0, 0, 1, 1], [], []>} : vector<50x800xbf16>, vector<800x32xbf16>, vector<50x32xf32> -> vector<50x32xf32>
    %27 = vector.broadcast %1 : vector<1x32xf32> to vector<50x32xf32>
    %28 = arith.addf %26, %27 : vector<50x32xf32>
    %cst_18 = arith.constant 0.000000e+00 : f32
    %29 = vector.broadcast %cst_18 : f32 to vector<50x32xf32>
    %30 = arith.maximumf %28, %29 : vector<50x32xf32>
    %31 = arith.maximumf %23, %30 : vector<50x32xf32>
    %32 = arith.maximumf %16, %31 : vector<50x32xf32>
    %33 = arith.truncf %32 : vector<50x32xf32> to vector<50x32xbf16>
    %c0_19 = arith.constant 0 : index
    %c0_20 = arith.constant 0 : index
    %34 = vector.load %arg3[%c0_19, %c0_20] : memref<50x32xbf16, #tpu.memory_space<vmem>>, vector<50x32xbf16>
    tpu.vector_store %arg3[%c0_19, %c0_20], %33 {strides = array<i32>} : memref<50x32xbf16, #tpu.memory_space<vmem>>, vector<50x32xbf16>,
    return
  }
}

module attributes {stable_mosaic.version = 11 : i64} {
  func.func @_mlp_kernel(%arg0: memref<2x800xbf16, #tpu.memory_space<vmem>>, %arg1: memref<800x256xbf16, #tpu.memory_space<vmem>>, %arg2: memref<1x256xf32, #tpu.memory_space<vmem>>, %arg3: memref<256x10xbf16, #tpu.memory_space<vmem>>, %arg4: memref<1x10xf32, #tpu.memory_space<vmem>>, %arg5: memref<2x10xf32, #tpu.memory_space<vmem>>) attributes {dimension_semantics = [], scalar_prefetch = 0 : i64, scratch_operands = 0 : i64, tpu.core_type = #tpu.core_type<tc>} {
    %c0 = arith.constant 0 : index
    %c0_0 = arith.constant 0 : index
    %0 = vector.load %arg0[%c0, %c0_0] : memref<2x800xbf16, #tpu.memory_space<vmem>>, vector<2x800xbf16>
    %c0_1 = arith.constant 0 : index
    %c0_2 = arith.constant 0 : index
    %1 = vector.load %arg1[%c0_1, %c0_2] : memref<800x256xbf16, #tpu.memory_space<vmem>>, vector<800x256xbf16>
    %cst = arith.constant dense<0.000000e+00> : vector<2x256xf32>
    %2 = tpu.matmul %0, %1, %cst {dimension_numbers = #tpu.dot_dimension_numbers<[1], [0], [0], [1], [0, 0, 1, 1], [], []>} : vector<2x800xbf16>, vector<800x256xbf16>, vector<2x256xf32> -> vector<2x256xf32>
    %c0_3 = arith.constant 0 : index
    %c0_4 = arith.constant 0 : index
    %3 = vector.load %arg2[%c0_3, %c0_4] : memref<1x256xf32, #tpu.memory_space<vmem>>, vector<1x256xf32>
    %4 = vector.broadcast %3 : vector<1x256xf32> to vector<2x256xf32>
    %5 = arith.addf %2, %4 : vector<2x256xf32>
    %cst_5 = arith.constant 0.000000e+00 : f32
    %6 = vector.broadcast %cst_5 : f32 to vector<2x256xf32>
    %7 = arith.maximumf %5, %6 : vector<2x256xf32>
    %8 = arith.truncf %7 : vector<2x256xf32> to vector<2x256xbf16>
    %c0_6 = arith.constant 0 : index
    %c0_7 = arith.constant 0 : index
    %9 = vector.load %arg3[%c0_6, %c0_7] : memref<256x10xbf16, #tpu.memory_space<vmem>>, vector<256x10xbf16>
    %cst_8 = arith.constant dense<0.000000e+00> : vector<2x10xf32>
    %10 = tpu.matmul %8, %9, %cst_8 {dimension_numbers = #tpu.dot_dimension_numbers<[1], [0], [0], [1], [0, 0, 1, 1], [], []>} : vector<2x256xbf16>, vector<256x10xbf16>, vector<2x10xf32> -> vector<2x10xf32>
    %c0_9 = arith.constant 0 : index
    %c0_10 = arith.constant 0 : index
    %11 = vector.load %arg4[%c0_9, %c0_10] : memref<1x10xf32, #tpu.memory_space<vmem>>, vector<1x10xf32>
    %12 = vector.broadcast %11 : vector<1x10xf32> to vector<2x10xf32>
    %13 = arith.addf %10, %12 : vector<2x10xf32>
    %c0_11 = arith.constant 0 : index
    %c0_12 = arith.constant 0 : index
    %14 = vector.load %arg5[%c0_11, %c0_12] : memref<2x10xf32, #tpu.memory_space<vmem>>, vector<2x10xf32>
    tpu.vector_store %arg5[%c0_11, %c0_12], %13 {strides = array<i32>} : memref<2x10xf32, #tpu.memory_space<vmem>>, vector<2x10xf32>,
    return
  }
}

</mosaic_0001>

<llo_original>
// kernel: _lambda_.3
$region0: #{_lambda_.3}
  #allocation0 [shape = 'u32[]', space=smem, size = 0x4, offset = 0x4, fixed_abs, tag = 'smem constant byte address 0x4 - core index']
  #allocation1 [shape = 'u32[144,128]{1,0:T(1,128)}', space=vmem, size = 0x12000, scoped, tag = 'internal scratch']
  %s0 = inlined_call_operand.vmem [shape: bf16[4,392,75], index: 0, kind: input, shape index: {}]
  %s1 = inlined_call_operand.vmem [shape: bf16[75,32], index: 1, kind: input, shape index: {}]
  %s2 = inlined_call_operand.vmem [shape: f32[1,32], index: 2, kind: input, shape index: {}]
  %s3 = inlined_call_operand.vmem [shape: bf16[392,32], index: 3, kind: output, shape index: {}]
  %s4 = sld [smem:[#allocation0]]
  $region22: #{_lambda_.3} parent=0
    _
  %s6 = ssub.s32 1, %s4
  %s7 = scalar_select 0, %s6, %s4
  // Predicated region
  $region2: #{_lambda_.3} parent=0 // pred_check
    _
  $region3: #{_lambda_.3} parent=0 // pred_check_branch
    %9 = sbr.rel (0) target = $region5
  $region4: #{_lambda_.3} parent=0 // pred_region
    _
  $region5: #{_lambda_.3} parent=0 // pred_fallthru
    _
  // Predicated region
  $region6: #{_lambda_.3} parent=0 // pred_check
    _
  $region7: #{_lambda_.3} parent=0 // pred_check_branch
    %11 = sbr.rel (0) target = $region9
  $region8: #{_lambda_.3} parent=0 // pred_region
    _
  $region9: #{_lambda_.3} parent=0 // pred_fallthru
    _
  // Predicated region
  $region10: #{_lambda_.3} parent=0 // pred_check
    _
  $region11: #{_lambda_.3} parent=0 // pred_check_branch
    %13 = sbr.rel (0) target = $region13
  $region12: #{_lambda_.3} parent=0 // pred_region
    _
  $region13: #{_lambda_.3} parent=0 // pred_fallthru
    _
  %v15 = vld [vmem:[%s1] sm:$0xf]
  %v16 = vld [vmem:[%s1 + $0x4] sm:$0xf]
  %v17 = vld [vmem:[%s1 + $0x8] sm:$0xf]
  %v18 = vld [vmem:[%s1 + $0xc] sm:$0xf]
  %v19 = vld [vmem:[%s1 + $0x10] sm:$0xf]
  %v20 = vld [vmem:[%s1 + $0x14] sm:$0xf]
  %v21 = vld [vmem:[%s1 + $0x18] sm:$0xf]
  %v22 = vld [vmem:[%s1 + $0x1c] sm:$0xf]
  %v23 = vld [vmem:[%s1 + $0x20] sm:$0xf]
  %v24 = vld [vmem:[%s1 + $0x24] sm:$0x3]
  %v25 = vld [vmem:[%s2] sm:$0x1]
  %v26 = vld [vmem:[%s0] sm:$0xf]
  %v27 = vld [vmem:[%s0 + $0x4] sm:$0xf]
  %v28 = vld [vmem:[%s0 + $0x8] sm:$0xf]
  %v29 = vld [vmem:[%s0 + $0xc] sm:$0xf]
  %v30 = vld [vmem:[%s0 + $0x10] sm:$0xf]
  %v31 = vld [vmem:[%s0 + $0x14] sm:$0xf]
  %v32 = vld [vmem:[%s0 + $0x18] sm:$0xf]
  %v33 = vld [vmem:[%s0 + $0x1c] sm:$0xf]
  %v34 = vld [vmem:[%s0 + $0x20] sm:$0xf]
  %v35 = vld [vmem:[%s0 + $0x24] sm:$0xf]
  %v36 = vld [vmem:[%s0 + $0x28] sm:$0xf]
  %v37 = vld [vmem:[%s0 + $0x2c] sm:$0xf]
  %v38 = vld [vmem:[%s0 + $0x30] sm:$0xf]
  %v39 = vld [vmem:[%s0 + $0x34] sm:$0xf]
  %v40 = vld [vmem:[%s0 + $0x38] sm:$0xf]
  %v41 = vld [vmem:[%s0 + $0x3c] sm:$0xf]
  %v42 = vld [vmem:[%s0 + $0x40] sm:$0xf]
  %v43 = vld [vmem:[%s0 + $0x44] sm:$0xf]
  %v44 = vld [vmem:[%s0 + $0x48] sm:$0xf]
  %v45 = vld [vmem:[%s0 + $0x4c] sm:$0xf]
  %v46 = vld [vmem:[%s0 + $0x50] sm:$0xf]
  %v47 = vld [vmem:[%s0 + $0x54] sm:$0xf]
  %v48 = vld [vmem:[%s0 + $0x58] sm:$0xf]
  %v49 = vld [vmem:[%s0 + $0x5c] sm:$0xf]
  %v50 = vld [vmem:[%s0 + $0x60] sm:$0xf]
  %v51 = vld [vmem:[%s0 + $0x64] sm:$0xf]
  %v52 = vld [vmem:[%s0 + $0x68] sm:$0xf]
  %v53 = vld [vmem:[%s0 + $0x6c] sm:$0xf]
  %v54 = vld [vmem:[%s0 + $0x70] sm:$0xf]
  %v55 = vld [vmem:[%s0 + $0x74] sm:$0xf]
  %v56 = vld [vmem:[%s0 + $0x78] sm:$0xf]
  %v57 = vld [vmem:[%s0 + $0x7c] sm:$0xf]
  %v58 = vld [vmem:[%s0 + $0x80] sm:$0xf]
  %v59 = vld [vmem:[%s0 + $0x84] sm:$0xf]
  %v60 = vld [vmem:[%s0 + $0x88] sm:$0xf]
  %v61 = vld [vmem:[%s0 + $0x8c] sm:$0xf]
  %v62 = vld [vmem:[%s0 + $0x90] sm:$0xf]
  %v63 = vld [vmem:[%s0 + $0x94] sm:$0xf]
  %v64 = vld [vmem:[%s0 + $0x98] sm:$0xf]
  %v65 = vld [vmem:[%s0 + $0x9c] sm:$0xf]
  %v66 = vld [vmem:[%s0 + $0xa0] sm:$0xf]
  %v67 = vld [vmem:[%s0 + $0xa4] sm:$0xf]
  %v68 = vld [vmem:[%s0 + $0xa8] sm:$0xf]
  %v69 = vld [vmem:[%s0 + $0xac] sm:$0xf]
  %v70 = vld [vmem:[%s0 + $0xb0] sm:$0xf]
  %v71 = vld [vmem:[%s0 + $0xb4] sm:$0xf]
  %v72 = vld [vmem:[%s0 + $0xb8] sm:$0xf]
  %v73 = vld [vmem:[%s0 + $0xbc] sm:$0xf]
  %v74 = vld [vmem:[%s0 + $0xc0] sm:$0xf]
  %v76 = vlaneseq
  %v77 = vshrl.u32 %v76, 7
  %v78 = vsub.s32 0, %v77
  %v79 = vrot.slane %v25, %v78
  %v130 = vunpack.c.l.b16 %v26
  %v131 = vunpack.c.l.b16 %v27
  %v132 = vunpack.c.l.b16 %v28
  %v133 = vunpack.c.l.b16 %v29
  %v134 = vunpack.c.l.b16 %v30
  %v135 = vunpack.c.l.b16 %v31
  %v136 = vunpack.c.l.b16 %v32
  %v137 = vunpack.c.l.b16 %v33
  %v138 = vunpack.c.l.b16 %v34
  %v139 = vunpack.c.l.b16 %v35
  %v140 = vunpack.c.l.b16 %v36
  %v141 = vunpack.c.l.b16 %v37
  %v142 = vunpack.c.l.b16 %v38
  %v143 = vunpack.c.l.b16 %v39
  %v144 = vunpack.c.l.b16 %v40
  %v145 = vunpack.c.l.b16 %v41
  %v146 = vunpack.c.l.b16 %v42
  %v147 = vunpack.c.l.b16 %v43
  %v148 = vunpack.c.l.b16 %v44
  %v149 = vunpack.c.l.b16 %v45
  %v150 = vunpack.c.l.b16 %v46
  %v151 = vunpack.c.l.b16 %v47
  %v152 = vunpack.c.l.b16 %v48
  %v153 = vunpack.c.l.b16 %v49
  %v154 = vunpack.c.l.b16 %v50
  %v155 = vunpack.c.l.b16 %v51
  %v156 = vunpack.c.l.b16 %v52
  %v157 = vunpack.c.l.b16 %v53
  %v158 = vunpack.c.l.b16 %v54
  %v159 = vunpack.c.l.b16 %v55
  %v160 = vunpack.c.l.b16 %v56
  %v161 = vunpack.c.l.b16 %v57
  %v162 = vunpack.c.l.b16 %v58
  %v163 = vunpack.c.l.b16 %v59
  %v164 = vunpack.c.l.b16 %v60
  %v165 = vunpack.c.l.b16 %v61
  %v166 = vunpack.c.l.b16 %v62
  %v167 = vunpack.c.l.b16 %v63
  %v168 = vunpack.c.l.b16 %v64
  %v169 = vunpack.c.l.b16 %v65
  %v170 = vunpack.c.l.b16 %v66
  %v171 = vunpack.c.l.b16 %v67
  %v172 = vunpack.c.l.b16 %v68
  %v173 = vunpack.c.l.b16 %v69
  %v174 = vunpack.c.l.b16 %v70
  %v175 = vunpack.c.l.b16 %v71
  %v176 = vunpack.c.l.b16 %v72
  %v177 = vunpack.c.l.b16 %v73
  %v178 = vunpack.c.l.b16 %v74
  %v179 = vpack.c.b16 %v131, %v130
  %v180 = vpack.c.b16 %v133, %v132
  %v181 = vpack.c.b16 %v135, %v134
  %v182 = vpack.c.b16 %v137, %v136
  %v183 = vpack.c.b16 %v139, %v138
  %v184 = vpack.c.b16 %v141, %v140
  %v185 = vpack.c.b16 %v143, %v142
  %v186 = vpack.c.b16 %v145, %v144
  %v187 = vpack.c.b16 %v147, %v146
  %v188 = vpack.c.b16 %v149, %v148
  %v189 = vpack.c.b16 %v151, %v150
  %v190 = vpack.c.b16 %v153, %v152
  %v191 = vpack.c.b16 %v155, %v154
  %v192 = vpack.c.b16 %v157, %v156
  %v193 = vpack.c.b16 %v159, %v158
  %v194 = vpack.c.b16 %v161, %v160
  %v195 = vpack.c.b16 %v163, %v162
  %v196 = vpack.c.b16 %v165, %v164
  %v197 = vpack.c.b16 %v167, %v166
  %v198 = vpack.c.b16 %v169, %v168
  %v199 = vpack.c.b16 %v171, %v170
  %v200 = vpack.c.b16 %v173, %v172
  %v201 = vpack.c.b16 %v175, %v174
  %v202 = vpack.c.b16 %v177, %v176
  %v203 = vpack.c.b16 %v178, %v178
  %v214 = vunpack.c.l.b16 %v15
  %v215 = vunpack.c.l.b16 %v16
  %v216 = vunpack.c.l.b16 %v17
  %v217 = vunpack.c.l.b16 %v18
  %v218 = vunpack.c.l.b16 %v19
  %v219 = vunpack.c.l.b16 %v20
  %v220 = vunpack.c.l.b16 %v21
  %v221 = vunpack.c.l.b16 %v22
  %v222 = vunpack.c.l.b16 %v23
  %v223 = vunpack.c.l.b16 %v24
  %v224 = vpack.c.b16 %v215, %v214
  %v225 = vpack.c.b16 %v217, %v216
  %v226 = vpack.c.b16 %v219, %v218
  %v227 = vpack.c.b16 %v221, %v220
  %v228 = vpack.c.b16 %v223, %v222
  %vm233 = vcmask 613376
  %v235 = vsel %vm233, %v179, 0
  %v238 = vsel %vm233, %v180, 0
  %v241 = vsel %vm233, %v181, 0
  %v244 = vsel %vm233, %v182, 0
  %v247 = vsel %vm233, %v183, 0
  %v250 = vsel %vm233, %v184, 0
  %v253 = vsel %vm233, %v185, 0
  %v256 = vsel %vm233, %v186, 0
  %v259 = vsel %vm233, %v187, 0
  %v262 = vsel %vm233, %v188, 0
  %v265 = vsel %vm233, %v189, 0
  %v268 = vsel %vm233, %v190, 0
  %v271 = vsel %vm233, %v191, 0
  %v274 = vsel %vm233, %v192, 0
  %v277 = vsel %vm233, %v193, 0
  %v280 = vsel %vm233, %v194, 0
  %v283 = vsel %vm233, %v195, 0
  %v286 = vsel %vm233, %v196, 0
  %v289 = vsel %vm233, %v197, 0
  %v292 = vsel %vm233, %v198, 0
  %v295 = vsel %vm233, %v199, 0
  %v298 = vsel %vm233, %v200, 0
  %v301 = vsel %vm233, %v201, 0
  %v304 = vsel %vm233, %v202, 0
  %v307 = vsel %vm233, %v203, 0
  %vm309 = vcmask 1044480
  %vm310 = vcmask 1045504
  %v311 = vsel %vm309, 4294967295, 65535
  %v312 = vsel %vm310, %v311, 0
  %v314 = vand.u32 %v228, %v312
  %316 = vmatprep.subr.bf16.mxu0 0
  %317 = vmatpush1.bf16.msra.mxu0 %v224
  %318 = vmatprep.subr.bf16.mxu0 0
  %319 = vmatpush1.bf16.msra.mxu0 %v225
  %320 = vmatprep.subr.bf16.mxu0 0
  %321 = vmatpush1.bf16.msra.mxu0 %v226
  %322 = vmatprep.subr.bf16.mxu0 0
  %323 = vmatpush1.bf16.msra.mxu0 %v227
  %324 = vmatprep.subr.bf16.mxu0 0
  %325 = vmatpush1.bf16.msra.mxu0 %v314
  %326 = vmatprep.subr.bf16.mxu0 0
  %327 = vmatpush1.bf16.msra.mxu0 0
  %328 = vmatprep.subr.bf16.mxu0 0
  %329 = vmatpush1.bf16.msra.mxu0 0
  %330 = vmatprep.subr.bf16.mxu0 0
  %331 = vmatpush1.bf16.msra.mxu0 0
  %332 = vmatprep.subr.bf16.mxu0 0
  %333 = vmatpush1.bf16.msra.mxu0 0
  %334 = vmatprep.subr.bf16.mxu0 0
  %335 = vmatpush1.bf16.msra.mxu0 0
  %336 = vmatprep.subr.bf16.mxu0 0
  %337 = vmatpush1.bf16.msra.mxu0 0
  %338 = vmatprep.subr.bf16.mxu0 0
  %339 = vmatpush1.bf16.msra.mxu0 0
  %340 = vmatprep.subr.bf16.mxu0 0
  %341 = vmatpush1.bf16.msra.mxu0 0
  %342 = vmatprep.subr.bf16.mxu0 0
  %343 = vmatpush1.bf16.msra.mxu0 0
  %344 = vmatprep.subr.bf16.mxu0 0
  %345 = vmatpush1.bf16.msra.mxu0 0
  %346 = vmatprep.subr.bf16.mxu0 0
  %347 = vmatpush1.bf16.msra.mxu0 0
  %348 = vmatprep.mubr.bf16.mxu0 0
  %349 = vmatmul.mubr.bf16.gmra.mrb[0].mxu0 %v235
  %v350 = vpop.f32.mrb[0].mxu0
  %v351 = vadd.f32 %v79, %v350
  %v352 = vpop.f32.mrb[0].mxu0
  %v353 = vpop.f32.mrb[0].mxu0
  %v354 = vadd.f32 %v79, %v353
  %v355 = vpop.f32.mrb[0].mxu0
  %356 = vmatprep.mubr.bf16.mxu0 0
  %357 = vmatmul.mubr.bf16.gmra.mrb[0].mxu0 %v238
  %v358 = vpop.f32.mrb[0].mxu0
  %v359 = vadd.f32 %v79, %v358
  %v360 = vpop.f32.mrb[0].mxu0
  %v361 = vpop.f32.mrb[0].mxu0
  %v362 = vadd.f32 %v79, %v361
  %v363 = vpop.f32.mrb[0].mxu0
  %364 = vmatprep.mubr.bf16.mxu0 0
  %365 = vmatmul.mubr.bf16.gmra.mrb[0].mxu0 %v241
  %v366 = vpop.f32.mrb[0].mxu0
  %v367 = vadd.f32 %v79, %v366
  %v368 = vpop.f32.mrb[0].mxu0
  %v369 = vpop.f32.mrb[0].mxu0
  %v370 = vadd.f32 %v79, %v369
  %v371 = vpop.f32.mrb[0].mxu0
  %372 = vmatprep.mubr.bf16.mxu0 0
  %373 = vmatmul.mubr.bf16.gmra.mrb[0].mxu0 %v244
  %v374 = vpop.f32.mrb[0].mxu0
  %v375 = vadd.f32 %v79, %v374
  %v376 = vpop.f32.mrb[0].mxu0
  %v377 = vpop.f32.mrb[0].mxu0
  %v378 = vadd.f32 %v79, %v377
  %v379 = vpop.f32.mrb[0].mxu0
  %380 = vmatprep.mubr.bf16.mxu0 0
  %381 = vmatmul.mubr.bf16.gmra.mrb[0].mxu0 %v247
  %v382 = vpop.f32.mrb[0].mxu0
  %v383 = vadd.f32 %v79, %v382
  %v384 = vpop.f32.mrb[0].mxu0
  %v385 = vpop.f32.mrb[0].mxu0
  %v386 = vadd.f32 %v79, %v385
  %v387 = vpop.f32.mrb[0].mxu0
  %388 = vmatprep.mubr.bf16.mxu0 0
  %389 = vmatmul.mubr.bf16.gmra.mrb[0].mxu0 %v250
  %v390 = vpop.f32.mrb[0].mxu0
  %v391 = vadd.f32 %v79, %v390
  %v392 = vpop.f32.mrb[0].mxu0
  %v393 = vpop.f32.mrb[0].mxu0
  %v394 = vadd.f32 %v79, %v393
  %v395 = vpop.f32.mrb[0].mxu0
  %396 = vmatprep.mubr.bf16.mxu0 0
  %397 = vmatmul.mubr.bf16.gmra.mrb[0].mxu0 %v253
  %v398 = vpop.f32.mrb[0].mxu0
  %v399 = vadd.f32 %v79, %v398
  %v400 = vpop.f32.mrb[0].mxu0
  %v401 = vpop.f32.mrb[0].mxu0
  %v402 = vadd.f32 %v79, %v401
  %v403 = vpop.f32.mrb[0].mxu0
  %404 = vmatprep.mubr.bf16.mxu0 0
  %405 = vmatmul.mubr.bf16.gmra.mrb[0].mxu0 %v256
  %v406 = vpop.f32.mrb[0].mxu0
  %v407 = vadd.f32 %v79, %v406
  %v408 = vpop.f32.mrb[0].mxu0
  %v409 = vpop.f32.mrb[0].mxu0
  %v410 = vadd.f32 %v79, %v409
  %v411 = vpop.f32.mrb[0].mxu0
  %412 = vmatprep.mubr.bf16.mxu0 0
  %413 = vmatmul.mubr.bf16.gmra.mrb[0].mxu0 %v259
  %v414 = vpop.f32.mrb[0].mxu0
  %v415 = vadd.f32 %v79, %v414
  %v416 = vpop.f32.mrb[0].mxu0
  %v417 = vpop.f32.mrb[0].mxu0
  %v418 = vadd.f32 %v79, %v417
  %v419 = vpop.f32.mrb[0].mxu0
  %420 = vmatprep.mubr.bf16.mxu0 0
  %421 = vmatmul.mubr.bf16.gmra.mrb[0].mxu0 %v262
  %v422 = vpop.f32.mrb[0].mxu0
  %v423 = vadd.f32 %v79, %v422
  %v424 = vpop.f32.mrb[0].mxu0
  %v425 = vpop.f32.mrb[0].mxu0
  %v426 = vadd.f32 %v79, %v425
  %v427 = vpop.f32.mrb[0].mxu0
  %428 = vmatprep.mubr.bf16.mxu0 0
  %429 = vmatmul.mubr.bf16.gmra.mrb[0].mxu0 %v265
  %v430 = vpop.f32.mrb[0].mxu0
  %v431 = vadd.f32 %v79, %v430
  %v432 = vpop.f32.mrb[0].mxu0
  %v433 = vpop.f32.mrb[0].mxu0
  %v434 = vadd.f32 %v79, %v433
  %v435 = vpop.f32.mrb[0].mxu0
  %436 = vmatprep.mubr.bf16.mxu0 0
  %437 = vmatmul.mubr.bf16.gmra.mrb[0].mxu0 %v268
  %v438 = vpop.f32.mrb[0].mxu0
  %v439 = vadd.f32 %v79, %v438
  %v440 = vpop.f32.mrb[0].mxu0
  %v441 = vpop.f32.mrb[0].mxu0
  %v442 = vadd.f32 %v79, %v441
  %v443 = vpop.f32.mrb[0].mxu0
  %444 = vmatprep.mubr.bf16.mxu0 0
  %445 = vmatmul.mubr.bf16.gmra.mrb[0].mxu0 %v271
  %v446 = vpop.f32.mrb[0].mxu0
  %v447 = vadd.f32 %v79, %v446
  %v448 = vpop.f32.mrb[0].mxu0
  %v449 = vpop.f32.mrb[0].mxu0
  %v450 = vadd.f32 %v79, %v449
  %v451 = vpop.f32.mrb[0].mxu0
  %452 = vmatprep.mubr.bf16.mxu0 0
  %453 = vmatmul.mubr.bf16.gmra.mrb[0].mxu0 %v274
  %v454 = vpop.f32.mrb[0].mxu0
  %v455 = vadd.f32 %v79, %v454
  %v456 = vpop.f32.mrb[0].mxu0
  %v457 = vpop.f32.mrb[0].mxu0
  %v458 = vadd.f32 %v79, %v457
  %v459 = vpop.f32.mrb[0].mxu0
  %460 = vmatprep.mubr.bf16.mxu0 0
  %461 = vmatmul.mubr.bf16.gmra.mrb[0].mxu0 %v277
  %v462 = vpop.f32.mrb[0].mxu0
  %v463 = vadd.f32 %v79, %v462
  %v464 = vpop.f32.mrb[0].mxu0
  %v465 = vpop.f32.mrb[0].mxu0
  %v466 = vadd.f32 %v79, %v465
  %v467 = vpop.f32.mrb[0].mxu0
  %468 = vmatprep.mubr.bf16.mxu0 0
  %469 = vmatmul.mubr.bf16.gmra.mrb[0].mxu0 %v280
  %v470 = vpop.f32.mrb[0].mxu0
  %v471 = vadd.f32 %v79, %v470
  %v472 = vpop.f32.mrb[0].mxu0
  %v473 = vpop.f32.mrb[0].mxu0
  %v474 = vadd.f32 %v79, %v473
  %v475 = vpop.f32.mrb[0].mxu0
  %476 = vmatprep.mubr.bf16.mxu0 0
  %477 = vmatmul.mubr.bf16.gmra.mrb[0].mxu0 %v283
  %v478 = vpop.f32.mrb[0].mxu0
  %v479 = vadd.f32 %v79, %v478
  %v480 = vpop.f32.mrb[0].mxu0
  %v481 = vpop.f32.mrb[0].mxu0
  %v482 = vadd.f32 %v79, %v481
  %v483 = vpop.f32.mrb[0].mxu0
  %484 = vmatprep.mubr.bf16.mxu0 0
  %485 = vmatmul.mubr.bf16.gmra.mrb[0].mxu0 %v286
  %v486 = vpop.f32.mrb[0].mxu0
  %v487 = vadd.f32 %v79, %v486
  %v488 = vpop.f32.mrb[0].mxu0
  %v489 = vpop.f32.mrb[0].mxu0
  %v490 = vadd.f32 %v79, %v489
  %v491 = vpop.f32.mrb[0].mxu0
  %492 = vmatprep.mubr.bf16.mxu0 0
  %493 = vmatmul.mubr.bf16.gmra.mrb[0].mxu0 %v289
  %v494 = vpop.f32.mrb[0].mxu0
  %v495 = vadd.f32 %v79, %v494
  %v496 = vpop.f32.mrb[0].mxu0
  %v497 = vpop.f32.mrb[0].mxu0
  %v498 = vadd.f32 %v79, %v497
  %v499 = vpop.f32.mrb[0].mxu0
  %500 = vmatprep.mubr.bf16.mxu0 0
  %501 = vmatmul.mubr.bf16.gmra.mrb[0].mxu0 %v292
  %v502 = vpop.f32.mrb[0].mxu0
  %v503 = vadd.f32 %v79, %v502
  %v504 = vpop.f32.mrb[0].mxu0
  %v505 = vpop.f32.mrb[0].mxu0
  %v506 = vadd.f32 %v79, %v505
  %v507 = vpop.f32.mrb[0].mxu0
  %508 = vmatprep.mubr.bf16.mxu0 0
  %509 = vmatmul.mubr.bf16.gmra.mrb[0].mxu0 %v295
  %v510 = vpop.f32.mrb[0].mxu0
  %v511 = vadd.f32 %v79, %v510
  %v512 = vpop.f32.mrb[0].mxu0
  %v513 = vpop.f32.mrb[0].mxu0
  %v514 = vadd.f32 %v79, %v513
  %v515 = vpop.f32.mrb[0].mxu0
  %516 = vmatprep.mubr.bf16.mxu0 0
  %517 = vmatmul.mubr.bf16.gmra.mrb[0].mxu0 %v298
  %v518 = vpop.f32.mrb[0].mxu0
  %v519 = vadd.f32 %v79, %v518
  %v520 = vpop.f32.mrb[0].mxu0
  %v521 = vpop.f32.mrb[0].mxu0
  %v522 = vadd.f32 %v79, %v521
  %v523 = vpop.f32.mrb[0].mxu0
  %524 = vmatprep.mubr.bf16.mxu0 0
  %525 = vmatmul.mubr.bf16.gmra.mrb[0].mxu0 %v301
  %v526 = vpop.f32.mrb[0].mxu0
  %v527 = vadd.f32 %v79, %v526
  %v528 = vpop.f32.mrb[0].mxu0
  %v529 = vpop.f32.mrb[0].mxu0
  %v530 = vadd.f32 %v79, %v529
  %v531 = vpop.f32.mrb[0].mxu0
  %532 = vmatprep.mubr.bf16.mxu0 0
  %533 = vmatmul.mubr.bf16.gmra.mrb[0].mxu0 %v304
  %v534 = vpop.f32.mrb[0].mxu0
  %v535 = vadd.f32 %v79, %v534
  %v536 = vpop.f32.mrb[0].mxu0
  %v537 = vpop.f32.mrb[0].mxu0
  %v538 = vadd.f32 %v79, %v537
  %v539 = vpop.f32.mrb[0].mxu0
  %540 = vmatprep.mubr.bf16.mxu0 0
  %541 = vmatmul.mubr.bf16.gmra.mrb[0].mxu0 %v307
  %v542 = vpop.f32.mrb[0].mxu0
  %v543 = vadd.f32 %v79, %v542
  %v544 = vpop.f32.mrb[0].mxu0
  %v545 = vpop.f32.mrb[0].mxu0
  %v546 = vpop.f32.mrb[0].mxu0
  %547 = vdwg.mxu0
  %v548 = vmax.f32 %v351, 0.0
  %v549 = vmax.f32 %v354, 0.0
  %v550 = vmax.f32 %v359, 0.0
  %v551 = vmax.f32 %v362, 0.0
  %v552 = vmax.f32 %v367, 0.0
  %v553 = vmax.f32 %v370, 0.0
  %v554 = vmax.f32 %v375, 0.0
  %v555 = vmax.f32 %v378, 0.0
  %v556 = vmax.f32 %v383, 0.0
  %v557 = vmax.f32 %v386, 0.0
  %v558 = vmax.f32 %v391, 0.0
  %v559 = vmax.f32 %v394, 0.0
  %v560 = vmax.f32 %v399, 0.0
  %v561 = vmax.f32 %v402, 0.0
  %v562 = vmax.f32 %v407, 0.0
  %v563 = vmax.f32 %v410, 0.0
  %v564 = vmax.f32 %v415, 0.0
  %v565 = vmax.f32 %v418, 0.0
  %v566 = vmax.f32 %v423, 0.0
  %v567 = vmax.f32 %v426, 0.0
  %v568 = vmax.f32 %v431, 0.0
  %v569 = vmax.f32 %v434, 0.0
  %v570 = vmax.f32 %v439, 0.0
  %v571 = vmax.f32 %v442, 0.0
  %v572 = vmax.f32 %v447, 0.0
  %v573 = vmax.f32 %v450, 0.0
  %v574 = vmax.f32 %v455, 0.0
  %v575 = vmax.f32 %v458, 0.0
  %v576 = vmax.f32 %v463, 0.0
  %v577 = vmax.f32 %v466, 0.0
  %v578 = vmax.f32 %v471, 0.0
  %v579 = vmax.f32 %v474, 0.0
  %v580 = vmax.f32 %v479, 0.0
  %v581 = vmax.f32 %v482, 0.0
  %v582 = vmax.f32 %v487, 0.0
  %v583 = vmax.f32 %v490, 0.0
  %v584 = vmax.f32 %v495, 0.0
  %v585 = vmax.f32 %v498, 0.0
  %v586 = vmax.f32 %v503, 0.0
  %v587 = vmax.f32 %v506, 0.0
  %v588 = vmax.f32 %v511, 0.0
  %v589 = vmax.f32 %v514, 0.0
  %v590 = vmax.f32 %v519, 0.0
  %v591 = vmax.f32 %v522, 0.0
  %v592 = vmax.f32 %v527, 0.0
  %v593 = vmax.f32 %v530, 0.0
  %v594 = vmax.f32 %v535, 0.0
  %v595 = vmax.f32 %v538, 0.0
  %v596 = vmax.f32 %v543, 0.0
  %s597 = scalar_lea.vmem %s0, 196
  %v598 = vld [vmem:[%s597] sm:$0xf]
  %v599 = vld [vmem:[%s597 + $0x4] sm:$0xf]
  %v600 = vld [vmem:[%s597 + $0x8] sm:$0xf]
  %v601 = vld [vmem:[%s597 + $0xc] sm:$0xf]
  %v602 = vld [vmem:[%s597 + $0x10] sm:$0xf]
  %v603 = vld [vmem:[%s597 + $0x14] sm:$0xf]
  %v604 = vld [vmem:[%s597 + $0x18] sm:$0xf]
  %v605 = vld [vmem:[%s597 + $0x1c] sm:$0xf]
  %v606 = vld [vmem:[%s597 + $0x20] sm:$0xf]
  %v607 = vld [vmem:[%s597 + $0x24] sm:$0xf]
  %v608 = vld [vmem:[%s597 + $0x28] sm:$0xf]
  %v609 = vld [vmem:[%s597 + $0x2c] sm:$0xf]
  %v610 = vld [vmem:[%s597 + $0x30] sm:$0xf]
  %v611 = vld [vmem:[%s597 + $0x34] sm:$0xf]
  %v612 = vld [vmem:[%s597 + $0x38] sm:$0xf]
  %v613 = vld [vmem:[%s597 + $0x3c] sm:$0xf]
  %v614 = vld [vmem:[%s597 + $0x40] sm:$0xf]
  %v615 = vld [vmem:[%s597 + $0x44] sm:$0xf]
  %v616 = vld [vmem:[%s597 + $0x48] sm:$0xf]
  %v617 = vld [vmem:[%s597 + $0x4c] sm:$0xf]
  %v618 = vld [vmem:[%s597 + $0x50] sm:$0xf]
  %v619 = vld [vmem:[%s597 + $0x54] sm:$0xf]
  %v620 = vld [vmem:[%s597 + $0x58] sm:$0xf]
  %v621 = vld [vmem:[%s597 + $0x5c] sm:$0xf]
  %v622 = vld [vmem:[%s597 + $0x60] sm:$0xf]
  %v623 = vld [vmem:[%s597 + $0x64] sm:$0xf]
  %v624 = vld [vmem:[%s597 + $0x68] sm:$0xf]
  %v625 = vld [vmem:[%s597 + $0x6c] sm:$0xf]
  %v626 = vld [vmem:[%s597 + $0x70] sm:$0xf]
  %v627 = vld [vmem:[%s597 + $0x74] sm:$0xf]
  %v628 = vld [vmem:[%s597 + $0x78] sm:$0xf]
  %v629 = vld [vmem:[%s597 + $0x7c] sm:$0xf]
  %v630 = vld [vmem:[%s597 + $0x80] sm:$0xf]
  %v631 = vld [vmem:[%s597 + $0x84] sm:$0xf]
  %v632 = vld [vmem:[%s597 + $0x88] sm:$0xf]
  %v633 = vld [vmem:[%s597 + $0x8c] sm:$0xf]
  %v634 = vld [vmem:[%s597 + $0x90] sm:$0xf]
  %v635 = vld [vmem:[%s597 + $0x94] sm:$0xf]
  %v636 = vld [vmem:[%s597 + $0x98] sm:$0xf]
  %v637 = vld [vmem:[%s597 + $0x9c] sm:$0xf]
  %v638 = vld [vmem:[%s597 + $0xa0] sm:$0xf]
  %v639 = vld [vmem:[%s597 + $0xa4] sm:$0xf]
  %v640 = vld [vmem:[%s597 + $0xa8] sm:$0xf]
  %v641 = vld [vmem:[%s597 + $0xac] sm:$0xf]
  %v642 = vld [vmem:[%s597 + $0xb0] sm:$0xf]
  %v643 = vld [vmem:[%s597 + $0xb4] sm:$0xf]
  %v644 = vld [vmem:[%s597 + $0xb8] sm:$0xf]
  %v645 = vld [vmem:[%s597 + $0xbc] sm:$0xf]
  %v646 = vld [vmem:[%s597 + $0xc0] sm:$0xf]
  %v696 = vunpack.c.l.b16 %v598
  %v697 = vunpack.c.l.b16 %v599
  %v698 = vunpack.c.l.b16 %v600
  %v699 = vunpack.c.l.b16 %v601
  %v700 = vunpack.c.l.b16 %v602
  %v701 = vunpack.c.l.b16 %v603
  %v702 = vunpack.c.l.b16 %v604
  %v703 = vunpack.c.l.b16 %v605
  %v704 = vunpack.c.l.b16 %v606
  %v705 = vunpack.c.l.b16 %v607
  %v706 = vunpack.c.l.b16 %v608
  %v707 = vunpack.c.l.b16 %v609
  %v708 = vunpack.c.l.b16 %v610
  %v709 = vunpack.c.l.b16 %v611
  %v710 = vunpack.c.l.b16 %v612
  %v711 = vunpack.c.l.b16 %v613
  %v712 = vunpack.c.l.b16 %v614
  %v713 = vunpack.c.l.b16 %v615
  %v714 = vunpack.c.l.b16 %v616
  %v715 = vunpack.c.l.b16 %v617
  %v716 = vunpack.c.l.b16 %v618
  %v717 = vunpack.c.l.b16 %v619
  %v718 = vunpack.c.l.b16 %v620
  %v719 = vunpack.c.l.b16 %v621
  %v720 = vunpack.c.l.b16 %v622
  %v721 = vunpack.c.l.b16 %v623
  %v722 = vunpack.c.l.b16 %v624
  %v723 = vunpack.c.l.b16 %v625
  %v724 = vunpack.c.l.b16 %v626
  %v725 = vunpack.c.l.b16 %v627
  %v726 = vunpack.c.l.b16 %v628
  %v727 = vunpack.c.l.b16 %v629
  %v728 = vunpack.c.l.b16 %v630
  %v729 = vunpack.c.l.b16 %v631
  %v730 = vunpack.c.l.b16 %v632
  %v731 = vunpack.c.l.b16 %v633
  %v732 = vunpack.c.l.b16 %v634
  %v733 = vunpack.c.l.b16 %v635
  %v734 = vunpack.c.l.b16 %v636
  %v735 = vunpack.c.l.b16 %v637
  %v736 = vunpack.c.l.b16 %v638
  %v737 = vunpack.c.l.b16 %v639
  %v738 = vunpack.c.l.b16 %v640
  %v739 = vunpack.c.l.b16 %v641
  %v740 = vunpack.c.l.b16 %v642
  %v741 = vunpack.c.l.b16 %v643
  %v742 = vunpack.c.l.b16 %v644
  %v743 = vunpack.c.l.b16 %v645
  %v744 = vunpack.c.l.b16 %v646
  %v745 = vpack.c.b16 %v697, %v696
  %v746 = vpack.c.b16 %v699, %v698
  %v747 = vpack.c.b16 %v701, %v700
  %v748 = vpack.c.b16 %v703, %v702
  %v749 = vpack.c.b16 %v705, %v704
  %v750 = vpack.c.b16 %v707, %v706
  %v751 = vpack.c.b16 %v709, %v708
  %v752 = vpack.c.b16 %v711, %v710
  %v753 = vpack.c.b16 %v713, %v712
  %v754 = vpack.c.b16 %v715, %v714
  %v755 = vpack.c.b16 %v717, %v716
  %v756 = vpack.c.b16 %v719, %v718
  %v757 = vpack.c.b16 %v721, %v720
  %v758 = vpack.c.b16 %v723, %v722
  %v759 = vpack.c.b16 %v725, %v724
  %v760 = vpack.c.b16 %v727, %v726
  %v761 = vpack.c.b16 %v729, %v728
  %v762 = vpack.c.b16 %v731, %v730
  %v763 = vpack.c.b16 %v733, %v732
  %v764 = vpack.c.b16 %v735, %v734
  %v765 = vpack.c.b16 %v737, %v736
  %v766 = vpack.c.b16 %v739, %v738
  %v767 = vpack.c.b16 %v741, %v740
  %v768 = vpack.c.b16 %v743, %v742
  %v769 = vpack.c.b16 %v744, %v744
  %v771 = vsel %vm233, %v745, 0
  %v774 = vsel %vm233, %v746, 0
  %v777 = vsel %vm233, %v747, 0
  %v780 = vsel %vm233, %v748, 0
  %v783 = vsel %vm233, %v749, 0
  %v786 = vsel %vm233, %v750, 0
  %v789 = vsel %vm233, %v751, 0
  %v792 = vsel %vm233, %v752, 0
  %v795 = vsel %vm233, %v753, 0
  %v798 = vsel %vm233, %v754, 0
  %v801 = vsel %vm233, %v755, 0
  %v804 = vsel %vm233, %v756, 0
  %v807 = vsel %vm233, %v757, 0
  %v810 = vsel %vm233, %v758, 0
  %v813 = vsel %vm233, %v759, 0
  %v816 = vsel %vm233, %v760, 0
  %v819 = vsel %vm233, %v761, 0
  %v822 = vsel %vm233, %v762, 0
  %v825 = vsel %vm233, %v763, 0
  %v828 = vsel %vm233, %v764, 0
  %v831 = vsel %vm233, %v765, 0
  %v834 = vsel %vm233, %v766, 0
  %v837 = vsel %vm233, %v767, 0
  %v840 = vsel %vm233, %v768, 0
  %v843 = vsel %vm233, %v769, 0
  %845 = vmatprep.subr.bf16.mxu0 0
  %846 = vmatpush1.bf16.msra.mxu0 %v224
  %847 = vmatprep.subr.bf16.mxu0 0
  %848 = vmatpush1.bf16.msra.mxu0 %v225
  %849 = vmatprep.subr.bf16.mxu0 0
  %850 = vmatpush1.bf16.msra.mxu0 %v226
  %851 = vmatprep.subr.bf16.mxu0 0
  %852 = vmatpush1.bf16.msra.mxu0 %v227
  %853 = vmatprep.subr.bf16.mxu0 0
  %854 = vmatpush1.bf16.msra.mxu0 %v314
  %855 = vmatprep.subr.bf16.mxu0 0
  %856 = vmatpush1.bf16.msra.mxu0 0
  %857 = vmatprep.subr.bf16.mxu0 0
  %858 = vmatpush1.bf16.msra.mxu0 0
  %859 = vmatprep.subr.bf16.mxu0 0
  %860 = vmatpush1.bf16.msra.mxu0 0
  %861 = vmatprep.subr.bf16.mxu0 0
  %862 = vmatpush1.bf16.msra.mxu0 0
  %863 = vmatprep.subr.bf16.mxu0 0
  %864 = vmatpush1.bf16.msra.mxu0 0
  %865 = vmatprep.subr.bf16.mxu0 0
  %866 = vmatpush1.bf16.msra.mxu0 0
  %867 = vmatprep.subr.bf16.mxu0 0
  %868 = vmatpush1.bf16.msra.mxu0 0
  %869 = vmatprep.subr.bf16.mxu0 0
  %870 = vmatpush1.bf16.msra.mxu0 0
  %871 = vmatprep.subr.bf16.mxu0 0
  %872 = vmatpush1.bf16.msra.mxu0 0
  %873 = vmatprep.subr.bf16.mxu0 0
  %874 = vmatpush1.bf16.msra.mxu0 0
  %875 = vmatprep.subr.bf16.mxu0 0
  %876 = vmatpush1.bf16.msra.mxu0 0
  %877 = vmatprep.mubr.bf16.mxu0 0
  %878 = vmatmul.mubr.bf16.gmra.mrb[0].mxu0 %v771
  %v879 = vpop.f32.mrb[0].mxu0
  %v880 = vadd.f32 %v79, %v879
  %v881 = vpop.f32.mrb[0].mxu0
  %v882 = vpop.f32.mrb[0].mxu0
  %v883 = vadd.f32 %v79, %v882
  %v884 = vpop.f32.mrb[0].mxu0
  %885 = vmatprep.mubr.bf16.mxu0 0
  %886 = vmatmul.mubr.bf16.gmra.mrb[0].mxu0 %v774
  %v887 = vpop.f32.mrb[0].mxu0
  %v888 = vadd.f32 %v79, %v887
  %v889 = vpop.f32.mrb[0].mxu0
  %v890 = vpop.f32.mrb[0].mxu0
  %v891 = vadd.f32 %v79, %v890
  %v892 = vpop.f32.mrb[0].mxu0
  %893 = vmatprep.mubr.bf16.mxu0 0
  %894 = vmatmul.mubr.bf16.gmra.mrb[0].mxu0 %v777
  %v895 = vpop.f32.mrb[0].mxu0
  %v896 = vadd.f32 %v79, %v895
  %v897 = vpop.f32.mrb[0].mxu0
  %v898 = vpop.f32.mrb[0].mxu0
  %v899 = vadd.f32 %v79, %v898
  %v900 = vpop.f32.mrb[0].mxu0
  %901 = vmatprep.mubr.bf16.mxu0 0
  %902 = vmatmul.mubr.bf16.gmra.mrb[0].mxu0 %v780
  %v903 = vpop.f32.mrb[0].mxu0
  %v904 = vadd.f32 %v79, %v903
  %v905 = vpop.f32.mrb[0].mxu0
  %v906 = vpop.f32.mrb[0].mxu0
  %v907 = vadd.f32 %v79, %v906
  %v908 = vpop.f32.mrb[0].mxu0
  %909 = vmatprep.mubr.bf16.mxu0 0
  %910 = vmatmul.mubr.bf16.gmra.mrb[0].mxu0 %v783
  %v911 = vpop.f32.mrb[0].mxu0
  %v912 = vadd.f32 %v79, %v911
  %v913 = vpop.f32.mrb[0].mxu0
  %v914 = vpop.f32.mrb[0].mxu0
  %v915 = vadd.f32 %v79, %v914
  %v916 = vpop.f32.mrb[0].mxu0
  %917 = vmatprep.mubr.bf16.mxu0 0
  %918 = vmatmul.mubr.bf16.gmra.mrb[0].mxu0 %v786
  %v919 = vpop.f32.mrb[0].mxu0
  %v920 = vadd.f32 %v79, %v919
  %v921 = vpop.f32.mrb[0].mxu0
  %v922 = vpop.f32.mrb[0].mxu0
  %v923 = vadd.f32 %v79, %v922
  %v924 = vpop.f32.mrb[0].mxu0
  %925 = vmatprep.mubr.bf16.mxu0 0
  %926 = vmatmul.mubr.bf16.gmra.mrb[0].mxu0 %v789
  %v927 = vpop.f32.mrb[0].mxu0
  %v928 = vadd.f32 %v79, %v927
  %v929 = vpop.f32.mrb[0].mxu0
  %v930 = vpop.f32.mrb[0].mxu0
  %v931 = vadd.f32 %v79, %v930
  %v932 = vpop.f32.mrb[0].mxu0
  %933 = vmatprep.mubr.bf16.mxu0 0
  %934 = vmatmul.mubr.bf16.gmra.mrb[0].mxu0 %v792
  %v935 = vpop.f32.mrb[0].mxu0
  %v936 = vadd.f32 %v79, %v935
  %v937 = vpop.f32.mrb[0].mxu0
  %v938 = vpop.f32.mrb[0].mxu0
  %v939 = vadd.f32 %v79, %v938
  %v940 = vpop.f32.mrb[0].mxu0
  %941 = vmatprep.mubr.bf16.mxu0 0
  %942 = vmatmul.mubr.bf16.gmra.mrb[0].mxu0 %v795
  %v943 = vpop.f32.mrb[0].mxu0
  %v944 = vadd.f32 %v79, %v943
  %v945 = vpop.f32.mrb[0].mxu0
  %v946 = vpop.f32.mrb[0].mxu0
  %v947 = vadd.f32 %v79, %v946
  %v948 = vpop.f32.mrb[0].mxu0
  %949 = vmatprep.mubr.bf16.mxu0 0
  %950 = vmatmul.mubr.bf16.gmra.mrb[0].mxu0 %v798
  %v951 = vpop.f32.mrb[0].mxu0
  %v952 = vadd.f32 %v79, %v951
  %v953 = vpop.f32.mrb[0].mxu0
  %v954 = vpop.f32.mrb[0].mxu0
  %v955 = vadd.f32 %v79, %v954
  %v956 = vpop.f32.mrb[0].mxu0
  %957 = vmatprep.mubr.bf16.mxu0 0
  %958 = vmatmul.mubr.bf16.gmra.mrb[0].mxu0 %v801
  %v959 = vpop.f32.mrb[0].mxu0
  %v960 = vadd.f32 %v79, %v959
  %v961 = vpop.f32.mrb[0].mxu0
  %v962 = vpop.f32.mrb[0].mxu0
  %v963 = vadd.f32 %v79, %v962
  %v964 = vpop.f32.mrb[0].mxu0
  %965 = vmatprep.mubr.bf16.mxu0 0
  %966 = vmatmul.mubr.bf16.gmra.mrb[0].mxu0 %v804
  %v967 = vpop.f32.mrb[0].mxu0
  %v968 = vadd.f32 %v79, %v967
  %v969 = vpop.f32.mrb[0].mxu0
  %v970 = vpop.f32.mrb[0].mxu0
  %v971 = vadd.f32 %v79, %v970
  %v972 = vpop.f32.mrb[0].mxu0
  %973 = vmatprep.mubr.bf16.mxu0 0
  %974 = vmatmul.mubr.bf16.gmra.mrb[0].mxu0 %v807
  %v975 = vpop.f32.mrb[0].mxu0
  %v976 = vadd.f32 %v79, %v975
  %v977 = vpop.f32.mrb[0].mxu0
  %v978 = vpop.f32.mrb[0].mxu0
  %v979 = vadd.f32 %v79, %v978
  %v980 = vpop.f32.mrb[0].mxu0
  %981 = vmatprep.mubr.bf16.mxu0 0
  %982 = vmatmul.mubr.bf16.gmra.mrb[0].mxu0 %v810
  %v983 = vpop.f32.mrb[0].mxu0
  %v984 = vadd.f32 %v79, %v983
  %v985 = vpop.f32.mrb[0].mxu0
  %v986 = vpop.f32.mrb[0].mxu0
  %v987 = vadd.f32 %v79, %v986
  %v988 = vpop.f32.mrb[0].mxu0
  %989 = vmatprep.mubr.bf16.mxu0 0
  %990 = vmatmul.mubr.bf16.gmra.mrb[0].mxu0 %v813
  %v991 = vpop.f32.mrb[0].mxu0
  %v992 = vadd.f32 %v79, %v991
  %v993 = vpop.f32.mrb[0].mxu0
  %v994 = vpop.f32.mrb[0].mxu0
  %v995 = vadd.f32 %v79, %v994
  %v996 = vpop.f32.mrb[0].mxu0
  %997 = vmatprep.mubr.bf16.mxu0 0
  %998 = vmatmul.mubr.bf16.gmra.mrb[0].mxu0 %v816
  %v999 = vpop.f32.mrb[0].mxu0
  %v1000 = vadd.f32 %v79, %v999
  %v1001 = vpop.f32.mrb[0].mxu0
  %v1002 = vpop.f32.mrb[0].mxu0
  %v1003 = vadd.f32 %v79, %v1002
  %v1004 = vpop.f32.mrb[0].mxu0
  %1005 = vmatprep.mubr.bf16.mxu0 0
  %1006 = vmatmul.mubr.bf16.gmra.mrb[0].mxu0 %v819
  %v1007 = vpop.f32.mrb[0].mxu0
  %v1008 = vadd.f32 %v79, %v1007
  %v1009 = vpop.f32.mrb[0].mxu0
  %v1010 = vpop.f32.mrb[0].mxu0
  %v1011 = vadd.f32 %v79, %v1010
  %v1012 = vpop.f32.mrb[0].mxu0
  %1013 = vmatprep.mubr.bf16.mxu0 0
  %1014 = vmatmul.mubr.bf16.gmra.mrb[0].mxu0 %v822
  %v1015 = vpop.f32.mrb[0].mxu0
  %v1016 = vadd.f32 %v79, %v1015
  %v1017 = vpop.f32.mrb[0].mxu0
  %v1018 = vpop.f32.mrb[0].mxu0
  %v1019 = vadd.f32 %v79, %v1018
  %v1020 = vpop.f32.mrb[0].mxu0
  %1021 = vmatprep.mubr.bf16.mxu0 0
  %1022 = vmatmul.mubr.bf16.gmra.mrb[0].mxu0 %v825
  %v1023 = vpop.f32.mrb[0].mxu0
  %v1024 = vadd.f32 %v79, %v1023
  %v1025 = vpop.f32.mrb[0].mxu0
  %v1026 = vpop.f32.mrb[0].mxu0
  %v1027 = vadd.f32 %v79, %v1026
  %v1028 = vpop.f32.mrb[0].mxu0
  %1029 = vmatprep.mubr.bf16.mxu0 0
  %1030 = vmatmul.mubr.bf16.gmra.mrb[0].mxu0 %v828
  %v1031 = vpop.f32.mrb[0].mxu0
  %v1032 = vadd.f32 %v79, %v1031
  %v1033 = vpop.f32.mrb[0].mxu0
  %v1034 = vpop.f32.mrb[0].mxu0
  %v1035 = vadd.f32 %v79, %v1034
  %v1036 = vpop.f32.mrb[0].mxu0
  %1037 = vmatprep.mubr.bf16.mxu0 0
  %1038 = vmatmul.mubr.bf16.gmra.mrb[0].mxu0 %v831
  %v1039 = vpop.f32.mrb[0].mxu0
  %v1040 = vadd.f32 %v79, %v1039
  %v1041 = vpop.f32.mrb[0].mxu0
  %v1042 = vpop.f32.mrb[0].mxu0
  %v1043 = vadd.f32 %v79, %v1042
  %v1044 = vpop.f32.mrb[0].mxu0
  %1045 = vmatprep.mubr.bf16.mxu0 0
  %1046 = vmatmul.mubr.bf16.gmra.mrb[0].mxu0 %v834
  %v1047 = vpop.f32.mrb[0].mxu0
  %v1048 = vadd.f32 %v79, %v1047
  %v1049 = vpop.f32.mrb[0].mxu0
  %v1050 = vpop.f32.mrb[0].mxu0
  %v1051 = vadd.f32 %v79, %v1050
  %v1052 = vpop.f32.mrb[0].mxu0
  %1053 = vmatprep.mubr.bf16.mxu0 0
  %1054 = vmatmul.mubr.bf16.gmra.mrb[0].mxu0 %v837
  %v1055 = vpop.f32.mrb[0].mxu0
  %v1056 = vadd.f32 %v79, %v1055
  %v1057 = vpop.f32.mrb[0].mxu0
  %v1058 = vpop.f32.mrb[0].mxu0
  %v1059 = vadd.f32 %v79, %v1058
  %v1060 = vpop.f32.mrb[0].mxu0
  %1061 = vmatprep.mubr.bf16.mxu0 0
  %1062 = vmatmul.mubr.bf16.gmra.mrb[0].mxu0 %v840
  %v1063 = vpop.f32.mrb[0].mxu0
  %v1064 = vadd.f32 %v79, %v1063
  %v1065 = vpop.f32.mrb[0].mxu0
  %v1066 = vpop.f32.mrb[0].mxu0
  %v1067 = vadd.f32 %v79, %v1066
  %v1068 = vpop.f32.mrb[0].mxu0
  %1069 = vmatprep.mubr.bf16.mxu0 0
  %1070 = vmatmul.mubr.bf16.gmra.mrb[0].mxu0 %v843
  %v1071 = vpop.f32.mrb[0].mxu0
  %v1072 = vadd.f32 %v79, %v1071
  %v1073 = vpop.f32.mrb[0].mxu0
  %v1074 = vpop.f32.mrb[0].mxu0
  %v1075 = vpop.f32.mrb[0].mxu0
  %1076 = vdwg.mxu0
  %v1077 = vmax.f32 %v880, 0.0
  %v1078 = vmax.f32 %v883, 0.0
  %v1079 = vmax.f32 %v888, 0.0
  %v1080 = vmax.f32 %v891, 0.0
  %v1081 = vmax.f32 %v896, 0.0
  %v1082 = vmax.f32 %v899, 0.0
  %v1083 = vmax.f32 %v904, 0.0
  %v1084 = vmax.f32 %v907, 0.0
  %v1085 = vmax.f32 %v912, 0.0
  %v1086 = vmax.f32 %v915, 0.0
  %v1087 = vmax.f32 %v920, 0.0
  %v1088 = vmax.f32 %v923, 0.0
  %v1089 = vmax.f32 %v928, 0.0
  %v1090 = vmax.f32 %v931, 0.0
  %v1091 = vmax.f32 %v936, 0.0
  %v1092 = vmax.f32 %v939, 0.0
  %v1093 = vmax.f32 %v944, 0.0
  %v1094 = vmax.f32 %v947, 0.0
  %v1095 = vmax.f32 %v952, 0.0
  %v1096 = vmax.f32 %v955, 0.0
  %v1097 = vmax.f32 %v960, 0.0
  %v1098 = vmax.f32 %v963, 0.0
  %v1099 = vmax.f32 %v968, 0.0
  %v1100 = vmax.f32 %v971, 0.0
  %v1101 = vmax.f32 %v976, 0.0
  %v1102 = vmax.f32 %v979, 0.0
  %v1103 = vmax.f32 %v984, 0.0
  %v1104 = vmax.f32 %v987, 0.0
  %v1105 = vmax.f32 %v992, 0.0
  %v1106 = vmax.f32 %v995, 0.0
  %v1107 = vmax.f32 %v1000, 0.0
  %v1108 = vmax.f32 %v1003, 0.0
  %v1109 = vmax.f32 %v1008, 0.0
  %v1110 = vmax.f32 %v1011, 0.0
  %v1111 = vmax.f32 %v1016, 0.0
  %v1112 = vmax.f32 %v1019, 0.0
  %v1113 = vmax.f32 %v1024, 0.0
  %v1114 = vmax.f32 %v1027, 0.0
  %v1115 = vmax.f32 %v1032, 0.0
  %v1116 = vmax.f32 %v1035, 0.0
  %v1117 = vmax.f32 %v1040, 0.0
  %v1118 = vmax.f32 %v1043, 0.0
  %v1119 = vmax.f32 %v1048, 0.0
  %v1120 = vmax.f32 %v1051, 0.0
  %v1121 = vmax.f32 %v1056, 0.0
  %v1122 = vmax.f32 %v1059, 0.0
  %v1123 = vmax.f32 %v1064, 0.0
  %v1124 = vmax.f32 %v1067, 0.0
  %v1125 = vmax.f32 %v1072, 0.0
  %v1126 = vmax.f32 %v548, %v1077
  %v1127 = vmax.f32 %v549, %v1078
  %v1128 = vmax.f32 %v550, %v1079
  %v1129 = vmax.f32 %v551, %v1080
  %v1130 = vmax.f32 %v552, %v1081
  %v1131 = vmax.f32 %v553, %v1082
  %v1132 = vmax.f32 %v554, %v1083
  %v1133 = vmax.f32 %v555, %v1084
  %v1134 = vmax.f32 %v556, %v1085
  %v1135 = vmax.f32 %v557, %v1086
  %v1136 = vmax.f32 %v558, %v1087
  %v1137 = vmax.f32 %v559, %v1088
  %v1138 = vmax.f32 %v560, %v1089
  %v1139 = vmax.f32 %v561, %v1090
  %v1140 = vmax.f32 %v562, %v1091
  %v1141 = vmax.f32 %v563, %v1092
  %v1142 = vmax.f32 %v564, %v1093
  %v1143 = vmax.f32 %v565, %v1094
  %v1144 = vmax.f32 %v566, %v1095
  %v1145 = vmax.f32 %v567, %v1096
  %v1146 = vmax.f32 %v568, %v1097
  %v1147 = vmax.f32 %v569, %v1098
  %v1148 = vmax.f32 %v570, %v1099
  %v1149 = vmax.f32 %v571, %v1100
  %v1150 = vmax.f32 %v572, %v1101
  %v1151 = vmax.f32 %v573, %v1102
  %v1152 = vmax.f32 %v574, %v1103
  %v1153 = vmax.f32 %v575, %v1104
  %v1154 = vmax.f32 %v576, %v1105
  %v1155 = vmax.f32 %v577, %v1106
  %v1156 = vmax.f32 %v578, %v1107
  %v1157 = vmax.f32 %v579, %v1108
  %v1158 = vmax.f32 %v580, %v1109
  %v1159 = vmax.f32 %v581, %v1110
  %v1160 = vmax.f32 %v582, %v1111
  %v1161 = vmax.f32 %v583, %v1112
  %v1162 = vmax.f32 %v584, %v1113
  %v1163 = vmax.f32 %v585, %v1114
  %v1164 = vmax.f32 %v586, %v1115
  %v1165 = vmax.f32 %v587, %v1116
  %v1166 = vmax.f32 %v588, %v1117
  %v1167 = vmax.f32 %v589, %v1118
  %v1168 = vmax.f32 %v590, %v1119
  %v1169 = vmax.f32 %v591, %v1120
  %v1170 = vmax.f32 %v592, %v1121
  %v1171 = vmax.f32 %v593, %v1122
  %v1172 = vmax.f32 %v594, %v1123
  %v1173 = vmax.f32 %v595, %v1124
  %v1174 = vmax.f32 %v596, %v1125
  %s1175 = scalar_lea.vmem %s0, 392
  %v1176 = vld [vmem:[%s1175] sm:$0xf]
  %v1177 = vld [vmem:[%s1175 + $0x4] sm:$0xf]
  %v1178 = vld [vmem:[%s1175 + $0x8] sm:$0xf]
  %v1179 = vld [vmem:[%s1175 + $0xc] sm:$0xf]
  %v1180 = vld [vmem:[%s1175 + $0x10] sm:$0xf]
  %v1181 = vld [vmem:[%s1175 + $0x14] sm:$0xf]
  %v1182 = vld [vmem:[%s1175 + $0x18] sm:$0xf]
  %v1183 = vld [vmem:[%s1175 + $0x1c] sm:$0xf]
  %v1184 = vld [vmem:[%s1175 + $0x20] sm:$0xf]
  %v1185 = vld [vmem:[%s1175 + $0x24] sm:$0xf]
  %v1186 = vld [vmem:[%s1175 + $0x28] sm:$0xf]
  %v1187 = vld [vmem:[%s1175 + $0x2c] sm:$0xf]
  %v1188 = vld [vmem:[%s1175 + $0x30] sm:$0xf]
  %v1189 = vld [vmem:[%s1175 + $0x34] sm:$0xf]
  %v1190 = vld [vmem:[%s1175 + $0x38] sm:$0xf]
  %v1191 = vld [vmem:[%s1175 + $0x3c] sm:$0xf]
  %v1192 = vld [vmem:[%s1175 + $0x40] sm:$0xf]
  %v1193 = vld [vmem:[%s1175 + $0x44] sm:$0xf]
  %v1194 = vld [vmem:[%s1175 + $0x48] sm:$0xf]
  %v1195 = vld [vmem:[%s1175 + $0x4c] sm:$0xf]
  %v1196 = vld [vmem:[%s1175 + $0x50] sm:$0xf]
  %v1197 = vld [vmem:[%s1175 + $0x54] sm:$0xf]
  %v1198 = vld [vmem:[%s1175 + $0x58] sm:$0xf]
  %v1199 = vld [vmem:[%s1175 + $0x5c] sm:$0xf]
  %v1200 = vld [vmem:[%s1175 + $0x60] sm:$0xf]
  %v1201 = vld [vmem:[%s1175 + $0x64] sm:$0xf]
  %v1202 = vld [vmem:[%s1175 + $0x68] sm:$0xf]
  %v1203 = vld [vmem:[%s1175 + $0x6c] sm:$0xf]
  %v1204 = vld [vmem:[%s1175 + $0x70] sm:$0xf]
  %v1205 = vld [vmem:[%s1175 + $0x74] sm:$0xf]
  %v1206 = vld [vmem:[%s1175 + $0x78] sm:$0xf]
  %v1207 = vld [vmem:[%s1175 + $0x7c] sm:$0xf]
  %v1208 = vld [vmem:[%s1175 + $0x80] sm:$0xf]
  %v1209 = vld [vmem:[%s1175 + $0x84] sm:$0xf]
  %v1210 = vld [vmem:[%s1175 + $0x88] sm:$0xf]
  %v1211 = vld [vmem:[%s1175 + $0x8c] sm:$0xf]
  %v1212 = vld [vmem:[%s1175 + $0x90] sm:$0xf]
  %v1213 = vld [vmem:[%s1175 + $0x94] sm:$0xf]
  %v1214 = vld [vmem:[%s1175 + $0x98] sm:$0xf]
  %v1215 = vld [vmem:[%s1175 + $0x9c] sm:$0xf]
  %v1216 = vld [vmem:[%s1175 + $0xa0] sm:$0xf]
  %v1217 = vld [vmem:[%s1175 + $0xa4] sm:$0xf]
  %v1218 = vld [vmem:[%s1175 + $0xa8] sm:$0xf]
  %v1219 = vld [vmem:[%s1175 + $0xac] sm:$0xf]
  %v1220 = vld [vmem:[%s1175 + $0xb0] sm:$0xf]
  %v1221 = vld [vmem:[%s1175 + $0xb4] sm:$0xf]
  %v1222 = vld [vmem:[%s1175 + $0xb8] sm:$0xf]
  %v1223 = vld [vmem:[%s1175 + $0xbc] sm:$0xf]
  %v1224 = vld [vmem:[%s1175 + $0xc0] sm:$0xf]
  %v1274 = vunpack.c.l.b16 %v1176
  %v1275 = vunpack.c.l.b16 %v1177
  %v1276 = vunpack.c.l.b16 %v1178
  %v1277 = vunpack.c.l.b16 %v1179
  %v1278 = vunpack.c.l.b16 %v1180
  %v1279 = vunpack.c.l.b16 %v1181
  %v1280 = vunpack.c.l.b16 %v1182
  %v1281 = vunpack.c.l.b16 %v1183
  %v1282 = vunpack.c.l.b16 %v1184
  %v1283 = vunpack.c.l.b16 %v1185
  %v1284 = vunpack.c.l.b16 %v1186
  %v1285 = vunpack.c.l.b16 %v1187
  %v1286 = vunpack.c.l.b16 %v1188
  %v1287 = vunpack.c.l.b16 %v1189
  %v1288 = vunpack.c.l.b16 %v1190
  %v1289 = vunpack.c.l.b16 %v1191
  %v1290 = vunpack.c.l.b16 %v1192
  %v1291 = vunpack.c.l.b16 %v1193
  %v1292 = vunpack.c.l.b16 %v1194
  %v1293 = vunpack.c.l.b16 %v1195
  %v1294 = vunpack.c.l.b16 %v1196
  %v1295 = vunpack.c.l.b16 %v1197
  %v1296 = vunpack.c.l.b16 %v1198
  %v1297 = vunpack.c.l.b16 %v1199
  %v1298 = vunpack.c.l.b16 %v1200
  %v1299 = vunpack.c.l.b16 %v1201
  %v1300 = vunpack.c.l.b16 %v1202
  %v1301 = vunpack.c.l.b16 %v1203
  %v1302 = vunpack.c.l.b16 %v1204
  %v1303 = vunpack.c.l.b16 %v1205
  %v1304 = vunpack.c.l.b16 %v1206
  %v1305 = vunpack.c.l.b16 %v1207
  %v1306 = vunpack.c.l.b16 %v1208
  %v1307 = vunpack.c.l.b16 %v1209
  %v1308 = vunpack.c.l.b16 %v1210
  %v1309 = vunpack.c.l.b16 %v1211
  %v1310 = vunpack.c.l.b16 %v1212
  %v1311 = vunpack.c.l.b16 %v1213
  %v1312 = vunpack.c.l.b16 %v1214
  %v1313 = vunpack.c.l.b16 %v1215
  %v1314 = vunpack.c.l.b16 %v1216
  %v1315 = vunpack.c.l.b16 %v1217
  %v1316 = vunpack.c.l.b16 %v1218
  %v1317 = vunpack.c.l.b16 %v1219
  %v1318 = vunpack.c.l.b16 %v1220
  %v1319 = vunpack.c.l.b16 %v1221
  %v1320 = vunpack.c.l.b16 %v1222
  %v1321 = vunpack.c.l.b16 %v1223
  %v1322 = vunpack.c.l.b16 %v1224
  %v1323 = vpack.c.b16 %v1275, %v1274
  %v1324 = vpack.c.b16 %v1277, %v1276
  %v1325 = vpack.c.b16 %v1279, %v1278
  %v1326 = vpack.c.b16 %v1281, %v1280
  %v1327 = vpack.c.b16 %v1283, %v1282
  %v1328 = vpack.c.b16 %v1285, %v1284
  %v1329 = vpack.c.b16 %v1287, %v1286
  %v1330 = vpack.c.b16 %v1289, %v1288
  %v1331 = vpack.c.b16 %v1291, %v1290
  %v1332 = vpack.c.b16 %v1293, %v1292
  %v1333 = vpack.c.b16 %v1295, %v1294
  %v1334 = vpack.c.b16 %v1297, %v1296
  %v1335 = vpack.c.b16 %v1299, %v1298
  %v1336 = vpack.c.b16 %v1301, %v1300
  %v1337 = vpack.c.b16 %v1303, %v1302
  %v1338 = vpack.c.b16 %v1305, %v1304
  %v1339 = vpack.c.b16 %v1307, %v1306
  %v1340 = vpack.c.b16 %v1309, %v1308
  %v1341 = vpack.c.b16 %v1311, %v1310
  %v1342 = vpack.c.b16 %v1313, %v1312
  %v1343 = vpack.c.b16 %v1315, %v1314
  %v1344 = vpack.c.b16 %v1317, %v1316
  %v1345 = vpack.c.b16 %v1319, %v1318
  %v1346 = vpack.c.b16 %v1321, %v1320
  %v1347 = vpack.c.b16 %v1322, %v1322
  %v1349 = vsel %vm233, %v1323, 0
  %v1352 = vsel %vm233, %v1324, 0
  %v1355 = vsel %vm233, %v1325, 0
  %v1358 = vsel %vm233, %v1326, 0
  %v1361 = vsel %vm233, %v1327, 0
  %v1364 = vsel %vm233, %v1328, 0
  %v1367 = vsel %vm233, %v1329, 0
  %v1370 = vsel %vm233, %v1330, 0
  %v1373 = vsel %vm233, %v1331, 0
  %v1376 = vsel %vm233, %v1332, 0
  %v1379 = vsel %vm233, %v1333, 0
  %v1382 = vsel %vm233, %v1334, 0
  %v1385 = vsel %vm233, %v1335, 0
  %v1388 = vsel %vm233, %v1336, 0
  %v1391 = vsel %vm233, %v1337, 0
  %v1394 = vsel %vm233, %v1338, 0
  %v1397 = vsel %vm233, %v1339, 0
  %v1400 = vsel %vm233, %v1340, 0
  %v1403 = vsel %vm233, %v1341, 0
  %v1406 = vsel %vm233, %v1342, 0
  %v1409 = vsel %vm233, %v1343, 0
  %v1412 = vsel %vm233, %v1344, 0
  %v1415 = vsel %vm233, %v1345, 0
  %v1418 = vsel %vm233, %v1346, 0
  %v1421 = vsel %vm233, %v1347, 0
  %1423 = vmatprep.subr.bf16.mxu0 0
  %1424 = vmatpush1.bf16.msra.mxu0 %v224
  %1425 = vmatprep.subr.bf16.mxu0 0
  %1426 = vmatpush1.bf16.msra.mxu0 %v225
  %1427 = vmatprep.subr.bf16.mxu0 0
  %1428 = vmatpush1.bf16.msra.mxu0 %v226
  %1429 = vmatprep.subr.bf16.mxu0 0
  %1430 = vmatpush1.bf16.msra.mxu0 %v227
  %1431 = vmatprep.subr.bf16.mxu0 0
  %1432 = vmatpush1.bf16.msra.mxu0 %v314
  %1433 = vmatprep.subr.bf16.mxu0 0
  %1434 = vmatpush1.bf16.msra.mxu0 0
  %1435 = vmatprep.subr.bf16.mxu0 0
  %1436 = vmatpush1.bf16.msra.mxu0 0
  %1437 = vmatprep.subr.bf16.mxu0 0
  %1438 = vmatpush1.bf16.msra.mxu0 0
  %1439 = vmatprep.subr.bf16.mxu0 0
  %1440 = vmatpush1.bf16.msra.mxu0 0
  %1441 = vmatprep.subr.bf16.mxu0 0
  %1442 = vmatpush1.bf16.msra.mxu0 0
  %1443 = vmatprep.subr.bf16.mxu0 0
  %1444 = vmatpush1.bf16.msra.mxu0 0
  %1445 = vmatprep.subr.bf16.mxu0 0
  %1446 = vmatpush1.bf16.msra.mxu0 0
  %1447 = vmatprep.subr.bf16.mxu0 0
  %1448 = vmatpush1.bf16.msra.mxu0 0
  %1449 = vmatprep.subr.bf16.mxu0 0
  %1450 = vmatpush1.bf16.msra.mxu0 0
  %1451 = vmatprep.subr.bf16.mxu0 0
  %1452 = vmatpush1.bf16.msra.mxu0 0
  %1453 = vmatprep.subr.bf16.mxu0 0
  %1454 = vmatpush1.bf16.msra.mxu0 0
  %1455 = vmatprep.mubr.bf16.mxu0 0
  %1456 = vmatmul.mubr.bf16.gmra.mrb[0].mxu0 %v1349
  %v1457 = vpop.f32.mrb[0].mxu0
  %v1458 = vadd.f32 %v79, %v1457
  %v1459 = vpop.f32.mrb[0].mxu0
  %v1460 = vpop.f32.mrb[0].mxu0
  %v1461 = vadd.f32 %v79, %v1460
  %v1462 = vpop.f32.mrb[0].mxu0
  %1463 = vmatprep.mubr.bf16.mxu0 0
  %1464 = vmatmul.mubr.bf16.gmra.mrb[0].mxu0 %v1352
  %v1465 = vpop.f32.mrb[0].mxu0
  %v1466 = vadd.f32 %v79, %v1465
  %v1467 = vpop.f32.mrb[0].mxu0
  %v1468 = vpop.f32.mrb[0].mxu0
  %v1469 = vadd.f32 %v79, %v1468
  %v1470 = vpop.f32.mrb[0].mxu0
  %1471 = vmatprep.mubr.bf16.mxu0 0
  %1472 = vmatmul.mubr.bf16.gmra.mrb[0].mxu0 %v1355
  %v1473 = vpop.f32.mrb[0].mxu0
  %v1474 = vadd.f32 %v79, %v1473
  %v1475 = vpop.f32.mrb[0].mxu0
  %v1476 = vpop.f32.mrb[0].mxu0
  %v1477 = vadd.f32 %v79, %v1476
  %v1478 = vpop.f32.mrb[0].mxu0
  %1479 = vmatprep.mubr.bf16.mxu0 0
  %1480 = vmatmul.mubr.bf16.gmra.mrb[0].mxu0 %v1358
  %v1481 = vpop.f32.mrb[0].mxu0
  %v1482 = vadd.f32 %v79, %v1481
  %v1483 = vpop.f32.mrb[0].mxu0
  %v1484 = vpop.f32.mrb[0].mxu0
  %v1485 = vadd.f32 %v79, %v1484
  %v1486 = vpop.f32.mrb[0].mxu0
  %1487 = vmatprep.mubr.bf16.mxu0 0
  %1488 = vmatmul.mubr.bf16.gmra.mrb[0].mxu0 %v1361
  %v1489 = vpop.f32.mrb[0].mxu0
  %v1490 = vadd.f32 %v79, %v1489
  %v1491 = vpop.f32.mrb[0].mxu0
  %v1492 = vpop.f32.mrb[0].mxu0
  %v1493 = vadd.f32 %v79, %v1492
  %v1494 = vpop.f32.mrb[0].mxu0
  %1495 = vmatprep.mubr.bf16.mxu0 0
  %1496 = vmatmul.mubr.bf16.gmra.mrb[0].mxu0 %v1364
  %v1497 = vpop.f32.mrb[0].mxu0
  %v1498 = vadd.f32 %v79, %v1497
  %v1499 = vpop.f32.mrb[0].mxu0
  %v1500 = vpop.f32.mrb[0].mxu0
  %v1501 = vadd.f32 %v79, %v1500
  %v1502 = vpop.f32.mrb[0].mxu0
  %1503 = vmatprep.mubr.bf16.mxu0 0
  %1504 = vmatmul.mubr.bf16.gmra.mrb[0].mxu0 %v1367
  %v1505 = vpop.f32.mrb[0].mxu0
  %v1506 = vadd.f32 %v79, %v1505
  %v1507 = vpop.f32.mrb[0].mxu0
  %v1508 = vpop.f32.mrb[0].mxu0
  %v1509 = vadd.f32 %v79, %v1508
  %v1510 = vpop.f32.mrb[0].mxu0
  %1511 = vmatprep.mubr.bf16.mxu0 0
  %1512 = vmatmul.mubr.bf16.gmra.mrb[0].mxu0 %v1370
  %v1513 = vpop.f32.mrb[0].mxu0
  %v1514 = vadd.f32 %v79, %v1513
  %v1515 = vpop.f32.mrb[0].mxu0
  %v1516 = vpop.f32.mrb[0].mxu0
  %v1517 = vadd.f32 %v79, %v1516
  %v1518 = vpop.f32.mrb[0].mxu0
  %1519 = vmatprep.mubr.bf16.mxu0 0
  %1520 = vmatmul.mubr.bf16.gmra.mrb[0].mxu0 %v1373
  %v1521 = vpop.f32.mrb[0].mxu0
  %v1522 = vadd.f32 %v79, %v1521
  %v1523 = vpop.f32.mrb[0].mxu0
  %v1524 = vpop.f32.mrb[0].mxu0
  %v1525 = vadd.f32 %v79, %v1524
  %v1526 = vpop.f32.mrb[0].mxu0
  %1527 = vmatprep.mubr.bf16.mxu0 0
  %1528 = vmatmul.mubr.bf16.gmra.mrb[0].mxu0 %v1376
  %v1529 = vpop.f32.mrb[0].mxu0
  %v1530 = vadd.f32 %v79, %v1529
  %v1531 = vpop.f32.mrb[0].mxu0
  %v1532 = vpop.f32.mrb[0].mxu0
  %v1533 = vadd.f32 %v79, %v1532
  %v1534 = vpop.f32.mrb[0].mxu0
  %1535 = vmatprep.mubr.bf16.mxu0 0
  %1536 = vmatmul.mubr.bf16.gmra.mrb[0].mxu0 %v1379
  %v1537 = vpop.f32.mrb[0].mxu0
  %v1538 = vadd.f32 %v79, %v1537
  %v1539 = vpop.f32.mrb[0].mxu0
  %v1540 = vpop.f32.mrb[0].mxu0
  %v1541 = vadd.f32 %v79, %v1540
  %v1542 = vpop.f32.mrb[0].mxu0
  %1543 = vmatprep.mubr.bf16.mxu0 0
  %1544 = vmatmul.mubr.bf16.gmra.mrb[0].mxu0 %v1382
  %v1545 = vpop.f32.mrb[0].mxu0
  %v1546 = vadd.f32 %v79, %v1545
  %v1547 = vpop.f32.mrb[0].mxu0
  %v1548 = vpop.f32.mrb[0].mxu0
  %v1549 = vadd.f32 %v79, %v1548
  %v1550 = vpop.f32.mrb[0].mxu0
  %1551 = vmatprep.mubr.bf16.mxu0 0
  %1552 = vmatmul.mubr.bf16.gmra.mrb[0].mxu0 %v1385
  %v1553 = vpop.f32.mrb[0].mxu0
  %v1554 = vadd.f32 %v79, %v1553
  %v1555 = vpop.f32.mrb[0].mxu0
  %v1556 = vpop.f32.mrb[0].mxu0
  %v1557 = vadd.f32 %v79, %v1556
  %v1558 = vpop.f32.mrb[0].mxu0
  %1559 = vmatprep.mubr.bf16.mxu0 0
  %1560 = vmatmul.mubr.bf16.gmra.mrb[0].mxu0 %v1388
  %v1561 = vpop.f32.mrb[0].mxu0
  %v1562 = vadd.f32 %v79, %v1561
  %v1563 = vpop.f32.mrb[0].mxu0
  %v1564 = vpop.f32.mrb[0].mxu0
  %v1565 = vadd.f32 %v79, %v1564
  %v1566 = vpop.f32.mrb[0].mxu0
  %1567 = vmatprep.mubr.bf16.mxu0 0
  %1568 = vmatmul.mubr.bf16.gmra.mrb[0].mxu0 %v1391
  %v1569 = vpop.f32.mrb[0].mxu0
  %v1570 = vadd.f32 %v79, %v1569
  %v1571 = vpop.f32.mrb[0].mxu0
  %v1572 = vpop.f32.mrb[0].mxu0
  %v1573 = vadd.f32 %v79, %v1572
  %v1574 = vpop.f32.mrb[0].mxu0
  %1575 = vmatprep.mubr.bf16.mxu0 0
  %1576 = vmatmul.mubr.bf16.gmra.mrb[0].mxu0 %v1394
  %v1577 = vpop.f32.mrb[0].mxu0
  %v1578 = vadd.f32 %v79, %v1577
  %v1579 = vpop.f32.mrb[0].mxu0
  %v1580 = vpop.f32.mrb[0].mxu0
  %v1581 = vadd.f32 %v79, %v1580
  %v1582 = vpop.f32.mrb[0].mxu0
  %1583 = vmatprep.mubr.bf16.mxu0 0
  %1584 = vmatmul.mubr.bf16.gmra.mrb[0].mxu0 %v1397
  %v1585 = vpop.f32.mrb[0].mxu0
  %v1586 = vadd.f32 %v79, %v1585
  %v1587 = vpop.f32.mrb[0].mxu0
  %v1588 = vpop.f32.mrb[0].mxu0
  %v1589 = vadd.f32 %v79, %v1588
  %v1590 = vpop.f32.mrb[0].mxu0
  %1591 = vmatprep.mubr.bf16.mxu0 0
  %1592 = vmatmul.mubr.bf16.gmra.mrb[0].mxu0 %v1400
  %v1593 = vpop.f32.mrb[0].mxu0
  %v1594 = vadd.f32 %v79, %v1593
  %v1595 = vpop.f32.mrb[0].mxu0
  %v1596 = vpop.f32.mrb[0].mxu0
  %v1597 = vadd.f32 %v79, %v1596
  %v1598 = vpop.f32.mrb[0].mxu0
  %1599 = vmatprep.mubr.bf16.mxu0 0
  %1600 = vmatmul.mubr.bf16.gmra.mrb[0].mxu0 %v1403
  %v1601 = vpop.f32.mrb[0].mxu0
  %v1602 = vadd.f32 %v79, %v1601
  %v1603 = vpop.f32.mrb[0].mxu0
  %v1604 = vpop.f32.mrb[0].mxu0
  %v1605 = vadd.f32 %v79, %v1604
  %v1606 = vpop.f32.mrb[0].mxu0
  %1607 = vmatprep.mubr.bf16.mxu0 0
  %1608 = vmatmul.mubr.bf16.gmra.mrb[0].mxu0 %v1406
  %v1609 = vpop.f32.mrb[0].mxu0
  %v1610 = vadd.f32 %v79, %v1609
  %v1611 = vpop.f32.mrb[0].mxu0
  %v1612 = vpop.f32.mrb[0].mxu0
  %v1613 = vadd.f32 %v79, %v1612
  %v1614 = vpop.f32.mrb[0].mxu0
  %1615 = vmatprep.mubr.bf16.mxu0 0
  %1616 = vmatmul.mubr.bf16.gmra.mrb[0].mxu0 %v1409
  %v1617 = vpop.f32.mrb[0].mxu0
  %v1618 = vadd.f32 %v79, %v1617
  %v1619 = vpop.f32.mrb[0].mxu0
  %v1620 = vpop.f32.mrb[0].mxu0
  %v1621 = vadd.f32 %v79, %v1620
  %v1622 = vpop.f32.mrb[0].mxu0
  %1623 = vmatprep.mubr.bf16.mxu0 0
  %1624 = vmatmul.mubr.bf16.gmra.mrb[0].mxu0 %v1412
  %v1625 = vpop.f32.mrb[0].mxu0
  %v1626 = vadd.f32 %v79, %v1625
  %v1627 = vpop.f32.mrb[0].mxu0
  %v1628 = vpop.f32.mrb[0].mxu0
  %v1629 = vadd.f32 %v79, %v1628
  %v1630 = vpop.f32.mrb[0].mxu0
  %1631 = vmatprep.mubr.bf16.mxu0 0
  %1632 = vmatmul.mubr.bf16.gmra.mrb[0].mxu0 %v1415
  %v1633 = vpop.f32.mrb[0].mxu0
  %v1634 = vadd.f32 %v79, %v1633
  %v1635 = vpop.f32.mrb[0].mxu0
  %v1636 = vpop.f32.mrb[0].mxu0
  %v1637 = vadd.f32 %v79, %v1636
  %v1638 = vpop.f32.mrb[0].mxu0
  %1639 = vmatprep.mubr.bf16.mxu0 0
  %1640 = vmatmul.mubr.bf16.gmra.mrb[0].mxu0 %v1418
  %v1641 = vpop.f32.mrb[0].mxu0
  %v1642 = vadd.f32 %v79, %v1641
  %v1643 = vpop.f32.mrb[0].mxu0
  %v1644 = vpop.f32.mrb[0].mxu0
  %v1645 = vadd.f32 %v79, %v1644
  %v1646 = vpop.f32.mrb[0].mxu0
  %1647 = vmatprep.mubr.bf16.mxu0 0
  %1648 = vmatmul.mubr.bf16.gmra.mrb[0].mxu0 %v1421
  %v1649 = vpop.f32.mrb[0].mxu0
  %v1650 = vadd.f32 %v79, %v1649
  %v1651 = vpop.f32.mrb[0].mxu0
  %v1652 = vpop.f32.mrb[0].mxu0
  %v1653 = vpop.f32.mrb[0].mxu0
  %1654 = vdwg.mxu0
  %v1655 = vmax.f32 %v1458, 0.0
  %v1656 = vmax.f32 %v1461, 0.0
  %v1657 = vmax.f32 %v1466, 0.0
  %v1658 = vmax.f32 %v1469, 0.0
  %v1659 = vmax.f32 %v1474, 0.0
  %v1660 = vmax.f32 %v1477, 0.0
  %v1661 = vmax.f32 %v1482, 0.0
  %v1662 = vmax.f32 %v1485, 0.0
  %v1663 = vmax.f32 %v1490, 0.0
  %v1664 = vmax.f32 %v1493, 0.0
  %v1665 = vmax.f32 %v1498, 0.0
  %v1666 = vmax.f32 %v1501, 0.0
  %v1667 = vmax.f32 %v1506, 0.0
  %v1668 = vmax.f32 %v1509, 0.0
  %v1669 = vmax.f32 %v1514, 0.0
  %v1670 = vmax.f32 %v1517, 0.0
  %v1671 = vmax.f32 %v1522, 0.0
  %v1672 = vmax.f32 %v1525, 0.0
  %v1673 = vmax.f32 %v1530, 0.0
  %v1674 = vmax.f32 %v1533, 0.0
  %v1675 = vmax.f32 %v1538, 0.0
  %v1676 = vmax.f32 %v1541, 0.0
  %v1677 = vmax.f32 %v1546, 0.0
  %v1678 = vmax.f32 %v1549, 0.0
  %v1679 = vmax.f32 %v1554, 0.0
  %v1680 = vmax.f32 %v1557, 0.0
  %v1681 = vmax.f32 %v1562, 0.0
  %v1682 = vmax.f32 %v1565, 0.0
  %v1683 = vmax.f32 %v1570, 0.0
  %v1684 = vmax.f32 %v1573, 0.0
  %v1685 = vmax.f32 %v1578, 0.0
  %v1686 = vmax.f32 %v1581, 0.0
  %v1687 = vmax.f32 %v1586, 0.0
  %v1688 = vmax.f32 %v1589, 0.0
  %v1689 = vmax.f32 %v1594, 0.0
  %v1690 = vmax.f32 %v1597, 0.0
  %v1691 = vmax.f32 %v1602, 0.0
  %v1692 = vmax.f32 %v1605, 0.0
  %v1693 = vmax.f32 %v1610, 0.0
  %v1694 = vmax.f32 %v1613, 0.0
  %v1695 = vmax.f32 %v1618, 0.0
  %v1696 = vmax.f32 %v1621, 0.0
  %v1697 = vmax.f32 %v1626, 0.0
  %v1698 = vmax.f32 %v1629, 0.0
  %v1699 = vmax.f32 %v1634, 0.0
  %v1700 = vmax.f32 %v1637, 0.0
  %v1701 = vmax.f32 %v1642, 0.0
  %v1702 = vmax.f32 %v1645, 0.0
  %v1703 = vmax.f32 %v1650, 0.0
  %s1704 = scalar_lea.vmem %s0, 588
  %v1705 = vld [vmem:[%s1704] sm:$0xf]
  %v1706 = vld [vmem:[%s1704 + $0x4] sm:$0xf]
  %v1707 = vld [vmem:[%s1704 + $0x8] sm:$0xf]
  %v1708 = vld [vmem:[%s1704 + $0xc] sm:$0xf]
  %v1709 = vld [vmem:[%s1704 + $0x10] sm:$0xf]
  %v1710 = vld [vmem:[%s1704 + $0x14] sm:$0xf]
  %v1711 = vld [vmem:[%s1704 + $0x18] sm:$0xf]
  %v1712 = vld [vmem:[%s1704 + $0x1c] sm:$0xf]
  %v1713 = vld [vmem:[%s1704 + $0x20] sm:$0xf]
  %v1714 = vld [vmem:[%s1704 + $0x24] sm:$0xf]
  %v1715 = vld [vmem:[%s1704 + $0x28] sm:$0xf]
  %v1716 = vld [vmem:[%s1704 + $0x2c] sm:$0xf]
  %v1717 = vld [vmem:[%s1704 + $0x30] sm:$0xf]
  %v1718 = vld [vmem:[%s1704 + $0x34] sm:$0xf]
  %v1719 = vld [vmem:[%s1704 + $0x38] sm:$0xf]
  %v1720 = vld [vmem:[%s1704 + $0x3c] sm:$0xf]
  %v1721 = vld [vmem:[%s1704 + $0x40] sm:$0xf]
  %v1722 = vld [vmem:[%s1704 + $0x44] sm:$0xf]
  %v1723 = vld [vmem:[%s1704 + $0x48] sm:$0xf]
  %v1724 = vld [vmem:[%s1704 + $0x4c] sm:$0xf]
  %v1725 = vld [vmem:[%s1704 + $0x50] sm:$0xf]
  %v1726 = vld [vmem:[%s1704 + $0x54] sm:$0xf]
  %v1727 = vld [vmem:[%s1704 + $0x58] sm:$0xf]
  %v1728 = vld [vmem:[%s1704 + $0x5c] sm:$0xf]
  %v1729 = vld [vmem:[%s1704 + $0x60] sm:$0xf]
  %v1730 = vld [vmem:[%s1704 + $0x64] sm:$0xf]
  %v1731 = vld [vmem:[%s1704 + $0x68] sm:$0xf]
  %v1732 = vld [vmem:[%s1704 + $0x6c] sm:$0xf]
  %v1733 = vld [vmem:[%s1704 + $0x70] sm:$0xf]
  %v1734 = vld [vmem:[%s1704 + $0x74] sm:$0xf]
  %v1735 = vld [vmem:[%s1704 + $0x78] sm:$0xf]
  %v1736 = vld [vmem:[%s1704 + $0x7c] sm:$0xf]
  %v1737 = vld [vmem:[%s1704 + $0x80] sm:$0xf]
  %v1738 = vld [vmem:[%s1704 + $0x84] sm:$0xf]
  %v1739 = vld [vmem:[%s1704 + $0x88] sm:$0xf]
  %v1740 = vld [vmem:[%s1704 + $0x8c] sm:$0xf]
  %v1741 = vld [vmem:[%s1704 + $0x90] sm:$0xf]
  %v1742 = vld [vmem:[%s1704 + $0x94] sm:$0xf]
  %v1743 = vld [vmem:[%s1704 + $0x98] sm:$0xf]
  %v1744 = vld [vmem:[%s1704 + $0x9c] sm:$0xf]
  %v1745 = vld [vmem:[%s1704 + $0xa0] sm:$0xf]
  %v1746 = vld [vmem:[%s1704 + $0xa4] sm:$0xf]
  %v1747 = vld [vmem:[%s1704 + $0xa8] sm:$0xf]
  %v1748 = vld [vmem:[%s1704 + $0xac] sm:$0xf]
  %v1749 = vld [vmem:[%s1704 + $0xb0] sm:$0xf]
  %v1750 = vld [vmem:[%s1704 + $0xb4] sm:$0xf]
  %v1751 = vld [vmem:[%s1704 + $0xb8] sm:$0xf]
  %v1752 = vld [vmem:[%s1704 + $0xbc] sm:$0xf]
  %v1753 = vld [vmem:[%s1704 + $0xc0] sm:$0xf]
  %v1803 = vunpack.c.l.b16 %v1705
  %v1804 = vunpack.c.l.b16 %v1706
  %v1805 = vunpack.c.l.b16 %v1707
  %v1806 = vunpack.c.l.b16 %v1708
  %v1807 = vunpack.c.l.b16 %v1709
  %v1808 = vunpack.c.l.b16 %v1710
  %v1809 = vunpack.c.l.b16 %v1711
  %v1810 = vunpack.c.l.b16 %v1712
  %v1811 = vunpack.c.l.b16 %v1713
  %v1812 = vunpack.c.l.b16 %v1714
  %v1813 = vunpack.c.l.b16 %v1715
  %v1814 = vunpack.c.l.b16 %v1716
  %v1815 = vunpack.c.l.b16 %v1717
  %v1816 = vunpack.c.l.b16 %v1718
  %v1817 = vunpack.c.l.b16 %v1719
  %v1818 = vunpack.c.l.b16 %v1720
  %v1819 = vunpack.c.l.b16 %v1721
  %v1820 = vunpack.c.l.b16 %v1722
  %v1821 = vunpack.c.l.b16 %v1723
  %v1822 = vunpack.c.l.b16 %v1724
  %v1823 = vunpack.c.l.b16 %v1725
  %v1824 = vunpack.c.l.b16 %v1726
  %v1825 = vunpack.c.l.b16 %v1727
  %v1826 = vunpack.c.l.b16 %v1728
  %v1827 = vunpack.c.l.b16 %v1729
  %v1828 = vunpack.c.l.b16 %v1730
  %v1829 = vunpack.c.l.b16 %v1731
  %v1830 = vunpack.c.l.b16 %v1732
  %v1831 = vunpack.c.l.b16 %v1733
  %v1832 = vunpack.c.l.b16 %v1734
  %v1833 = vunpack.c.l.b16 %v1735
  %v1834 = vunpack.c.l.b16 %v1736
  %v1835 = vunpack.c.l.b16 %v1737
  %v1836 = vunpack.c.l.b16 %v1738
  %v1837 = vunpack.c.l.b16 %v1739
  %v1838 = vunpack.c.l.b16 %v1740
  %v1839 = vunpack.c.l.b16 %v1741
  %v1840 = vunpack.c.l.b16 %v1742
  %v1841 = vunpack.c.l.b16 %v1743
  %v1842 = vunpack.c.l.b16 %v1744
  %v1843 = vunpack.c.l.b16 %v1745
  %v1844 = vunpack.c.l.b16 %v1746
  %v1845 = vunpack.c.l.b16 %v1747
  %v1846 = vunpack.c.l.b16 %v1748
  %v1847 = vunpack.c.l.b16 %v1749
  %v1848 = vunpack.c.l.b16 %v1750
  %v1849 = vunpack.c.l.b16 %v1751
  %v1850 = vunpack.c.l.b16 %v1752
  %v1851 = vunpack.c.l.b16 %v1753
  %v1852 = vpack.c.b16 %v1804, %v1803
  %v1853 = vpack.c.b16 %v1806, %v1805
  %v1854 = vpack.c.b16 %v1808, %v1807
  %v1855 = vpack.c.b16 %v1810, %v1809
  %v1856 = vpack.c.b16 %v1812, %v1811
  %v1857 = vpack.c.b16 %v1814, %v1813
  %v1858 = vpack.c.b16 %v1816, %v1815
  %v1859 = vpack.c.b16 %v1818, %v1817
  %v1860 = vpack.c.b16 %v1820, %v1819
  %v1861 = vpack.c.b16 %v1822, %v1821
  %v1862 = vpack.c.b16 %v1824, %v1823
  %v1863 = vpack.c.b16 %v1826, %v1825
  %v1864 = vpack.c.b16 %v1828, %v1827
  %v1865 = vpack.c.b16 %v1830, %v1829
  %v1866 = vpack.c.b16 %v1832, %v1831
  %v1867 = vpack.c.b16 %v1834, %v1833
  %v1868 = vpack.c.b16 %v1836, %v1835
  %v1869 = vpack.c.b16 %v1838, %v1837
  %v1870 = vpack.c.b16 %v1840, %v1839
  %v1871 = vpack.c.b16 %v1842, %v1841
  %v1872 = vpack.c.b16 %v1844, %v1843
  %v1873 = vpack.c.b16 %v1846, %v1845
  %v1874 = vpack.c.b16 %v1848, %v1847
  %v1875 = vpack.c.b16 %v1850, %v1849
  %v1876 = vpack.c.b16 %v1851, %v1851
  %v1878 = vsel %vm233, %v1852, 0
  %v1881 = vsel %vm233, %v1853, 0
  %v1884 = vsel %vm233, %v1854, 0
  %v1887 = vsel %vm233, %v1855, 0
  %v1890 = vsel %vm233, %v1856, 0
  %v1893 = vsel %vm233, %v1857, 0
  %v1896 = vsel %vm233, %v1858, 0
  %v1899 = vsel %vm233, %v1859, 0
  %v1902 = vsel %vm233, %v1860, 0
  %v1905 = vsel %vm233, %v1861, 0
  %v1908 = vsel %vm233, %v1862, 0
  %v1911 = vsel %vm233, %v1863, 0
  %v1914 = vsel %vm233, %v1864, 0
  %v1917 = vsel %vm233, %v1865, 0
  %v1920 = vsel %vm233, %v1866, 0
  %v1923 = vsel %vm233, %v1867, 0
  %v1926 = vsel %vm233, %v1868, 0
  %v1929 = vsel %vm233, %v1869, 0
  %v1932 = vsel %vm233, %v1870, 0
  %v1935 = vsel %vm233, %v1871, 0
  %v1938 = vsel %vm233, %v1872, 0
  %v1941 = vsel %vm233, %v1873, 0
  %v1944 = vsel %vm233, %v1874, 0
  %v1947 = vsel %vm233, %v1875, 0
  %v1950 = vsel %vm233, %v1876, 0
  %1952 = vmatprep.subr.bf16.mxu0 0
  %1953 = vmatpush1.bf16.msra.mxu0 %v224
  %1954 = vmatprep.subr.bf16.mxu0 0
  %1955 = vmatpush1.bf16.msra.mxu0 %v225
  %1956 = vmatprep.subr.bf16.mxu0 0
  %1957 = vmatpush1.bf16.msra.mxu0 %v226
  %1958 = vmatprep.subr.bf16.mxu0 0
  %1959 = vmatpush1.bf16.msra.mxu0 %v227
  %1960 = vmatprep.subr.bf16.mxu0 0
  %1961 = vmatpush1.bf16.msra.mxu0 %v314
  %1962 = vmatprep.subr.bf16.mxu0 0
  %1963 = vmatpush1.bf16.msra.mxu0 0
  %1964 = vmatprep.subr.bf16.mxu0 0
  %1965 = vmatpush1.bf16.msra.mxu0 0
  %1966 = vmatprep.subr.bf16.mxu0 0
  %1967 = vmatpush1.bf16.msra.mxu0 0
  %1968 = vmatprep.subr.bf16.mxu0 0
  %1969 = vmatpush1.bf16.msra.mxu0 0
  %1970 = vmatprep.subr.bf16.mxu0 0
  %1971 = vmatpush1.bf16.msra.mxu0 0
  %1972 = vmatprep.subr.bf16.mxu0 0
  %1973 = vmatpush1.bf16.msra.mxu0 0
  %1974 = vmatprep.subr.bf16.mxu0 0
  %1975 = vmatpush1.bf16.msra.mxu0 0
  %1976 = vmatprep.subr.bf16.mxu0 0
  %1977 = vmatpush1.bf16.msra.mxu0 0
  %1978 = vmatprep.subr.bf16.mxu0 0
  %1979 = vmatpush1.bf16.msra.mxu0 0
  %1980 = vmatprep.subr.bf16.mxu0 0
  %1981 = vmatpush1.bf16.msra.mxu0 0
  %1982 = vmatprep.subr.bf16.mxu0 0
  %1983 = vmatpush1.bf16.msra.mxu0 0
  %1984 = vmatprep.mubr.bf16.mxu0 0
  %1985 = vmatmul.mubr.bf16.gmra.mrb[0].mxu0 %v1878
  %v1986 = vpop.f32.mrb[0].mxu0
  %v1987 = vadd.f32 %v79, %v1986
  %v1988 = vpop.f32.mrb[0].mxu0
  %v1989 = vpop.f32.mrb[0].mxu0
  %v1990 = vadd.f32 %v79, %v1989
  %v1991 = vpop.f32.mrb[0].mxu0
  %1992 = vmatprep.mubr.bf16.mxu0 0
  %1993 = vmatmul.mubr.bf16.gmra.mrb[0].mxu0 %v1881
  %v1994 = vpop.f32.mrb[0].mxu0
  %v1995 = vadd.f32 %v79, %v1994
  %v1996 = vpop.f32.mrb[0].mxu0
  %v1997 = vpop.f32.mrb[0].mxu0
  %v1998 = vadd.f32 %v79, %v1997
  %v1999 = vpop.f32.mrb[0].mxu0
  %2000 = vmatprep.mubr.bf16.mxu0 0
  %2001 = vmatmul.mubr.bf16.gmra.mrb[0].mxu0 %v1884
  %v2002 = vpop.f32.mrb[0].mxu0
  %v2003 = vadd.f32 %v79, %v2002
  %v2004 = vpop.f32.mrb[0].mxu0
  %v2005 = vpop.f32.mrb[0].mxu0
  %v2006 = vadd.f32 %v79, %v2005
  %v2007 = vpop.f32.mrb[0].mxu0
  %2008 = vmatprep.mubr.bf16.mxu0 0
  %2009 = vmatmul.mubr.bf16.gmra.mrb[0].mxu0 %v1887
  %v2010 = vpop.f32.mrb[0].mxu0
  %v2011 = vadd.f32 %v79, %v2010
  %v2012 = vpop.f32.mrb[0].mxu0
  %v2013 = vpop.f32.mrb[0].mxu0
  %v2014 = vadd.f32 %v79, %v2013
  %v2015 = vpop.f32.mrb[0].mxu0
  %2016 = vmatprep.mubr.bf16.mxu0 0
  %2017 = vmatmul.mubr.bf16.gmra.mrb[0].mxu0 %v1890
  %v2018 = vpop.f32.mrb[0].mxu0
  %v2019 = vadd.f32 %v79, %v2018
  %v2020 = vpop.f32.mrb[0].mxu0
  %v2021 = vpop.f32.mrb[0].mxu0
  %v2022 = vadd.f32 %v79, %v2021
  %v2023 = vpop.f32.mrb[0].mxu0
  %2024 = vmatprep.mubr.bf16.mxu0 0
  %2025 = vmatmul.mubr.bf16.gmra.mrb[0].mxu0 %v1893
  %v2026 = vpop.f32.mrb[0].mxu0
  %v2027 = vadd.f32 %v79, %v2026
  %v2028 = vpop.f32.mrb[0].mxu0
  %v2029 = vpop.f32.mrb[0].mxu0
  %v2030 = vadd.f32 %v79, %v2029
  %v2031 = vpop.f32.mrb[0].mxu0
  %2032 = vmatprep.mubr.bf16.mxu0 0
  %2033 = vmatmul.mubr.bf16.gmra.mrb[0].mxu0 %v1896
  %v2034 = vpop.f32.mrb[0].mxu0
  %v2035 = vadd.f32 %v79, %v2034
  %v2036 = vpop.f32.mrb[0].mxu0
  %v2037 = vpop.f32.mrb[0].mxu0
  %v2038 = vadd.f32 %v79, %v2037
  %v2039 = vpop.f32.mrb[0].mxu0
  %2040 = vmatprep.mubr.bf16.mxu0 0
  %2041 = vmatmul.mubr.bf16.gmra.mrb[0].mxu0 %v1899
  %v2042 = vpop.f32.mrb[0].mxu0
  %v2043 = vadd.f32 %v79, %v2042
  %v2044 = vpop.f32.mrb[0].mxu0
  %v2045 = vpop.f32.mrb[0].mxu0
  %v2046 = vadd.f32 %v79, %v2045
  %v2047 = vpop.f32.mrb[0].mxu0
  %2048 = vmatprep.mubr.bf16.mxu0 0
  %2049 = vmatmul.mubr.bf16.gmra.mrb[0].mxu0 %v1902
  %v2050 = vpop.f32.mrb[0].mxu0
  %v2051 = vadd.f32 %v79, %v2050
  %v2052 = vpop.f32.mrb[0].mxu0
  %v2053 = vpop.f32.mrb[0].mxu0
  %v2054 = vadd.f32 %v79, %v2053
  %v2055 = vpop.f32.mrb[0].mxu0
  %2056 = vmatprep.mubr.bf16.mxu0 0
  %2057 = vmatmul.mubr.bf16.gmra.mrb[0].mxu0 %v1905
  %v2058 = vpop.f32.mrb[0].mxu0
  %v2059 = vadd.f32 %v79, %v2058
  %v2060 = vpop.f32.mrb[0].mxu0
  %v2061 = vpop.f32.mrb[0].mxu0
  %v2062 = vadd.f32 %v79, %v2061
  %v2063 = vpop.f32.mrb[0].mxu0
  %2064 = vmatprep.mubr.bf16.mxu0 0
  %2065 = vmatmul.mubr.bf16.gmra.mrb[0].mxu0 %v1908
  %v2066 = vpop.f32.mrb[0].mxu0
  %v2067 = vadd.f32 %v79, %v2066
  %v2068 = vpop.f32.mrb[0].mxu0
  %v2069 = vpop.f32.mrb[0].mxu0
  %v2070 = vadd.f32 %v79, %v2069
  %v2071 = vpop.f32.mrb[0].mxu0
  %2072 = vmatprep.mubr.bf16.mxu0 0
  %2073 = vmatmul.mubr.bf16.gmra.mrb[0].mxu0 %v1911
  %v2074 = vpop.f32.mrb[0].mxu0
  %v2075 = vadd.f32 %v79, %v2074
  %v2076 = vpop.f32.mrb[0].mxu0
  %v2077 = vpop.f32.mrb[0].mxu0
  %v2078 = vadd.f32 %v79, %v2077
  %v2079 = vpop.f32.mrb[0].mxu0
  %2080 = vmatprep.mubr.bf16.mxu0 0
  %2081 = vmatmul.mubr.bf16.gmra.mrb[0].mxu0 %v1914
  %v2082 = vpop.f32.mrb[0].mxu0
  %v2083 = vadd.f32 %v79, %v2082
  %v2084 = vpop.f32.mrb[0].mxu0
  %v2085 = vpop.f32.mrb[0].mxu0
  %v2086 = vadd.f32 %v79, %v2085
  %v2087 = vpop.f32.mrb[0].mxu0
  %2088 = vmatprep.mubr.bf16.mxu0 0
  %2089 = vmatmul.mubr.bf16.gmra.mrb[0].mxu0 %v1917
  %v2090 = vpop.f32.mrb[0].mxu0
  %v2091 = vadd.f32 %v79, %v2090
  %v2092 = vpop.f32.mrb[0].mxu0
  %v2093 = vpop.f32.mrb[0].mxu0
  %v2094 = vadd.f32 %v79, %v2093
  %v2095 = vpop.f32.mrb[0].mxu0
  %2096 = vmatprep.mubr.bf16.mxu0 0
  %2097 = vmatmul.mubr.bf16.gmra.mrb[0].mxu0 %v1920
  %v2098 = vpop.f32.mrb[0].mxu0
  %v2099 = vadd.f32 %v79, %v2098
  %v2100 = vpop.f32.mrb[0].mxu0
  %v2101 = vpop.f32.mrb[0].mxu0
  %v2102 = vadd.f32 %v79, %v2101
  %v2103 = vpop.f32.mrb[0].mxu0
  %2104 = vmatprep.mubr.bf16.mxu0 0
  %2105 = vmatmul.mubr.bf16.gmra.mrb[0].mxu0 %v1923
  %v2106 = vpop.f32.mrb[0].mxu0
  %v2107 = vadd.f32 %v79, %v2106
  %v2108 = vpop.f32.mrb[0].mxu0
  %v2109 = vpop.f32.mrb[0].mxu0
  %v2110 = vadd.f32 %v79, %v2109
  %v2111 = vpop.f32.mrb[0].mxu0
  %2112 = vmatprep.mubr.bf16.mxu0 0
  %2113 = vmatmul.mubr.bf16.gmra.mrb[0].mxu0 %v1926
  %v2114 = vpop.f32.mrb[0].mxu0
  %v2115 = vadd.f32 %v79, %v2114
  %v2116 = vpop.f32.mrb[0].mxu0
  %v2117 = vpop.f32.mrb[0].mxu0
  %v2118 = vadd.f32 %v79, %v2117
  %v2119 = vpop.f32.mrb[0].mxu0
  %2120 = vmatprep.mubr.bf16.mxu0 0
  %2121 = vmatmul.mubr.bf16.gmra.mrb[0].mxu0 %v1929
  %v2122 = vpop.f32.mrb[0].mxu0
  %v2123 = vadd.f32 %v79, %v2122
  %v2124 = vpop.f32.mrb[0].mxu0
  %v2125 = vpop.f32.mrb[0].mxu0
  %v2126 = vadd.f32 %v79, %v2125
  %v2127 = vpop.f32.mrb[0].mxu0
  %2128 = vmatprep.mubr.bf16.mxu0 0
  %2129 = vmatmul.mubr.bf16.gmra.mrb[0].mxu0 %v1932
  %v2130 = vpop.f32.mrb[0].mxu0
  %v2131 = vadd.f32 %v79, %v2130
  %v2132 = vpop.f32.mrb[0].mxu0
  %v2133 = vpop.f32.mrb[0].mxu0
  %v2134 = vadd.f32 %v79, %v2133
  %v2135 = vpop.f32.mrb[0].mxu0
  %2136 = vmatprep.mubr.bf16.mxu0 0
  %2137 = vmatmul.mubr.bf16.gmra.mrb[0].mxu0 %v1935
  %v2138 = vpop.f32.mrb[0].mxu0
  %v2139 = vadd.f32 %v79, %v2138
  %v2140 = vpop.f32.mrb[0].mxu0
  %v2141 = vpop.f32.mrb[0].mxu0
  %v2142 = vadd.f32 %v79, %v2141
  %v2143 = vpop.f32.mrb[0].mxu0
  %2144 = vmatprep.mubr.bf16.mxu0 0
  %2145 = vmatmul.mubr.bf16.gmra.mrb[0].mxu0 %v1938
  %v2146 = vpop.f32.mrb[0].mxu0
  %v2147 = vadd.f32 %v79, %v2146
  %v2148 = vpop.f32.mrb[0].mxu0
  %v2149 = vpop.f32.mrb[0].mxu0
  %v2150 = vadd.f32 %v79, %v2149
  %v2151 = vpop.f32.mrb[0].mxu0
  %2152 = vmatprep.mubr.bf16.mxu0 0
  %2153 = vmatmul.mubr.bf16.gmra.mrb[0].mxu0 %v1941
  %v2154 = vpop.f32.mrb[0].mxu0
  %v2155 = vadd.f32 %v79, %v2154
  %v2156 = vpop.f32.mrb[0].mxu0
  %v2157 = vpop.f32.mrb[0].mxu0
  %v2158 = vadd.f32 %v79, %v2157
  %v2159 = vpop.f32.mrb[0].mxu0
  %2160 = vmatprep.mubr.bf16.mxu0 0
  %2161 = vmatmul.mubr.bf16.gmra.mrb[0].mxu0 %v1944
  %v2162 = vpop.f32.mrb[0].mxu0
  %v2163 = vadd.f32 %v79, %v2162
  %v2164 = vpop.f32.mrb[0].mxu0
  %v2165 = vpop.f32.mrb[0].mxu0
  %v2166 = vadd.f32 %v79, %v2165
  %v2167 = vpop.f32.mrb[0].mxu0
  %2168 = vmatprep.mubr.bf16.mxu0 0
  %2169 = vmatmul.mubr.bf16.gmra.mrb[0].mxu0 %v1947
  %v2170 = vpop.f32.mrb[0].mxu0
  %v2171 = vadd.f32 %v79, %v2170
  %v2172 = vpop.f32.mrb[0].mxu0
  %v2173 = vpop.f32.mrb[0].mxu0
  %v2174 = vadd.f32 %v79, %v2173
  %v2175 = vpop.f32.mrb[0].mxu0
  %2176 = vmatprep.mubr.bf16.mxu0 0
  %2177 = vmatmul.mubr.bf16.gmra.mrb[0].mxu0 %v1950
  %v2178 = vpop.f32.mrb[0].mxu0
  %v2179 = vadd.f32 %v79, %v2178
  %v2180 = vpop.f32.mrb[0].mxu0
  %v2181 = vpop.f32.mrb[0].mxu0
  %v2182 = vpop.f32.mrb[0].mxu0
  %2183 = vdwg.mxu0
  %v2184 = vmax.f32 %v1987, 0.0
  %v2185 = vmax.f32 %v1990, 0.0
  %v2186 = vmax.f32 %v1995, 0.0
  %v2187 = vmax.f32 %v1998, 0.0
  %v2188 = vmax.f32 %v2003, 0.0
  %v2189 = vmax.f32 %v2006, 0.0
  %v2190 = vmax.f32 %v2011, 0.0
  %v2191 = vmax.f32 %v2014, 0.0
  %v2192 = vmax.f32 %v2019, 0.0
  %v2193 = vmax.f32 %v2022, 0.0
  %v2194 = vmax.f32 %v2027, 0.0
  %v2195 = vmax.f32 %v2030, 0.0
  %v2196 = vmax.f32 %v2035, 0.0
  %v2197 = vmax.f32 %v2038, 0.0
  %v2198 = vmax.f32 %v2043, 0.0
  %v2199 = vmax.f32 %v2046, 0.0
  %v2200 = vmax.f32 %v2051, 0.0
  %v2201 = vmax.f32 %v2054, 0.0
  %v2202 = vmax.f32 %v2059, 0.0
  %v2203 = vmax.f32 %v2062, 0.0
  %v2204 = vmax.f32 %v2067, 0.0
  %v2205 = vmax.f32 %v2070, 0.0
  %v2206 = vmax.f32 %v2075, 0.0
  %v2207 = vmax.f32 %v2078, 0.0
  %v2208 = vmax.f32 %v2083, 0.0
  %v2209 = vmax.f32 %v2086, 0.0
  %v2210 = vmax.f32 %v2091, 0.0
  %v2211 = vmax.f32 %v2094, 0.0
  %v2212 = vmax.f32 %v2099, 0.0
  %v2213 = vmax.f32 %v2102, 0.0
  %v2214 = vmax.f32 %v2107, 0.0
  %v2215 = vmax.f32 %v2110, 0.0
  %v2216 = vmax.f32 %v2115, 0.0
  %v2217 = vmax.f32 %v2118, 0.0
  %v2218 = vmax.f32 %v2123, 0.0
  %v2219 = vmax.f32 %v2126, 0.0
  %v2220 = vmax.f32 %v2131, 0.0
  %v2221 = vmax.f32 %v2134, 0.0
  %v2222 = vmax.f32 %v2139, 0.0
  %v2223 = vmax.f32 %v2142, 0.0
  %v2224 = vmax.f32 %v2147, 0.0
  %v2225 = vmax.f32 %v2150, 0.0
  %v2226 = vmax.f32 %v2155, 0.0
  %v2227 = vmax.f32 %v2158, 0.0
  %v2228 = vmax.f32 %v2163, 0.0
  %v2229 = vmax.f32 %v2166, 0.0
  %v2230 = vmax.f32 %v2171, 0.0
  %v2231 = vmax.f32 %v2174, 0.0
  %v2232 = vmax.f32 %v2179, 0.0
  %v2233 = vmax.f32 %v1655, %v2184
  %v2234 = vmax.f32 %v1656, %v2185
  %v2235 = vmax.f32 %v1657, %v2186
  %v2236 = vmax.f32 %v1658, %v2187
  %v2237 = vmax.f32 %v1659, %v2188
  %v2238 = vmax.f32 %v1660, %v2189
  %v2239 = vmax.f32 %v1661, %v2190
  %v2240 = vmax.f32 %v1662, %v2191
  %v2241 = vmax.f32 %v1663, %v2192
  %v2242 = vmax.f32 %v1664, %v2193
  %v2243 = vmax.f32 %v1665, %v2194
  %v2244 = vmax.f32 %v1666, %v2195
  %v2245 = vmax.f32 %v1667, %v2196
  %v2246 = vmax.f32 %v1668, %v2197
  %v2247 = vmax.f32 %v1669, %v2198
  %v2248 = vmax.f32 %v1670, %v2199
  %v2249 = vmax.f32 %v1671, %v2200
  %v2250 = vmax.f32 %v1672, %v2201
  %v2251 = vmax.f32 %v1673, %v2202
  %v2252 = vmax.f32 %v1674, %v2203
  %v2253 = vmax.f32 %v1675, %v2204
  %v2254 = vmax.f32 %v1676, %v2205
  %v2255 = vmax.f32 %v1677, %v2206
  %v2256 = vmax.f32 %v1678, %v2207
  %v2257 = vmax.f32 %v1679, %v2208
  %v2258 = vmax.f32 %v1680, %v2209
  %v2259 = vmax.f32 %v1681, %v2210
  %v2260 = vmax.f32 %v1682, %v2211
  %v2261 = vmax.f32 %v1683, %v2212
  %v2262 = vmax.f32 %v1684, %v2213
  %v2263 = vmax.f32 %v1685, %v2214
  %v2264 = vmax.f32 %v1686, %v2215
  %v2265 = vmax.f32 %v1687, %v2216
  %v2266 = vmax.f32 %v1688, %v2217
  %v2267 = vmax.f32 %v1689, %v2218
  %v2268 = vmax.f32 %v1690, %v2219
  %v2269 = vmax.f32 %v1691, %v2220
  %v2270 = vmax.f32 %v1692, %v2221
  %v2271 = vmax.f32 %v1693, %v2222
  %v2272 = vmax.f32 %v1694, %v2223
  %v2273 = vmax.f32 %v1695, %v2224
  %v2274 = vmax.f32 %v1696, %v2225
  %v2275 = vmax.f32 %v1697, %v2226
  %v2276 = vmax.f32 %v1698, %v2227
  %v2277 = vmax.f32 %v1699, %v2228
  %v2278 = vmax.f32 %v1700, %v2229
  %v2279 = vmax.f32 %v1701, %v2230
  %v2280 = vmax.f32 %v1702, %v2231
  %v2281 = vmax.f32 %v1703, %v2232
  %v2282 = vmax.f32 %v1126, %v2233
  %v2283 = vmax.f32 %v1127, %v2234
  %v2284 = vmax.f32 %v1128, %v2235
  %v2285 = vmax.f32 %v1129, %v2236
  %v2286 = vmax.f32 %v1130, %v2237
  %v2287 = vmax.f32 %v1131, %v2238
  %v2288 = vmax.f32 %v1132, %v2239
  %v2289 = vmax.f32 %v1133, %v2240
  %v2290 = vmax.f32 %v1134, %v2241
  %v2291 = vmax.f32 %v1135, %v2242
  %v2292 = vmax.f32 %v1136, %v2243
  %v2293 = vmax.f32 %v1137, %v2244
  %v2294 = vmax.f32 %v1138, %v2245
  %v2295 = vmax.f32 %v1139, %v2246
  %v2296 = vmax.f32 %v1140, %v2247
  %v2297 = vmax.f32 %v1141, %v2248
  %v2298 = vmax.f32 %v1142, %v2249
  %v2299 = vmax.f32 %v1143, %v2250
  %v2300 = vmax.f32 %v1144, %v2251
  %v2301 = vmax.f32 %v1145, %v2252
  %v2302 = vmax.f32 %v1146, %v2253
  %v2303 = vmax.f32 %v1147, %v2254
  %v2304 = vmax.f32 %v1148, %v2255
  %v2305 = vmax.f32 %v1149, %v2256
  %v2306 = vmax.f32 %v1150, %v2257
  %v2307 = vmax.f32 %v1151, %v2258
  %v2308 = vmax.f32 %v1152, %v2259
  %v2309 = vmax.f32 %v1153, %v2260
  %v2310 = vmax.f32 %v1154, %v2261
  %v2311 = vmax.f32 %v1155, %v2262
  %v2312 = vmax.f32 %v1156, %v2263
  %v2313 = vmax.f32 %v1157, %v2264
  %v2314 = vmax.f32 %v1158, %v2265
  %v2315 = vmax.f32 %v1159, %v2266
  %v2316 = vmax.f32 %v1160, %v2267
  %v2317 = vmax.f32 %v1161, %v2268
  %v2318 = vmax.f32 %v1162, %v2269
  %v2319 = vmax.f32 %v1163, %v2270
  %v2320 = vmax.f32 %v1164, %v2271
  %v2321 = vmax.f32 %v1165, %v2272
  %v2322 = vmax.f32 %v1166, %v2273
  %v2323 = vmax.f32 %v1167, %v2274
  %v2324 = vmax.f32 %v1168, %v2275
  %v2325 = vmax.f32 %v1169, %v2276
  %v2326 = vmax.f32 %v1170, %v2277
  %v2327 = vmax.f32 %v1171, %v2278
  %v2328 = vmax.f32 %v1172, %v2279
  %v2329 = vmax.f32 %v1173, %v2280
  %v2330 = vmax.f32 %v1174, %v2281
  %v2331 = vpack.c.bf16 %v2283, %v2282
  %v2332 = vpack.c.bf16 %v2285, %v2284
  %v2333 = vpack.c.bf16 %v2287, %v2286
  %v2334 = vpack.c.bf16 %v2289, %v2288
  %v2335 = vpack.c.bf16 %v2291, %v2290
  %v2336 = vpack.c.bf16 %v2293, %v2292
  %v2337 = vpack.c.bf16 %v2295, %v2294
  %v2338 = vpack.c.bf16 %v2297, %v2296
  %v2339 = vpack.c.bf16 %v2299, %v2298
  %v2340 = vpack.c.bf16 %v2301, %v2300
  %v2341 = vpack.c.bf16 %v2303, %v2302
  %v2342 = vpack.c.bf16 %v2305, %v2304
  %v2343 = vpack.c.bf16 %v2307, %v2306
  %v2344 = vpack.c.bf16 %v2309, %v2308
  %v2345 = vpack.c.bf16 %v2311, %v2310
  %v2346 = vpack.c.bf16 %v2313, %v2312
  %v2347 = vpack.c.bf16 %v2315, %v2314
  %v2348 = vpack.c.bf16 %v2317, %v2316
  %v2349 = vpack.c.bf16 %v2319, %v2318
  %v2350 = vpack.c.bf16 %v2321, %v2320
  %v2351 = vpack.c.bf16 %v2323, %v2322
  %v2352 = vpack.c.bf16 %v2325, %v2324
  %v2353 = vpack.c.bf16 %v2327, %v2326
  %v2354 = vpack.c.bf16 %v2329, %v2328
  %v2355 = vpack.c.bf16 %v2330, %v2330
  %v2381 = vunpack.c.l.b16 %v2331
  %v2382 = vunpack.c.h.b16 %v2331
  %v2383 = vunpack.c.l.b16 %v2332
  %v2384 = vunpack.c.h.b16 %v2332
  %v2385 = vunpack.c.l.b16 %v2333
  %v2386 = vunpack.c.h.b16 %v2333
  %v2387 = vunpack.c.l.b16 %v2334
  %v2388 = vunpack.c.h.b16 %v2334
  %v2389 = vunpack.c.l.b16 %v2335
  %v2390 = vunpack.c.h.b16 %v2335
  %v2391 = vunpack.c.l.b16 %v2336
  %v2392 = vunpack.c.h.b16 %v2336
  %v2393 = vunpack.c.l.b16 %v2337
  %v2394 = vunpack.c.h.b16 %v2337
  %v2395 = vunpack.c.l.b16 %v2338
  %v2396 = vunpack.c.h.b16 %v2338
  %v2397 = vunpack.c.l.b16 %v2339
  %v2398 = vunpack.c.h.b16 %v2339
  %v2399 = vunpack.c.l.b16 %v2340
  %v2400 = vunpack.c.h.b16 %v2340
  %v2401 = vunpack.c.l.b16 %v2341
  %v2402 = vunpack.c.h.b16 %v2341
  %v2403 = vunpack.c.l.b16 %v2342
  %v2404 = vunpack.c.h.b16 %v2342
  %v2405 = vunpack.c.l.b16 %v2343
  %v2406 = vunpack.c.h.b16 %v2343
  %v2407 = vunpack.c.l.b16 %v2344
  %v2408 = vunpack.c.h.b16 %v2344
  %v2409 = vunpack.c.l.b16 %v2345
  %v2410 = vunpack.c.h.b16 %v2345
  %v2411 = vunpack.c.l.b16 %v2346
  %v2412 = vunpack.c.h.b16 %v2346
  %v2413 = vunpack.c.l.b16 %v2347
  %v2414 = vunpack.c.h.b16 %v2347
  %v2415 = vunpack.c.l.b16 %v2348
  %v2416 = vunpack.c.h.b16 %v2348
  %v2417 = vunpack.c.l.b16 %v2349
  %v2418 = vunpack.c.h.b16 %v2349
  %v2419 = vunpack.c.l.b16 %v2350
  %v2420 = vunpack.c.h.b16 %v2350
  %v2421 = vunpack.c.l.b16 %v2351
  %v2422 = vunpack.c.h.b16 %v2351
  %v2423 = vunpack.c.l.b16 %v2352
  %v2424 = vunpack.c.h.b16 %v2352
  %v2425 = vunpack.c.l.b16 %v2353
  %v2426 = vunpack.c.h.b16 %v2353
  %v2427 = vunpack.c.l.b16 %v2354
  %v2428 = vunpack.c.h.b16 %v2354
  %v2429 = vunpack.c.l.b16 %v2355
  %v2430 = vpack.c.b16 %v2381, %v2381
  %v2431 = vpack.c.b16 %v2382, %v2382
  %v2432 = vpack.c.b16 %v2383, %v2383
  %v2433 = vpack.c.b16 %v2384, %v2384
  %v2434 = vpack.c.b16 %v2385, %v2385
  %v2435 = vpack.c.b16 %v2386, %v2386
  %v2436 = vpack.c.b16 %v2387, %v2387
  %v2437 = vpack.c.b16 %v2388, %v2388
  %v2438 = vpack.c.b16 %v2389, %v2389
  %v2439 = vpack.c.b16 %v2390, %v2390
  %v2440 = vpack.c.b16 %v2391, %v2391
  %v2441 = vpack.c.b16 %v2392, %v2392
  %v2442 = vpack.c.b16 %v2393, %v2393
  %v2443 = vpack.c.b16 %v2394, %v2394
  %v2444 = vpack.c.b16 %v2395, %v2395
  %v2445 = vpack.c.b16 %v2396, %v2396
  %v2446 = vpack.c.b16 %v2397, %v2397
  %v2447 = vpack.c.b16 %v2398, %v2398
  %v2448 = vpack.c.b16 %v2399, %v2399
  %v2449 = vpack.c.b16 %v2400, %v2400
  %v2450 = vpack.c.b16 %v2401, %v2401
  %v2451 = vpack.c.b16 %v2402, %v2402
  %v2452 = vpack.c.b16 %v2403, %v2403
  %v2453 = vpack.c.b16 %v2404, %v2404
  %v2454 = vpack.c.b16 %v2405, %v2405
  %v2455 = vpack.c.b16 %v2406, %v2406
  %v2456 = vpack.c.b16 %v2407, %v2407
  %v2457 = vpack.c.b16 %v2408, %v2408
  %v2458 = vpack.c.b16 %v2409, %v2409
  %v2459 = vpack.c.b16 %v2410, %v2410
  %v2460 = vpack.c.b16 %v2411, %v2411
  %v2461 = vpack.c.b16 %v2412, %v2412
  %v2462 = vpack.c.b16 %v2413, %v2413
  %v2463 = vpack.c.b16 %v2414, %v2414
  %v2464 = vpack.c.b16 %v2415, %v2415
  %v2465 = vpack.c.b16 %v2416, %v2416
  %v2466 = vpack.c.b16 %v2417, %v2417
  %v2467 = vpack.c.b16 %v2418, %v2418
  %v2468 = vpack.c.b16 %v2419, %v2419
  %v2469 = vpack.c.b16 %v2420, %v2420
  %v2470 = vpack.c.b16 %v2421, %v2421
  %v2471 = vpack.c.b16 %v2422, %v2422
  %v2472 = vpack.c.b16 %v2423, %v2423
  %v2473 = vpack.c.b16 %v2424, %v2424
  %v2474 = vpack.c.b16 %v2425, %v2425
  %v2475 = vpack.c.b16 %v2426, %v2426
  %v2476 = vpack.c.b16 %v2427, %v2427
  %v2477 = vpack.c.b16 %v2428, %v2428
  %v2478 = vpack.c.b16 %v2429, %v2429
  %vm2528 = vcmask 257024
  %2529 = vst.msk [vmem:[%s3] sm:$0xf] %vm2528, %v2430
  %2530 = vst.msk [vmem:[%s3 + $0x4] sm:$0xf] %vm2528, %v2431
  %2531 = vst.msk [vmem:[%s3 + $0x8] sm:$0xf] %vm2528, %v2432
  %2532 = vst.msk [vmem:[%s3 + $0xc] sm:$0xf] %vm2528, %v2433
  %2533 = vst.msk [vmem:[%s3 + $0x10] sm:$0xf] %vm2528, %v2434
  %2534 = vst.msk [vmem:[%s3 + $0x14] sm:$0xf] %vm2528, %v2435
  %2535 = vst.msk [vmem:[%s3 + $0x18] sm:$0xf] %vm2528, %v2436
  %2536 = vst.msk [vmem:[%s3 + $0x1c] sm:$0xf] %vm2528, %v2437
  %2537 = vst.msk [vmem:[%s3 + $0x20] sm:$0xf] %vm2528, %v2438
  %2538 = vst.msk [vmem:[%s3 + $0x24] sm:$0xf] %vm2528, %v2439
  %2539 = vst.msk [vmem:[%s3 + $0x28] sm:$0xf] %vm2528, %v2440
  %2540 = vst.msk [vmem:[%s3 + $0x2c] sm:$0xf] %vm2528, %v2441
  %2541 = vst.msk [vmem:[%s3 + $0x30] sm:$0xf] %vm2528, %v2442
  %2542 = vst.msk [vmem:[%s3 + $0x34] sm:$0xf] %vm2528, %v2443
  %2543 = vst.msk [vmem:[%s3 + $0x38] sm:$0xf] %vm2528, %v2444
  %2544 = vst.msk [vmem:[%s3 + $0x3c] sm:$0xf] %vm2528, %v2445
  %2545 = vst.msk [vmem:[%s3 + $0x40] sm:$0xf] %vm2528, %v2446
  %2546 = vst.msk [vmem:[%s3 + $0x44] sm:$0xf] %vm2528, %v2447
  %2547 = vst.msk [vmem:[%s3 + $0x48] sm:$0xf] %vm2528, %v2448
  %2548 = vst.msk [vmem:[%s3 + $0x4c] sm:$0xf] %vm2528, %v2449
  %2549 = vst.msk [vmem:[%s3 + $0x50] sm:$0xf] %vm2528, %v2450
  %2550 = vst.msk [vmem:[%s3 + $0x54] sm:$0xf] %vm2528, %v2451
  %2551 = vst.msk [vmem:[%s3 + $0x58] sm:$0xf] %vm2528, %v2452
  %2552 = vst.msk [vmem:[%s3 + $0x5c] sm:$0xf] %vm2528, %v2453
  %2553 = vst.msk [vmem:[%s3 + $0x60] sm:$0xf] %vm2528, %v2454
  %2554 = vst.msk [vmem:[%s3 + $0x64] sm:$0xf] %vm2528, %v2455
  %2555 = vst.msk [vmem:[%s3 + $0x68] sm:$0xf] %vm2528, %v2456
  %2556 = vst.msk [vmem:[%s3 + $0x6c] sm:$0xf] %vm2528, %v2457
  %2557 = vst.msk [vmem:[%s3 + $0x70] sm:$0xf] %vm2528, %v2458
  %2558 = vst.msk [vmem:[%s3 + $0x74] sm:$0xf] %vm2528, %v2459
  %2559 = vst.msk [vmem:[%s3 + $0x78] sm:$0xf] %vm2528, %v2460
  %2560 = vst.msk [vmem:[%s3 + $0x7c] sm:$0xf] %vm2528, %v2461
  %2561 = vst.msk [vmem:[%s3 + $0x80] sm:$0xf] %vm2528, %v2462
  %2562 = vst.msk [vmem:[%s3 + $0x84] sm:$0xf] %vm2528, %v2463
  %2563 = vst.msk [vmem:[%s3 + $0x88] sm:$0xf] %vm2528, %v2464
  %2564 = vst.msk [vmem:[%s3 + $0x8c] sm:$0xf] %vm2528, %v2465
  %2565 = vst.msk [vmem:[%s3 + $0x90] sm:$0xf] %vm2528, %v2466
  %2566 = vst.msk [vmem:[%s3 + $0x94] sm:$0xf] %vm2528, %v2467
  %2567 = vst.msk [vmem:[%s3 + $0x98] sm:$0xf] %vm2528, %v2468
  %2568 = vst.msk [vmem:[%s3 + $0x9c] sm:$0xf] %vm2528, %v2469
  %2569 = vst.msk [vmem:[%s3 + $0xa0] sm:$0xf] %vm2528, %v2470
  %2570 = vst.msk [vmem:[%s3 + $0xa4] sm:$0xf] %vm2528, %v2471
  %2571 = vst.msk [vmem:[%s3 + $0xa8] sm:$0xf] %vm2528, %v2472
  %2572 = vst.msk [vmem:[%s3 + $0xac] sm:$0xf] %vm2528, %v2473
  %2573 = vst.msk [vmem:[%s3 + $0xb0] sm:$0xf] %vm2528, %v2474
  %2574 = vst.msk [vmem:[%s3 + $0xb4] sm:$0xf] %vm2528, %v2475
  %2575 = vst.msk [vmem:[%s3 + $0xb8] sm:$0xf] %vm2528, %v2476
  %2576 = vst.msk [vmem:[%s3 + $0xbc] sm:$0xf] %vm2528, %v2477
  %2577 = vst.msk [vmem:[%s3 + $0xc0] sm:$0xf] %vm2528, %v2478
  // Predicated region
  $region14: #{_lambda_.3} parent=0 // pred_check
    _
  $region15: #{_lambda_.3} parent=0 // pred_check_branch
    %2579 = sbr.rel (0) target = $region17
  $region16: #{_lambda_.3} parent=0 // pred_region
    _
  $region17: #{_lambda_.3} parent=0 // pred_fallthru
    _
  // Predicated region
  $region18: #{_lambda_.3} parent=0 // pred_check
    _
  $region19: #{_lambda_.3} parent=0 // pred_check_branch
    %2581 = sbr.rel (0) target = $region21
  $region20: #{_lambda_.3} parent=0 // pred_region
    _
  $region21: #{_lambda_.3} parent=0 // pred_fallthru
    _

// kernel: _lambda_.4
$region0: #{_lambda_.4}
  #allocation0 [shape = 'u32[]', space=smem, size = 0x4, offset = 0x4, fixed_abs, tag = 'smem constant byte address 0x4 - core index']
  #allocation1 [shape = 'u32[144,128]{1,0:T(1,128)}', space=vmem, size = 0x12000, scoped, tag = 'internal scratch']
  %s0 = inlined_call_operand.vmem [shape: bf16[4,50,800], index: 0, kind: input, shape index: {}]
  %s1 = inlined_call_operand.vmem [shape: bf16[800,32], index: 1, kind: input, shape index: {}]
  %s2 = inlined_call_operand.vmem [shape: f32[1,32], index: 2, kind: input, shape index: {}]
  %s3 = inlined_call_operand.vmem [shape: bf16[50,32], index: 3, kind: output, shape index: {}]
  %s4 = sld [smem:[#allocation0]]
  $region22: #{_lambda_.4} parent=0
    _
  %s6 = ssub.s32 1, %s4
  %s7 = scalar_select 0, %s6, %s4
  // Predicated region
  $region2: #{_lambda_.4} parent=0 // pred_check
    _
  $region3: #{_lambda_.4} parent=0 // pred_check_branch
    %9 = sbr.rel (0) target = $region5
  $region4: #{_lambda_.4} parent=0 // pred_region
    _
  $region5: #{_lambda_.4} parent=0 // pred_fallthru
    _
  // Predicated region
  $region6: #{_lambda_.4} parent=0 // pred_check
    _
  $region7: #{_lambda_.4} parent=0 // pred_check_branch
    %11 = sbr.rel (0) target = $region9
  $region8: #{_lambda_.4} parent=0 // pred_region
    _
  $region9: #{_lambda_.4} parent=0 // pred_fallthru
    _
  // Predicated region
  $region10: #{_lambda_.4} parent=0 // pred_check
    _
  $region11: #{_lambda_.4} parent=0 // pred_check_branch
    %13 = sbr.rel (0) target = $region13
  $region12: #{_lambda_.4} parent=0 // pred_region
    _
  $region13: #{_lambda_.4} parent=0 // pred_fallthru
    _
  %v15 = vld [vmem:[%s1] sm:$0xf]
  %v16 = vld [vmem:[%s1 + $0x4] sm:$0xf]
  %v17 = vld [vmem:[%s1 + $0x8] sm:$0xf]
  %v18 = vld [vmem:[%s1 + $0xc] sm:$0xf]
  %v19 = vld [vmem:[%s1 + $0x10] sm:$0xf]
  %v20 = vld [vmem:[%s1 + $0x14] sm:$0xf]
  %v21 = vld [vmem:[%s1 + $0x18] sm:$0xf]
  %v22 = vld [vmem:[%s1 + $0x1c] sm:$0xf]
  %v23 = vld [vmem:[%s1 + $0x20] sm:$0xf]
  %v24 = vld [vmem:[%s1 + $0x24] sm:$0xf]
  %v25 = vld [vmem:[%s1 + $0x28] sm:$0xf]
  %v26 = vld [vmem:[%s1 + $0x2c] sm:$0xf]
  %v27 = vld [vmem:[%s1 + $0x30] sm:$0xf]
  %v28 = vld [vmem:[%s1 + $0x34] sm:$0xf]
  %v29 = vld [vmem:[%s1 + $0x38] sm:$0xf]
  %v30 = vld [vmem:[%s1 + $0x3c] sm:$0xf]
  %v31 = vld [vmem:[%s1 + $0x40] sm:$0xf]
  %v32 = vld [vmem:[%s1 + $0x44] sm:$0xf]
  %v33 = vld [vmem:[%s1 + $0x48] sm:$0xf]
  %v34 = vld [vmem:[%s1 + $0x4c] sm:$0xf]
  %v35 = vld [vmem:[%s1 + $0x50] sm:$0xf]
  %v36 = vld [vmem:[%s1 + $0x54] sm:$0xf]
  %v37 = vld [vmem:[%s1 + $0x58] sm:$0xf]
  %v38 = vld [vmem:[%s1 + $0x5c] sm:$0xf]
  %v39 = vld [vmem:[%s1 + $0x60] sm:$0xf]
  %v40 = vld [vmem:[%s1 + $0x64] sm:$0xf]
  %v41 = vld [vmem:[%s1 + $0x68] sm:$0xf]
  %v42 = vld [vmem:[%s1 + $0x6c] sm:$0xf]
  %v43 = vld [vmem:[%s1 + $0x70] sm:$0xf]
  %v44 = vld [vmem:[%s1 + $0x74] sm:$0xf]
  %v45 = vld [vmem:[%s1 + $0x78] sm:$0xf]
  %v46 = vld [vmem:[%s1 + $0x7c] sm:$0xf]
  %v47 = vld [vmem:[%s1 + $0x80] sm:$0xf]
  %v48 = vld [vmem:[%s1 + $0x84] sm:$0xf]
  %v49 = vld [vmem:[%s1 + $0x88] sm:$0xf]
  %v50 = vld [vmem:[%s1 + $0x8c] sm:$0xf]
  %v51 = vld [vmem:[%s1 + $0x90] sm:$0xf]
  %v52 = vld [vmem:[%s1 + $0x94] sm:$0xf]
  %v53 = vld [vmem:[%s1 + $0x98] sm:$0xf]
  %v54 = vld [vmem:[%s1 + $0x9c] sm:$0xf]
  %v55 = vld [vmem:[%s1 + $0xa0] sm:$0xf]
  %v56 = vld [vmem:[%s1 + $0xa4] sm:$0xf]
  %v57 = vld [vmem:[%s1 + $0xa8] sm:$0xf]
  %v58 = vld [vmem:[%s1 + $0xac] sm:$0xf]
  %v59 = vld [vmem:[%s1 + $0xb0] sm:$0xf]
  %v60 = vld [vmem:[%s1 + $0xb4] sm:$0xf]
  %v61 = vld [vmem:[%s1 + $0xb8] sm:$0xf]
  %v62 = vld [vmem:[%s1 + $0xbc] sm:$0xf]
  %v63 = vld [vmem:[%s1 + $0xc0] sm:$0xf]
  %v64 = vld [vmem:[%s1 + $0xc4] sm:$0xf]
  %v65 = vld [vmem:[%s1 + $0xc8] sm:$0xf]
  %v66 = vld [vmem:[%s1 + $0xcc] sm:$0xf]
  %v67 = vld [vmem:[%s1 + $0xd0] sm:$0xf]
  %v68 = vld [vmem:[%s1 + $0xd4] sm:$0xf]
  %v69 = vld [vmem:[%s1 + $0xd8] sm:$0xf]
  %v70 = vld [vmem:[%s1 + $0xdc] sm:$0xf]
  %v71 = vld [vmem:[%s1 + $0xe0] sm:$0xf]
  %v72 = vld [vmem:[%s1 + $0xe4] sm:$0xf]
  %v73 = vld [vmem:[%s1 + $0xe8] sm:$0xf]
  %v74 = vld [vmem:[%s1 + $0xec] sm:$0xf]
  %v75 = vld [vmem:[%s1 + $0xf0] sm:$0xf]
  %v76 = vld [vmem:[%s1 + $0xf4] sm:$0xf]
  %v77 = vld [vmem:[%s1 + $0xf8] sm:$0xf]
  %v78 = vld [vmem:[%s1 + $0xfc] sm:$0xf]
  %v79 = vld [vmem:[%s1 + $0x100] sm:$0xf]
  %v80 = vld [vmem:[%s1 + $0x104] sm:$0xf]
  %v81 = vld [vmem:[%s1 + $0x108] sm:$0xf]
  %v82 = vld [vmem:[%s1 + $0x10c] sm:$0xf]
  %v83 = vld [vmem:[%s1 + $0x110] sm:$0xf]
  %v84 = vld [vmem:[%s1 + $0x114] sm:$0xf]
  %v85 = vld [vmem:[%s1 + $0x118] sm:$0xf]
  %v86 = vld [vmem:[%s1 + $0x11c] sm:$0xf]
  %v87 = vld [vmem:[%s1 + $0x120] sm:$0xf]
  %v88 = vld [vmem:[%s1 + $0x124] sm:$0xf]
  %v89 = vld [vmem:[%s1 + $0x128] sm:$0xf]
  %v90 = vld [vmem:[%s1 + $0x12c] sm:$0xf]
  %v91 = vld [vmem:[%s1 + $0x130] sm:$0xf]
  %v92 = vld [vmem:[%s1 + $0x134] sm:$0xf]
  %v93 = vld [vmem:[%s1 + $0x138] sm:$0xf]
  %v94 = vld [vmem:[%s1 + $0x13c] sm:$0xf]
  %v95 = vld [vmem:[%s1 + $0x140] sm:$0xf]
  %v96 = vld [vmem:[%s1 + $0x144] sm:$0xf]
  %v97 = vld [vmem:[%s1 + $0x148] sm:$0xf]
  %v98 = vld [vmem:[%s1 + $0x14c] sm:$0xf]
  %v99 = vld [vmem:[%s1 + $0x150] sm:$0xf]
  %v100 = vld [vmem:[%s1 + $0x154] sm:$0xf]
  %v101 = vld [vmem:[%s1 + $0x158] sm:$0xf]
  %v102 = vld [vmem:[%s1 + $0x15c] sm:$0xf]
  %v103 = vld [vmem:[%s1 + $0x160] sm:$0xf]
  %v104 = vld [vmem:[%s1 + $0x164] sm:$0xf]
  %v105 = vld [vmem:[%s1 + $0x168] sm:$0xf]
  %v106 = vld [vmem:[%s1 + $0x16c] sm:$0xf]
  %v107 = vld [vmem:[%s1 + $0x170] sm:$0xf]
  %v108 = vld [vmem:[%s1 + $0x174] sm:$0xf]
  %v109 = vld [vmem:[%s1 + $0x178] sm:$0xf]
  %v110 = vld [vmem:[%s1 + $0x17c] sm:$0xf]
  %v111 = vld [vmem:[%s1 + $0x180] sm:$0xf]
  %v112 = vld [vmem:[%s1 + $0x184] sm:$0xf]
  %v113 = vld [vmem:[%s1 + $0x188] sm:$0xf]
  %v114 = vld [vmem:[%s1 + $0x18c] sm:$0xf]
  %v115 = vld [vmem:[%s2] sm:$0x1]
  %v116 = vld [vmem:[%s0] sm:$0xff]
  %v117 = vld [vmem:[%s0 + $0x8] sm:$0xff]
  %v118 = vld [vmem:[%s0 + $0x10] sm:$0xff]
  %v119 = vld [vmem:[%s0 + $0x18] sm:$0xf]
  %v120 = vld [vmem:[%s0 + $0x1c] sm:$0xff]
  %v121 = vld [vmem:[%s0 + $0x24] sm:$0xff]
  %v122 = vld [vmem:[%s0 + $0x2c] sm:$0xff]
  %v123 = vld [vmem:[%s0 + $0x34] sm:$0xf]
  %v124 = vld [vmem:[%s0 + $0x38] sm:$0xff]
  %v125 = vld [vmem:[%s0 + $0x40] sm:$0xff]
  %v126 = vld [vmem:[%s0 + $0x48] sm:$0xff]
  %v127 = vld [vmem:[%s0 + $0x50] sm:$0xf]
  %v128 = vld [vmem:[%s0 + $0x54] sm:$0xff]
  %v129 = vld [vmem:[%s0 + $0x5c] sm:$0xff]
  %v130 = vld [vmem:[%s0 + $0x64] sm:$0xff]
  %v131 = vld [vmem:[%s0 + $0x6c] sm:$0xf]
  %v132 = vld [vmem:[%s0 + $0x70] sm:$0xff]
  %v133 = vld [vmem:[%s0 + $0x78] sm:$0xff]
  %v134 = vld [vmem:[%s0 + $0x80] sm:$0xff]
  %v135 = vld [vmem:[%s0 + $0x88] sm:$0xf]
  %v136 = vld [vmem:[%s0 + $0x8c] sm:$0xff]
  %v137 = vld [vmem:[%s0 + $0x94] sm:$0xff]
  %v138 = vld [vmem:[%s0 + $0x9c] sm:$0xff]
  %v139 = vld [vmem:[%s0 + $0xa4] sm:$0xf]
  %v140 = vld [vmem:[%s0 + $0xa8] sm:$0x11]
  %v141 = vld [vmem:[%s0 + $0xb0] sm:$0x11]
  %v142 = vld [vmem:[%s0 + $0xb8] sm:$0x11]
  %v143 = vld [vmem:[%s0 + $0xc0] sm:$0x1]
  %v145 = vlaneseq
  %v146 = vshrl.u32 %v145, 7
  %v147 = vsub.s32 0, %v146
  %v148 = vrot.slane %v115, %v147
  %v178 = vunpack.c.l.b16 %v116
  %v179 = vunpack.c.h.b16 %v116
  %v180 = vunpack.c.l.b16 %v117
  %v181 = vunpack.c.h.b16 %v117
  %v182 = vunpack.c.l.b16 %v118
  %v183 = vunpack.c.h.b16 %v118
  %v184 = vunpack.c.l.b16 %v119
  %v185 = vunpack.c.l.b16 %v120
  %v186 = vunpack.c.h.b16 %v120
  %v187 = vunpack.c.l.b16 %v121
  %v188 = vunpack.c.h.b16 %v121
  %v189 = vunpack.c.l.b16 %v122
  %v190 = vunpack.c.h.b16 %v122
  %v191 = vunpack.c.l.b16 %v123
  %v192 = vunpack.c.l.b16 %v124
  %v193 = vunpack.c.h.b16 %v124
  %v194 = vunpack.c.l.b16 %v125
  %v195 = vunpack.c.h.b16 %v125
  %v196 = vunpack.c.l.b16 %v126
  %v197 = vunpack.c.h.b16 %v126
  %v198 = vunpack.c.l.b16 %v127
  %v199 = vunpack.c.l.b16 %v128
  %v200 = vunpack.c.h.b16 %v128
  %v201 = vunpack.c.l.b16 %v129
  %v202 = vunpack.c.h.b16 %v129
  %v203 = vunpack.c.l.b16 %v130
  %v204 = vunpack.c.h.b16 %v130
  %v205 = vunpack.c.l.b16 %v131
  %v206 = vunpack.c.l.b16 %v132
  %v207 = vunpack.c.h.b16 %v132
  %v208 = vunpack.c.l.b16 %v133
  %v209 = vunpack.c.h.b16 %v133
  %v210 = vunpack.c.l.b16 %v134
  %v211 = vunpack.c.h.b16 %v134
  %v212 = vunpack.c.l.b16 %v135
  %v213 = vunpack.c.l.b16 %v136
  %v214 = vunpack.c.h.b16 %v136
  %v215 = vunpack.c.l.b16 %v137
  %v216 = vunpack.c.h.b16 %v137
  %v217 = vunpack.c.l.b16 %v138
  %v218 = vunpack.c.h.b16 %v138
  %v219 = vunpack.c.l.b16 %v139
  %v220 = vunpack.c.l.b16 %v140
  %v221 = vunpack.c.h.b16 %v140
  %v222 = vunpack.c.l.b16 %v141
  %v223 = vunpack.c.h.b16 %v141
  %v224 = vunpack.c.l.b16 %v142
  %v225 = vunpack.c.h.b16 %v142
  %v226 = vunpack.c.l.b16 %v143
  %v227 = vpack.c.b16 %v185, %v178
  %v228 = vpack.c.b16 %v186, %v179
  %v229 = vpack.c.b16 %v187, %v180
  %v230 = vpack.c.b16 %v188, %v181
  %v231 = vpack.c.b16 %v189, %v182
  %v232 = vpack.c.b16 %v190, %v183
  %v233 = vpack.c.b16 %v191, %v184
  %v234 = vpack.c.b16 %v199, %v192
  %v235 = vpack.c.b16 %v200, %v193
  %v236 = vpack.c.b16 %v201, %v194
  %v237 = vpack.c.b16 %v202, %v195
  %v238 = vpack.c.b16 %v203, %v196
  %v239 = vpack.c.b16 %v204, %v197
  %v240 = vpack.c.b16 %v205, %v198
  %v241 = vpack.c.b16 %v213, %v206
  %v242 = vpack.c.b16 %v214, %v207
  %v243 = vpack.c.b16 %v215, %v208
  %v244 = vpack.c.b16 %v216, %v209
  %v245 = vpack.c.b16 %v217, %v210
  %v246 = vpack.c.b16 %v218, %v211
  %v247 = vpack.c.b16 %v219, %v212
  %v248 = vpack.c.b16 %v220, %v220
  %v249 = vpack.c.b16 %v221, %v221
  %v250 = vpack.c.b16 %v222, %v222
  %v251 = vpack.c.b16 %v223, %v223
  %v252 = vpack.c.b16 %v224, %v224
  %v253 = vpack.c.b16 %v225, %v225
  %v254 = vpack.c.b16 %v226, %v226
  %v379 = vunpack.c.l.b16 %v15
  %v380 = vunpack.c.l.b16 %v16
  %v381 = vunpack.c.l.b16 %v17
  %v382 = vunpack.c.l.b16 %v18
  %v383 = vunpack.c.l.b16 %v19
  %v384 = vunpack.c.l.b16 %v20
  %v385 = vunpack.c.l.b16 %v21
  %v386 = vunpack.c.l.b16 %v22
  %v387 = vunpack.c.l.b16 %v23
  %v388 = vunpack.c.l.b16 %v24
  %v389 = vunpack.c.l.b16 %v25
  %v390 = vunpack.c.l.b16 %v26
  %v391 = vunpack.c.l.b16 %v27
  %v392 = vunpack.c.l.b16 %v28
  %v393 = vunpack.c.l.b16 %v29
  %v394 = vunpack.c.l.b16 %v30
  %v395 = vunpack.c.l.b16 %v31
  %v396 = vunpack.c.l.b16 %v32
  %v397 = vunpack.c.l.b16 %v33
  %v398 = vunpack.c.l.b16 %v34
  %v399 = vunpack.c.l.b16 %v35
  %v400 = vunpack.c.l.b16 %v36
  %v401 = vunpack.c.l.b16 %v37
  %v402 = vunpack.c.l.b16 %v38
  %v403 = vunpack.c.l.b16 %v39
  %v404 = vunpack.c.l.b16 %v40
  %v405 = vunpack.c.l.b16 %v41
  %v406 = vunpack.c.l.b16 %v42
  %v407 = vunpack.c.l.b16 %v43
  %v408 = vunpack.c.l.b16 %v44
  %v409 = vunpack.c.l.b16 %v45
  %v410 = vunpack.c.l.b16 %v46
  %v411 = vunpack.c.l.b16 %v47
  %v412 = vunpack.c.l.b16 %v48
  %v413 = vunpack.c.l.b16 %v49
  %v414 = vunpack.c.l.b16 %v50
  %v415 = vunpack.c.l.b16 %v51
  %v416 = vunpack.c.l.b16 %v52
  %v417 = vunpack.c.l.b16 %v53
  %v418 = vunpack.c.l.b16 %v54
  %v419 = vunpack.c.l.b16 %v55
  %v420 = vunpack.c.l.b16 %v56
  %v421 = vunpack.c.l.b16 %v57
  %v422 = vunpack.c.l.b16 %v58
  %v423 = vunpack.c.l.b16 %v59
  %v424 = vunpack.c.l.b16 %v60
  %v425 = vunpack.c.l.b16 %v61
  %v426 = vunpack.c.l.b16 %v62
  %v427 = vunpack.c.l.b16 %v63
  %v428 = vunpack.c.l.b16 %v64
  %v429 = vunpack.c.l.b16 %v65
  %v430 = vunpack.c.l.b16 %v66
  %v431 = vunpack.c.l.b16 %v67
  %v432 = vunpack.c.l.b16 %v68
  %v433 = vunpack.c.l.b16 %v69
  %v434 = vunpack.c.l.b16 %v70
  %v435 = vunpack.c.l.b16 %v71
  %v436 = vunpack.c.l.b16 %v72
  %v437 = vunpack.c.l.b16 %v73
  %v438 = vunpack.c.l.b16 %v74
  %v439 = vunpack.c.l.b16 %v75
  %v440 = vunpack.c.l.b16 %v76
  %v441 = vunpack.c.l.b16 %v77
  %v442 = vunpack.c.l.b16 %v78
  %v443 = vunpack.c.l.b16 %v79
  %v444 = vunpack.c.l.b16 %v80
  %v445 = vunpack.c.l.b16 %v81
  %v446 = vunpack.c.l.b16 %v82
  %v447 = vunpack.c.l.b16 %v83
  %v448 = vunpack.c.l.b16 %v84
  %v449 = vunpack.c.l.b16 %v85
  %v450 = vunpack.c.l.b16 %v86
  %v451 = vunpack.c.l.b16 %v87
  %v452 = vunpack.c.l.b16 %v88
  %v453 = vunpack.c.l.b16 %v89
  %v454 = vunpack.c.l.b16 %v90
  %v455 = vunpack.c.l.b16 %v91
  %v456 = vunpack.c.l.b16 %v92
  %v457 = vunpack.c.l.b16 %v93
  %v458 = vunpack.c.l.b16 %v94
  %v459 = vunpack.c.l.b16 %v95
  %v460 = vunpack.c.l.b16 %v96
  %v461 = vunpack.c.l.b16 %v97
  %v462 = vunpack.c.l.b16 %v98
  %v463 = vunpack.c.l.b16 %v99
  %v464 = vunpack.c.l.b16 %v100
  %v465 = vunpack.c.l.b16 %v101
  %v466 = vunpack.c.l.b16 %v102
  %v467 = vunpack.c.l.b16 %v103
  %v468 = vunpack.c.l.b16 %v104
  %v469 = vunpack.c.l.b16 %v105
  %v470 = vunpack.c.l.b16 %v106
  %v471 = vunpack.c.l.b16 %v107
  %v472 = vunpack.c.l.b16 %v108
  %v473 = vunpack.c.l.b16 %v109
  %v474 = vunpack.c.l.b16 %v110
  %v475 = vunpack.c.l.b16 %v111
  %v476 = vunpack.c.l.b16 %v112
  %v477 = vunpack.c.l.b16 %v113
  %v478 = vunpack.c.l.b16 %v114
  %v479 = vpack.c.b16 %v380, %v379
  %v480 = vpack.c.b16 %v382, %v381
  %v481 = vpack.c.b16 %v384, %v383
  %v482 = vpack.c.b16 %v386, %v385
  %v483 = vpack.c.b16 %v388, %v387
  %v484 = vpack.c.b16 %v390, %v389
  %v485 = vpack.c.b16 %v392, %v391
  %v486 = vpack.c.b16 %v394, %v393
  %v487 = vpack.c.b16 %v396, %v395
  %v488 = vpack.c.b16 %v398, %v397
  %v489 = vpack.c.b16 %v400, %v399
  %v490 = vpack.c.b16 %v402, %v401
  %v491 = vpack.c.b16 %v404, %v403
  %v492 = vpack.c.b16 %v406, %v405
  %v493 = vpack.c.b16 %v408, %v407
  %v494 = vpack.c.b16 %v410, %v409
  %v495 = vpack.c.b16 %v412, %v411
  %v496 = vpack.c.b16 %v414, %v413
  %v497 = vpack.c.b16 %v416, %v415
  %v498 = vpack.c.b16 %v418, %v417
  %v499 = vpack.c.b16 %v420, %v419
  %v500 = vpack.c.b16 %v422, %v421
  %v501 = vpack.c.b16 %v424, %v423
  %v502 = vpack.c.b16 %v426, %v425
  %v503 = vpack.c.b16 %v428, %v427
  %v504 = vpack.c.b16 %v430, %v429
  %v505 = vpack.c.b16 %v432, %v431
  %v506 = vpack.c.b16 %v434, %v433
  %v507 = vpack.c.b16 %v436, %v435
  %v508 = vpack.c.b16 %v438, %v437
  %v509 = vpack.c.b16 %v440, %v439
  %v510 = vpack.c.b16 %v442, %v441
  %v511 = vpack.c.b16 %v444, %v443
  %v512 = vpack.c.b16 %v446, %v445
  %v513 = vpack.c.b16 %v448, %v447
  %v514 = vpack.c.b16 %v450, %v449
  %v515 = vpack.c.b16 %v452, %v451
  %v516 = vpack.c.b16 %v454, %v453
  %v517 = vpack.c.b16 %v456, %v455
  %v518 = vpack.c.b16 %v458, %v457
  %v519 = vpack.c.b16 %v460, %v459
  %v520 = vpack.c.b16 %v462, %v461
  %v521 = vpack.c.b16 %v464, %v463
  %v522 = vpack.c.b16 %v466, %v465
  %v523 = vpack.c.b16 %v468, %v467
  %v524 = vpack.c.b16 %v470, %v469
  %v525 = vpack.c.b16 %v472, %v471
  %v526 = vpack.c.b16 %v474, %v473
  %v527 = vpack.c.b16 %v476, %v475
  %v528 = vpack.c.b16 %v478, %v477
  %vm579 = vcmask 261120
  %v581 = vsel %vm579, %v233, 0
  %v584 = vsel %vm579, %v240, 0
  %v587 = vsel %vm579, %v247, 0
  %v590 = vsel %vm579, %v254, 0
  %592 = vmatprep.subr.bf16.mxu0 0
  %593 = vmatpush1.bf16.msra.mxu0 %v479
  %594 = vmatprep.subr.bf16.mxu0 0
  %595 = vmatpush1.bf16.msra.mxu0 %v480
  %596 = vmatprep.subr.bf16.mxu0 0
  %597 = vmatpush1.bf16.msra.mxu0 %v481
  %598 = vmatprep.subr.bf16.mxu0 0
  %599 = vmatpush1.bf16.msra.mxu0 %v482
  %600 = vmatprep.subr.bf16.mxu0 0
  %601 = vmatpush1.bf16.msra.mxu0 %v483
  %602 = vmatprep.subr.bf16.mxu0 0
  %603 = vmatpush1.bf16.msra.mxu0 %v484
  %604 = vmatprep.subr.bf16.mxu0 0
  %605 = vmatpush1.bf16.msra.mxu0 %v485
  %606 = vmatprep.subr.bf16.mxu0 0
  %607 = vmatpush1.bf16.msra.mxu0 %v486
  %608 = vmatprep.subr.bf16.mxu0 0
  %609 = vmatpush1.bf16.msra.mxu0 %v487
  %610 = vmatprep.subr.bf16.mxu0 0
  %611 = vmatpush1.bf16.msra.mxu0 %v488
  %612 = vmatprep.subr.bf16.mxu0 0
  %613 = vmatpush1.bf16.msra.mxu0 %v489
  %614 = vmatprep.subr.bf16.mxu0 0
  %615 = vmatpush1.bf16.msra.mxu0 %v490
  %616 = vmatprep.subr.bf16.mxu0 0
  %617 = vmatpush1.bf16.msra.mxu0 %v491
  %618 = vmatprep.subr.bf16.mxu0 0
  %619 = vmatpush1.bf16.msra.mxu0 %v492
  %620 = vmatprep.subr.bf16.mxu0 0
  %621 = vmatpush1.bf16.msra.mxu0 %v493
  %622 = vmatprep.subr.bf16.mxu0 0
  %623 = vmatpush1.bf16.msra.mxu0 %v494
  %624 = vmatprep.mubr.bf16.mxu0 %v228
  %625 = vmatmul.mubr.bf16.gmra.mrb[0].mxu0 %v227
  %v626 = vpop.f32.mrb[0].mxu0
  %v627 = vadd.f32 %v148, %v626
  %v628 = vpop.f32.mrb[0].mxu0
  %v629 = vpop.f32.mrb[0].mxu0
  %v630 = vadd.f32 %v148, %v629
  %v631 = vpop.f32.mrb[0].mxu0
  %632 = vmatprep.mubr.bf16.mxu0 %v235
  %633 = vmatmul.mubr.bf16.gmra.mrb[0].mxu0 %v234
  %v634 = vpop.f32.mrb[0].mxu0
  %v635 = vadd.f32 %v148, %v634
  %v636 = vpop.f32.mrb[0].mxu0
  %v637 = vpop.f32.mrb[0].mxu0
  %v638 = vadd.f32 %v148, %v637
  %v639 = vpop.f32.mrb[0].mxu0
  %640 = vmatprep.mubr.bf16.mxu0 %v242
  %641 = vmatmul.mubr.bf16.gmra.mrb[0].mxu0 %v241
  %v642 = vpop.f32.mrb[0].mxu0
  %v643 = vadd.f32 %v148, %v642
  %v644 = vpop.f32.mrb[0].mxu0
  %v645 = vpop.f32.mrb[0].mxu0
  %v646 = vadd.f32 %v148, %v645
  %v647 = vpop.f32.mrb[0].mxu0
  %648 = vmatprep.mubr.bf16.mxu0 %v249
  %649 = vmatmul.mubr.bf16.gmra.mrb[0].mxu0 %v248
  %v650 = vpop.f32.mrb[0].mxu0
  %v651 = vadd.f32 %v148, %v650
  %v652 = vpop.f32.mrb[0].mxu0
  %v653 = vpop.f32.mrb[0].mxu0
  %v654 = vpop.f32.mrb[0].mxu0
  %655 = vdwg.mxu0
  %656 = vmatprep.subr.bf16.mxu0 0
  %657 = vmatpush1.bf16.msra.mxu0 %v495
  %658 = vmatprep.subr.bf16.mxu0 0
  %659 = vmatpush1.bf16.msra.mxu0 %v496
  %660 = vmatprep.subr.bf16.mxu0 0
  %661 = vmatpush1.bf16.msra.mxu0 %v497
  %662 = vmatprep.subr.bf16.mxu0 0
  %663 = vmatpush1.bf16.msra.mxu0 %v498
  %664 = vmatprep.subr.bf16.mxu0 0
  %665 = vmatpush1.bf16.msra.mxu0 %v499
  %666 = vmatprep.subr.bf16.mxu0 0
  %667 = vmatpush1.bf16.msra.mxu0 %v500
  %668 = vmatprep.subr.bf16.mxu0 0
  %669 = vmatpush1.bf16.msra.mxu0 %v501
  %670 = vmatprep.subr.bf16.mxu0 0
  %671 = vmatpush1.bf16.msra.mxu0 %v502
  %672 = vmatprep.subr.bf16.mxu0 0
  %673 = vmatpush1.bf16.msra.mxu0 %v503
  %674 = vmatprep.subr.bf16.mxu0 0
  %675 = vmatpush1.bf16.msra.mxu0 %v504
  %676 = vmatprep.subr.bf16.mxu0 0
  %677 = vmatpush1.bf16.msra.mxu0 %v505
  %678 = vmatprep.subr.bf16.mxu0 0
  %679 = vmatpush1.bf16.msra.mxu0 %v506
  %680 = vmatprep.subr.bf16.mxu0 0
  %681 = vmatpush1.bf16.msra.mxu0 %v507
  %682 = vmatprep.subr.bf16.mxu0 0
  %683 = vmatpush1.bf16.msra.mxu0 %v508
  %684 = vmatprep.subr.bf16.mxu0 0
  %685 = vmatpush1.bf16.msra.mxu0 %v509
  %686 = vmatprep.subr.bf16.mxu0 0
  %687 = vmatpush1.bf16.msra.mxu0 %v510
  %688 = vmatprep.mubr.bf16.mxu0 %v230
  %689 = vmatmul.mubr.bf16.gmra.mrb[0].mxu0 %v229
  %v690 = vpop.f32.mrb[0].mxu0
  %v691 = vadd.f32 %v627, %v690
  %v692 = vpop.f32.mrb[0].mxu0
  %v693 = vpop.f32.mrb[0].mxu0
  %v694 = vadd.f32 %v630, %v693
  %v695 = vpop.f32.mrb[0].mxu0
  %696 = vmatprep.mubr.bf16.mxu0 %v237
  %697 = vmatmul.mubr.bf16.gmra.mrb[0].mxu0 %v236
  %v698 = vpop.f32.mrb[0].mxu0
  %v699 = vadd.f32 %v635, %v698
  %v700 = vpop.f32.mrb[0].mxu0
  %v701 = vpop.f32.mrb[0].mxu0
  %v702 = vadd.f32 %v638, %v701
  %v703 = vpop.f32.mrb[0].mxu0
  %704 = vmatprep.mubr.bf16.mxu0 %v244
  %705 = vmatmul.mubr.bf16.gmra.mrb[0].mxu0 %v243
  %v706 = vpop.f32.mrb[0].mxu0
  %v707 = vadd.f32 %v643, %v706
  %v708 = vpop.f32.mrb[0].mxu0
  %v709 = vpop.f32.mrb[0].mxu0
  %v710 = vadd.f32 %v646, %v709
  %v711 = vpop.f32.mrb[0].mxu0
  %712 = vmatprep.mubr.bf16.mxu0 %v251
  %713 = vmatmul.mubr.bf16.gmra.mrb[0].mxu0 %v250
  %v714 = vpop.f32.mrb[0].mxu0
  %v715 = vadd.f32 %v651, %v714
  %v716 = vpop.f32.mrb[0].mxu0
  %v717 = vpop.f32.mrb[0].mxu0
  %v718 = vpop.f32.mrb[0].mxu0
  %719 = vdwg.mxu0
  %720 = vmatprep.subr.bf16.mxu0 0
  %721 = vmatpush1.bf16.msra.mxu0 %v511
  %722 = vmatprep.subr.bf16.mxu0 0
  %723 = vmatpush1.bf16.msra.mxu0 %v512
  %724 = vmatprep.subr.bf16.mxu0 0
  %725 = vmatpush1.bf16.msra.mxu0 %v513
  %726 = vmatprep.subr.bf16.mxu0 0
  %727 = vmatpush1.bf16.msra.mxu0 %v514
  %728 = vmatprep.subr.bf16.mxu0 0
  %729 = vmatpush1.bf16.msra.mxu0 %v515
  %730 = vmatprep.subr.bf16.mxu0 0
  %731 = vmatpush1.bf16.msra.mxu0 %v516
  %732 = vmatprep.subr.bf16.mxu0 0
  %733 = vmatpush1.bf16.msra.mxu0 %v517
  %734 = vmatprep.subr.bf16.mxu0 0
  %735 = vmatpush1.bf16.msra.mxu0 %v518
  %736 = vmatprep.subr.bf16.mxu0 0
  %737 = vmatpush1.bf16.msra.mxu0 %v519
  %738 = vmatprep.subr.bf16.mxu0 0
  %739 = vmatpush1.bf16.msra.mxu0 %v520
  %740 = vmatprep.subr.bf16.mxu0 0
  %741 = vmatpush1.bf16.msra.mxu0 %v521
  %742 = vmatprep.subr.bf16.mxu0 0
  %743 = vmatpush1.bf16.msra.mxu0 %v522
  %744 = vmatprep.subr.bf16.mxu0 0
  %745 = vmatpush1.bf16.msra.mxu0 %v523
  %746 = vmatprep.subr.bf16.mxu0 0
  %747 = vmatpush1.bf16.msra.mxu0 %v524
  %748 = vmatprep.subr.bf16.mxu0 0
  %749 = vmatpush1.bf16.msra.mxu0 %v525
  %750 = vmatprep.subr.bf16.mxu0 0
  %751 = vmatpush1.bf16.msra.mxu0 %v526
  %752 = vmatprep.mubr.bf16.mxu0 %v232
  %753 = vmatmul.mubr.bf16.gmra.mrb[0].mxu0 %v231
  %v754 = vpop.f32.mrb[0].mxu0
  %v755 = vadd.f32 %v691, %v754
  %v756 = vpop.f32.mrb[0].mxu0
  %v757 = vpop.f32.mrb[0].mxu0
  %v758 = vadd.f32 %v694, %v757
  %v759 = vpop.f32.mrb[0].mxu0
  %760 = vmatprep.mubr.bf16.mxu0 %v239
  %761 = vmatmul.mubr.bf16.gmra.mrb[0].mxu0 %v238
  %v762 = vpop.f32.mrb[0].mxu0
  %v763 = vadd.f32 %v699, %v762
  %v764 = vpop.f32.mrb[0].mxu0
  %v765 = vpop.f32.mrb[0].mxu0
  %v766 = vadd.f32 %v702, %v765
  %v767 = vpop.f32.mrb[0].mxu0
  %768 = vmatprep.mubr.bf16.mxu0 %v246
  %769 = vmatmul.mubr.bf16.gmra.mrb[0].mxu0 %v245
  %v770 = vpop.f32.mrb[0].mxu0
  %v771 = vadd.f32 %v707, %v770
  %v772 = vpop.f32.mrb[0].mxu0
  %v773 = vpop.f32.mrb[0].mxu0
  %v774 = vadd.f32 %v710, %v773
  %v775 = vpop.f32.mrb[0].mxu0
  %776 = vmatprep.mubr.bf16.mxu0 %v253
  %777 = vmatmul.mubr.bf16.gmra.mrb[0].mxu0 %v252
  %v778 = vpop.f32.mrb[0].mxu0
  %v779 = vadd.f32 %v715, %v778
  %v780 = vpop.f32.mrb[0].mxu0
  %v781 = vpop.f32.mrb[0].mxu0
  %v782 = vpop.f32.mrb[0].mxu0
  %783 = vdwg.mxu0
  %784 = vmatprep.subr.bf16.mxu0 0
  %785 = vmatpush1.bf16.msra.mxu0 %v527
  %786 = vmatprep.subr.bf16.mxu0 0
  %787 = vmatpush1.bf16.msra.mxu0 %v528
  %788 = vmatprep.subr.bf16.mxu0 0
  %789 = vmatpush1.bf16.msra.mxu0 0
  %790 = vmatprep.subr.bf16.mxu0 0
  %791 = vmatpush1.bf16.msra.mxu0 0
  %792 = vmatprep.subr.bf16.mxu0 0
  %793 = vmatpush1.bf16.msra.mxu0 0
  %794 = vmatprep.subr.bf16.mxu0 0
  %795 = vmatpush1.bf16.msra.mxu0 0
  %796 = vmatprep.subr.bf16.mxu0 0
  %797 = vmatpush1.bf16.msra.mxu0 0
  %798 = vmatprep.subr.bf16.mxu0 0
  %799 = vmatpush1.bf16.msra.mxu0 0
  %800 = vmatprep.subr.bf16.mxu0 0
  %801 = vmatpush1.bf16.msra.mxu0 0
  %802 = vmatprep.subr.bf16.mxu0 0
  %803 = vmatpush1.bf16.msra.mxu0 0
  %804 = vmatprep.subr.bf16.mxu0 0
  %805 = vmatpush1.bf16.msra.mxu0 0
  %806 = vmatprep.subr.bf16.mxu0 0
  %807 = vmatpush1.bf16.msra.mxu0 0
  %808 = vmatprep.subr.bf16.mxu0 0
  %809 = vmatpush1.bf16.msra.mxu0 0
  %810 = vmatprep.subr.bf16.mxu0 0
  %811 = vmatpush1.bf16.msra.mxu0 0
  %812 = vmatprep.subr.bf16.mxu0 0
  %813 = vmatpush1.bf16.msra.mxu0 0
  %814 = vmatprep.subr.bf16.mxu0 0
  %815 = vmatpush1.bf16.msra.mxu0 0
  %816 = vmatprep.mubr.bf16.mxu0 0
  %817 = vmatmul.mubr.bf16.gmra.mrb[0].mxu0 %v581
  %v818 = vpop.f32.mrb[0].mxu0
  %v819 = vadd.f32 %v755, %v818
  %v820 = vpop.f32.mrb[0].mxu0
  %v821 = vpop.f32.mrb[0].mxu0
  %v822 = vadd.f32 %v758, %v821
  %v823 = vpop.f32.mrb[0].mxu0
  %824 = vmatprep.mubr.bf16.mxu0 0
  %825 = vmatmul.mubr.bf16.gmra.mrb[0].mxu0 %v584
  %v826 = vpop.f32.mrb[0].mxu0
  %v827 = vadd.f32 %v763, %v826
  %v828 = vpop.f32.mrb[0].mxu0
  %v829 = vpop.f32.mrb[0].mxu0
  %v830 = vadd.f32 %v766, %v829
  %v831 = vpop.f32.mrb[0].mxu0
  %832 = vmatprep.mubr.bf16.mxu0 0
  %833 = vmatmul.mubr.bf16.gmra.mrb[0].mxu0 %v587
  %v834 = vpop.f32.mrb[0].mxu0
  %v835 = vadd.f32 %v771, %v834
  %v836 = vpop.f32.mrb[0].mxu0
  %v837 = vpop.f32.mrb[0].mxu0
  %v838 = vadd.f32 %v774, %v837
  %v839 = vpop.f32.mrb[0].mxu0
  %840 = vmatprep.mubr.bf16.mxu0 0
  %841 = vmatmul.mubr.bf16.gmra.mrb[0].mxu0 %v590
  %v842 = vpop.f32.mrb[0].mxu0
  %v843 = vadd.f32 %v779, %v842
  %v844 = vpop.f32.mrb[0].mxu0
  %v845 = vpop.f32.mrb[0].mxu0
  %v846 = vpop.f32.mrb[0].mxu0
  %847 = vdwg.mxu0
  %v848 = vmax.f32 %v819, 0.0
  %v849 = vmax.f32 %v822, 0.0
  %v850 = vmax.f32 %v827, 0.0
  %v851 = vmax.f32 %v830, 0.0
  %v852 = vmax.f32 %v835, 0.0
  %v853 = vmax.f32 %v838, 0.0
  %v854 = vmax.f32 %v843, 0.0
  %s855 = scalar_lea.vmem %s0, 196
  %v856 = vld [vmem:[%s855] sm:$0xff]
  %v857 = vld [vmem:[%s855 + $0x8] sm:$0xff]
  %v858 = vld [vmem:[%s855 + $0x10] sm:$0xff]
  %v859 = vld [vmem:[%s855 + $0x18] sm:$0xf]
  %v860 = vld [vmem:[%s855 + $0x1c] sm:$0xff]
  %v861 = vld [vmem:[%s855 + $0x24] sm:$0xff]
  %v862 = vld [vmem:[%s855 + $0x2c] sm:$0xff]
  %v863 = vld [vmem:[%s855 + $0x34] sm:$0xf]
  %v864 = vld [vmem:[%s855 + $0x38] sm:$0xff]
  %v865 = vld [vmem:[%s855 + $0x40] sm:$0xff]
  %v866 = vld [vmem:[%s855 + $0x48] sm:$0xff]
  %v867 = vld [vmem:[%s855 + $0x50] sm:$0xf]
  %v868 = vld [vmem:[%s855 + $0x54] sm:$0xff]
  %v869 = vld [vmem:[%s855 + $0x5c] sm:$0xff]
  %v870 = vld [vmem:[%s855 + $0x64] sm:$0xff]
  %v871 = vld [vmem:[%s855 + $0x6c] sm:$0xf]
  %v872 = vld [vmem:[%s855 + $0x70] sm:$0xff]
  %v873 = vld [vmem:[%s855 + $0x78] sm:$0xff]
  %v874 = vld [vmem:[%s855 + $0x80] sm:$0xff]
  %v875 = vld [vmem:[%s855 + $0x88] sm:$0xf]
  %v876 = vld [vmem:[%s855 + $0x8c] sm:$0xff]
  %v877 = vld [vmem:[%s855 + $0x94] sm:$0xff]
  %v878 = vld [vmem:[%s855 + $0x9c] sm:$0xff]
  %v879 = vld [vmem:[%s855 + $0xa4] sm:$0xf]
  %v880 = vld [vmem:[%s855 + $0xa8] sm:$0x11]
  %v881 = vld [vmem:[%s855 + $0xb0] sm:$0x11]
  %v882 = vld [vmem:[%s855 + $0xb8] sm:$0x11]
  %v883 = vld [vmem:[%s855 + $0xc0] sm:$0x1]
  %v912 = vunpack.c.l.b16 %v856
  %v913 = vunpack.c.h.b16 %v856
  %v914 = vunpack.c.l.b16 %v857
  %v915 = vunpack.c.h.b16 %v857
  %v916 = vunpack.c.l.b16 %v858
  %v917 = vunpack.c.h.b16 %v858
  %v918 = vunpack.c.l.b16 %v859
  %v919 = vunpack.c.l.b16 %v860
  %v920 = vunpack.c.h.b16 %v860
  %v921 = vunpack.c.l.b16 %v861
  %v922 = vunpack.c.h.b16 %v861
  %v923 = vunpack.c.l.b16 %v862
  %v924 = vunpack.c.h.b16 %v862
  %v925 = vunpack.c.l.b16 %v863
  %v926 = vunpack.c.l.b16 %v864
  %v927 = vunpack.c.h.b16 %v864
  %v928 = vunpack.c.l.b16 %v865
  %v929 = vunpack.c.h.b16 %v865
  %v930 = vunpack.c.l.b16 %v866
  %v931 = vunpack.c.h.b16 %v866
  %v932 = vunpack.c.l.b16 %v867
  %v933 = vunpack.c.l.b16 %v868
  %v934 = vunpack.c.h.b16 %v868
  %v935 = vunpack.c.l.b16 %v869
  %v936 = vunpack.c.h.b16 %v869
  %v937 = vunpack.c.l.b16 %v870
  %v938 = vunpack.c.h.b16 %v870
  %v939 = vunpack.c.l.b16 %v871
  %v940 = vunpack.c.l.b16 %v872
  %v941 = vunpack.c.h.b16 %v872
  %v942 = vunpack.c.l.b16 %v873
  %v943 = vunpack.c.h.b16 %v873
  %v944 = vunpack.c.l.b16 %v874
  %v945 = vunpack.c.h.b16 %v874
  %v946 = vunpack.c.l.b16 %v875
  %v947 = vunpack.c.l.b16 %v876
  %v948 = vunpack.c.h.b16 %v876
  %v949 = vunpack.c.l.b16 %v877
  %v950 = vunpack.c.h.b16 %v877
  %v951 = vunpack.c.l.b16 %v878
  %v952 = vunpack.c.h.b16 %v878
  %v953 = vunpack.c.l.b16 %v879
  %v954 = vunpack.c.l.b16 %v880
  %v955 = vunpack.c.h.b16 %v880
  %v956 = vunpack.c.l.b16 %v881
  %v957 = vunpack.c.h.b16 %v881
  %v958 = vunpack.c.l.b16 %v882
  %v959 = vunpack.c.h.b16 %v882
  %v960 = vunpack.c.l.b16 %v883
  %v961 = vpack.c.b16 %v919, %v912
  %v962 = vpack.c.b16 %v920, %v913
  %v963 = vpack.c.b16 %v921, %v914
  %v964 = vpack.c.b16 %v922, %v915
  %v965 = vpack.c.b16 %v923, %v916
  %v966 = vpack.c.b16 %v924, %v917
  %v967 = vpack.c.b16 %v925, %v918
  %v968 = vpack.c.b16 %v933, %v926
  %v969 = vpack.c.b16 %v934, %v927
  %v970 = vpack.c.b16 %v935, %v928
  %v971 = vpack.c.b16 %v936, %v929
  %v972 = vpack.c.b16 %v937, %v930
  %v973 = vpack.c.b16 %v938, %v931
  %v974 = vpack.c.b16 %v939, %v932
  %v975 = vpack.c.b16 %v947, %v940
  %v976 = vpack.c.b16 %v948, %v941
  %v977 = vpack.c.b16 %v949, %v942
  %v978 = vpack.c.b16 %v950, %v943
  %v979 = vpack.c.b16 %v951, %v944
  %v980 = vpack.c.b16 %v952, %v945
  %v981 = vpack.c.b16 %v953, %v946
  %v982 = vpack.c.b16 %v954, %v954
  %v983 = vpack.c.b16 %v955, %v955
  %v984 = vpack.c.b16 %v956, %v956
  %v985 = vpack.c.b16 %v957, %v957
  %v986 = vpack.c.b16 %v958, %v958
  %v987 = vpack.c.b16 %v959, %v959
  %v988 = vpack.c.b16 %v960, %v960
  %v1014 = vsel %vm579, %v967, 0
  %v1017 = vsel %vm579, %v974, 0
  %v1020 = vsel %vm579, %v981, 0
  %v1023 = vsel %vm579, %v988, 0
  %1025 = vmatprep.subr.bf16.mxu0 0
  %1026 = vmatpush1.bf16.msra.mxu0 %v479
  %1027 = vmatprep.subr.bf16.mxu0 0
  %1028 = vmatpush1.bf16.msra.mxu0 %v480
  %1029 = vmatprep.subr.bf16.mxu0 0
  %1030 = vmatpush1.bf16.msra.mxu0 %v481
  %1031 = vmatprep.subr.bf16.mxu0 0
  %1032 = vmatpush1.bf16.msra.mxu0 %v482
  %1033 = vmatprep.subr.bf16.mxu0 0
  %1034 = vmatpush1.bf16.msra.mxu0 %v483
  %1035 = vmatprep.subr.bf16.mxu0 0
  %1036 = vmatpush1.bf16.msra.mxu0 %v484
  %1037 = vmatprep.subr.bf16.mxu0 0
  %1038 = vmatpush1.bf16.msra.mxu0 %v485
  %1039 = vmatprep.subr.bf16.mxu0 0
  %1040 = vmatpush1.bf16.msra.mxu0 %v486
  %1041 = vmatprep.subr.bf16.mxu0 0
  %1042 = vmatpush1.bf16.msra.mxu0 %v487
  %1043 = vmatprep.subr.bf16.mxu0 0
  %1044 = vmatpush1.bf16.msra.mxu0 %v488
  %1045 = vmatprep.subr.bf16.mxu0 0
  %1046 = vmatpush1.bf16.msra.mxu0 %v489
  %1047 = vmatprep.subr.bf16.mxu0 0
  %1048 = vmatpush1.bf16.msra.mxu0 %v490
  %1049 = vmatprep.subr.bf16.mxu0 0
  %1050 = vmatpush1.bf16.msra.mxu0 %v491
  %1051 = vmatprep.subr.bf16.mxu0 0
  %1052 = vmatpush1.bf16.msra.mxu0 %v492
  %1053 = vmatprep.subr.bf16.mxu0 0
  %1054 = vmatpush1.bf16.msra.mxu0 %v493
  %1055 = vmatprep.subr.bf16.mxu0 0
  %1056 = vmatpush1.bf16.msra.mxu0 %v494
  %1057 = vmatprep.mubr.bf16.mxu0 %v962
  %1058 = vmatmul.mubr.bf16.gmra.mrb[0].mxu0 %v961
  %v1059 = vpop.f32.mrb[0].mxu0
  %v1060 = vadd.f32 %v148, %v1059
  %v1061 = vpop.f32.mrb[0].mxu0
  %v1062 = vpop.f32.mrb[0].mxu0
  %v1063 = vadd.f32 %v148, %v1062
  %v1064 = vpop.f32.mrb[0].mxu0
  %1065 = vmatprep.mubr.bf16.mxu0 %v969
  %1066 = vmatmul.mubr.bf16.gmra.mrb[0].mxu0 %v968
  %v1067 = vpop.f32.mrb[0].mxu0
  %v1068 = vadd.f32 %v148, %v1067
  %v1069 = vpop.f32.mrb[0].mxu0
  %v1070 = vpop.f32.mrb[0].mxu0
  %v1071 = vadd.f32 %v148, %v1070
  %v1072 = vpop.f32.mrb[0].mxu0
  %1073 = vmatprep.mubr.bf16.mxu0 %v976
  %1074 = vmatmul.mubr.bf16.gmra.mrb[0].mxu0 %v975
  %v1075 = vpop.f32.mrb[0].mxu0
  %v1076 = vadd.f32 %v148, %v1075
  %v1077 = vpop.f32.mrb[0].mxu0
  %v1078 = vpop.f32.mrb[0].mxu0
  %v1079 = vadd.f32 %v148, %v1078
  %v1080 = vpop.f32.mrb[0].mxu0
  %1081 = vmatprep.mubr.bf16.mxu0 %v983
  %1082 = vmatmul.mubr.bf16.gmra.mrb[0].mxu0 %v982
  %v1083 = vpop.f32.mrb[0].mxu0
  %v1084 = vadd.f32 %v148, %v1083
  %v1085 = vpop.f32.mrb[0].mxu0
  %v1086 = vpop.f32.mrb[0].mxu0
  %v1087 = vpop.f32.mrb[0].mxu0
  %1088 = vdwg.mxu0
  %1089 = vmatprep.subr.bf16.mxu0 0
  %1090 = vmatpush1.bf16.msra.mxu0 %v495
  %1091 = vmatprep.subr.bf16.mxu0 0
  %1092 = vmatpush1.bf16.msra.mxu0 %v496
  %1093 = vmatprep.subr.bf16.mxu0 0
  %1094 = vmatpush1.bf16.msra.mxu0 %v497
  %1095 = vmatprep.subr.bf16.mxu0 0
  %1096 = vmatpush1.bf16.msra.mxu0 %v498
  %1097 = vmatprep.subr.bf16.mxu0 0
  %1098 = vmatpush1.bf16.msra.mxu0 %v499
  %1099 = vmatprep.subr.bf16.mxu0 0
  %1100 = vmatpush1.bf16.msra.mxu0 %v500
  %1101 = vmatprep.subr.bf16.mxu0 0
  %1102 = vmatpush1.bf16.msra.mxu0 %v501
  %1103 = vmatprep.subr.bf16.mxu0 0
  %1104 = vmatpush1.bf16.msra.mxu0 %v502
  %1105 = vmatprep.subr.bf16.mxu0 0
  %1106 = vmatpush1.bf16.msra.mxu0 %v503
  %1107 = vmatprep.subr.bf16.mxu0 0
  %1108 = vmatpush1.bf16.msra.mxu0 %v504
  %1109 = vmatprep.subr.bf16.mxu0 0
  %1110 = vmatpush1.bf16.msra.mxu0 %v505
  %1111 = vmatprep.subr.bf16.mxu0 0
  %1112 = vmatpush1.bf16.msra.mxu0 %v506
  %1113 = vmatprep.subr.bf16.mxu0 0
  %1114 = vmatpush1.bf16.msra.mxu0 %v507
  %1115 = vmatprep.subr.bf16.mxu0 0
  %1116 = vmatpush1.bf16.msra.mxu0 %v508
  %1117 = vmatprep.subr.bf16.mxu0 0
  %1118 = vmatpush1.bf16.msra.mxu0 %v509
  %1119 = vmatprep.subr.bf16.mxu0 0
  %1120 = vmatpush1.bf16.msra.mxu0 %v510
  %1121 = vmatprep.mubr.bf16.mxu0 %v964
  %1122 = vmatmul.mubr.bf16.gmra.mrb[0].mxu0 %v963
  %v1123 = vpop.f32.mrb[0].mxu0
  %v1124 = vadd.f32 %v1060, %v1123
  %v1125 = vpop.f32.mrb[0].mxu0
  %v1126 = vpop.f32.mrb[0].mxu0
  %v1127 = vadd.f32 %v1063, %v1126
  %v1128 = vpop.f32.mrb[0].mxu0
  %1129 = vmatprep.mubr.bf16.mxu0 %v971
  %1130 = vmatmul.mubr.bf16.gmra.mrb[0].mxu0 %v970
  %v1131 = vpop.f32.mrb[0].mxu0
  %v1132 = vadd.f32 %v1068, %v1131
  %v1133 = vpop.f32.mrb[0].mxu0
  %v1134 = vpop.f32.mrb[0].mxu0
  %v1135 = vadd.f32 %v1071, %v1134
  %v1136 = vpop.f32.mrb[0].mxu0
  %1137 = vmatprep.mubr.bf16.mxu0 %v978
  %1138 = vmatmul.mubr.bf16.gmra.mrb[0].mxu0 %v977
  %v1139 = vpop.f32.mrb[0].mxu0
  %v1140 = vadd.f32 %v1076, %v1139
  %v1141 = vpop.f32.mrb[0].mxu0
  %v1142 = vpop.f32.mrb[0].mxu0
  %v1143 = vadd.f32 %v1079, %v1142
  %v1144 = vpop.f32.mrb[0].mxu0
  %1145 = vmatprep.mubr.bf16.mxu0 %v985
  %1146 = vmatmul.mubr.bf16.gmra.mrb[0].mxu0 %v984
  %v1147 = vpop.f32.mrb[0].mxu0
  %v1148 = vadd.f32 %v1084, %v1147
  %v1149 = vpop.f32.mrb[0].mxu0
  %v1150 = vpop.f32.mrb[0].mxu0
  %v1151 = vpop.f32.mrb[0].mxu0
  %1152 = vdwg.mxu0
  %1153 = vmatprep.subr.bf16.mxu0 0
  %1154 = vmatpush1.bf16.msra.mxu0 %v511
  %1155 = vmatprep.subr.bf16.mxu0 0
  %1156 = vmatpush1.bf16.msra.mxu0 %v512
  %1157 = vmatprep.subr.bf16.mxu0 0
  %1158 = vmatpush1.bf16.msra.mxu0 %v513
  %1159 = vmatprep.subr.bf16.mxu0 0
  %1160 = vmatpush1.bf16.msra.mxu0 %v514
  %1161 = vmatprep.subr.bf16.mxu0 0
  %1162 = vmatpush1.bf16.msra.mxu0 %v515
  %1163 = vmatprep.subr.bf16.mxu0 0
  %1164 = vmatpush1.bf16.msra.mxu0 %v516
  %1165 = vmatprep.subr.bf16.mxu0 0
  %1166 = vmatpush1.bf16.msra.mxu0 %v517
  %1167 = vmatprep.subr.bf16.mxu0 0
  %1168 = vmatpush1.bf16.msra.mxu0 %v518
  %1169 = vmatprep.subr.bf16.mxu0 0
  %1170 = vmatpush1.bf16.msra.mxu0 %v519
  %1171 = vmatprep.subr.bf16.mxu0 0
  %1172 = vmatpush1.bf16.msra.mxu0 %v520
  %1173 = vmatprep.subr.bf16.mxu0 0
  %1174 = vmatpush1.bf16.msra.mxu0 %v521
  %1175 = vmatprep.subr.bf16.mxu0 0
  %1176 = vmatpush1.bf16.msra.mxu0 %v522
  %1177 = vmatprep.subr.bf16.mxu0 0
  %1178 = vmatpush1.bf16.msra.mxu0 %v523
  %1179 = vmatprep.subr.bf16.mxu0 0
  %1180 = vmatpush1.bf16.msra.mxu0 %v524
  %1181 = vmatprep.subr.bf16.mxu0 0
  %1182 = vmatpush1.bf16.msra.mxu0 %v525
  %1183 = vmatprep.subr.bf16.mxu0 0
  %1184 = vmatpush1.bf16.msra.mxu0 %v526
  %1185 = vmatprep.mubr.bf16.mxu0 %v966
  %1186 = vmatmul.mubr.bf16.gmra.mrb[0].mxu0 %v965
  %v1187 = vpop.f32.mrb[0].mxu0
  %v1188 = vadd.f32 %v1124, %v1187
  %v1189 = vpop.f32.mrb[0].mxu0
  %v1190 = vpop.f32.mrb[0].mxu0
  %v1191 = vadd.f32 %v1127, %v1190
  %v1192 = vpop.f32.mrb[0].mxu0
  %1193 = vmatprep.mubr.bf16.mxu0 %v973
  %1194 = vmatmul.mubr.bf16.gmra.mrb[0].mxu0 %v972
  %v1195 = vpop.f32.mrb[0].mxu0
  %v1196 = vadd.f32 %v1132, %v1195
  %v1197 = vpop.f32.mrb[0].mxu0
  %v1198 = vpop.f32.mrb[0].mxu0
  %v1199 = vadd.f32 %v1135, %v1198
  %v1200 = vpop.f32.mrb[0].mxu0
  %1201 = vmatprep.mubr.bf16.mxu0 %v980
  %1202 = vmatmul.mubr.bf16.gmra.mrb[0].mxu0 %v979
  %v1203 = vpop.f32.mrb[0].mxu0
  %v1204 = vadd.f32 %v1140, %v1203
  %v1205 = vpop.f32.mrb[0].mxu0
  %v1206 = vpop.f32.mrb[0].mxu0
  %v1207 = vadd.f32 %v1143, %v1206
  %v1208 = vpop.f32.mrb[0].mxu0
  %1209 = vmatprep.mubr.bf16.mxu0 %v987
  %1210 = vmatmul.mubr.bf16.gmra.mrb[0].mxu0 %v986
  %v1211 = vpop.f32.mrb[0].mxu0
  %v1212 = vadd.f32 %v1148, %v1211
  %v1213 = vpop.f32.mrb[0].mxu0
  %v1214 = vpop.f32.mrb[0].mxu0
  %v1215 = vpop.f32.mrb[0].mxu0
  %1216 = vdwg.mxu0
  %1217 = vmatprep.subr.bf16.mxu0 0
  %1218 = vmatpush1.bf16.msra.mxu0 %v527
  %1219 = vmatprep.subr.bf16.mxu0 0
  %1220 = vmatpush1.bf16.msra.mxu0 %v528
  %1221 = vmatprep.subr.bf16.mxu0 0
  %1222 = vmatpush1.bf16.msra.mxu0 0
  %1223 = vmatprep.subr.bf16.mxu0 0
  %1224 = vmatpush1.bf16.msra.mxu0 0
  %1225 = vmatprep.subr.bf16.mxu0 0
  %1226 = vmatpush1.bf16.msra.mxu0 0
  %1227 = vmatprep.subr.bf16.mxu0 0
  %1228 = vmatpush1.bf16.msra.mxu0 0
  %1229 = vmatprep.subr.bf16.mxu0 0
  %1230 = vmatpush1.bf16.msra.mxu0 0
  %1231 = vmatprep.subr.bf16.mxu0 0
  %1232 = vmatpush1.bf16.msra.mxu0 0
  %1233 = vmatprep.subr.bf16.mxu0 0
  %1234 = vmatpush1.bf16.msra.mxu0 0
  %1235 = vmatprep.subr.bf16.mxu0 0
  %1236 = vmatpush1.bf16.msra.mxu0 0
  %1237 = vmatprep.subr.bf16.mxu0 0
  %1238 = vmatpush1.bf16.msra.mxu0 0
  %1239 = vmatprep.subr.bf16.mxu0 0
  %1240 = vmatpush1.bf16.msra.mxu0 0
  %1241 = vmatprep.subr.bf16.mxu0 0
  %1242 = vmatpush1.bf16.msra.mxu0 0
  %1243 = vmatprep.subr.bf16.mxu0 0
  %1244 = vmatpush1.bf16.msra.mxu0 0
  %1245 = vmatprep.subr.bf16.mxu0 0
  %1246 = vmatpush1.bf16.msra.mxu0 0
  %1247 = vmatprep.subr.bf16.mxu0 0
  %1248 = vmatpush1.bf16.msra.mxu0 0
  %1249 = vmatprep.mubr.bf16.mxu0 0
  %1250 = vmatmul.mubr.bf16.gmra.mrb[0].mxu0 %v1014
  %v1251 = vpop.f32.mrb[0].mxu0
  %v1252 = vadd.f32 %v1188, %v1251
  %v1253 = vpop.f32.mrb[0].mxu0
  %v1254 = vpop.f32.mrb[0].mxu0
  %v1255 = vadd.f32 %v1191, %v1254
  %v1256 = vpop.f32.mrb[0].mxu0
  %1257 = vmatprep.mubr.bf16.mxu0 0
  %1258 = vmatmul.mubr.bf16.gmra.mrb[0].mxu0 %v1017
  %v1259 = vpop.f32.mrb[0].mxu0
  %v1260 = vadd.f32 %v1196, %v1259
  %v1261 = vpop.f32.mrb[0].mxu0
  %v1262 = vpop.f32.mrb[0].mxu0
  %v1263 = vadd.f32 %v1199, %v1262
  %v1264 = vpop.f32.mrb[0].mxu0
  %1265 = vmatprep.mubr.bf16.mxu0 0
  %1266 = vmatmul.mubr.bf16.gmra.mrb[0].mxu0 %v1020
  %v1267 = vpop.f32.mrb[0].mxu0
  %v1268 = vadd.f32 %v1204, %v1267
  %v1269 = vpop.f32.mrb[0].mxu0
  %v1270 = vpop.f32.mrb[0].mxu0
  %v1271 = vadd.f32 %v1207, %v1270
  %v1272 = vpop.f32.mrb[0].mxu0
  %1273 = vmatprep.mubr.bf16.mxu0 0
  %1274 = vmatmul.mubr.bf16.gmra.mrb[0].mxu0 %v1023
  %v1275 = vpop.f32.mrb[0].mxu0
  %v1276 = vadd.f32 %v1212, %v1275
  %v1277 = vpop.f32.mrb[0].mxu0
  %v1278 = vpop.f32.mrb[0].mxu0
  %v1279 = vpop.f32.mrb[0].mxu0
  %1280 = vdwg.mxu0
  %v1281 = vmax.f32 %v1252, 0.0
  %v1282 = vmax.f32 %v1255, 0.0
  %v1283 = vmax.f32 %v1260, 0.0
  %v1284 = vmax.f32 %v1263, 0.0
  %v1285 = vmax.f32 %v1268, 0.0
  %v1286 = vmax.f32 %v1271, 0.0
  %v1287 = vmax.f32 %v1276, 0.0
  %v1288 = vmax.f32 %v848, %v1281
  %v1289 = vmax.f32 %v849, %v1282
  %v1290 = vmax.f32 %v850, %v1283
  %v1291 = vmax.f32 %v851, %v1284
  %v1292 = vmax.f32 %v852, %v1285
  %v1293 = vmax.f32 %v853, %v1286
  %v1294 = vmax.f32 %v854, %v1287
  %s1295 = scalar_lea.vmem %s0, 392
  %v1296 = vld [vmem:[%s1295] sm:$0xff]
  %v1297 = vld [vmem:[%s1295 + $0x8] sm:$0xff]
  %v1298 = vld [vmem:[%s1295 + $0x10] sm:$0xff]
  %v1299 = vld [vmem:[%s1295 + $0x18] sm:$0xf]
  %v1300 = vld [vmem:[%s1295 + $0x1c] sm:$0xff]
  %v1301 = vld [vmem:[%s1295 + $0x24] sm:$0xff]
  %v1302 = vld [vmem:[%s1295 + $0x2c] sm:$0xff]
  %v1303 = vld [vmem:[%s1295 + $0x34] sm:$0xf]
  %v1304 = vld [vmem:[%s1295 + $0x38] sm:$0xff]
  %v1305 = vld [vmem:[%s1295 + $0x40] sm:$0xff]
  %v1306 = vld [vmem:[%s1295 + $0x48] sm:$0xff]
  %v1307 = vld [vmem:[%s1295 + $0x50] sm:$0xf]
  %v1308 = vld [vmem:[%s1295 + $0x54] sm:$0xff]
  %v1309 = vld [vmem:[%s1295 + $0x5c] sm:$0xff]
  %v1310 = vld [vmem:[%s1295 + $0x64] sm:$0xff]
  %v1311 = vld [vmem:[%s1295 + $0x6c] sm:$0xf]
  %v1312 = vld [vmem:[%s1295 + $0x70] sm:$0xff]
  %v1313 = vld [vmem:[%s1295 + $0x78] sm:$0xff]
  %v1314 = vld [vmem:[%s1295 + $0x80] sm:$0xff]
  %v1315 = vld [vmem:[%s1295 + $0x88] sm:$0xf]
  %v1316 = vld [vmem:[%s1295 + $0x8c] sm:$0xff]
  %v1317 = vld [vmem:[%s1295 + $0x94] sm:$0xff]
  %v1318 = vld [vmem:[%s1295 + $0x9c] sm:$0xff]
  %v1319 = vld [vmem:[%s1295 + $0xa4] sm:$0xf]
  %v1320 = vld [vmem:[%s1295 + $0xa8] sm:$0x11]
  %v1321 = vld [vmem:[%s1295 + $0xb0] sm:$0x11]
  %v1322 = vld [vmem:[%s1295 + $0xb8] sm:$0x11]
  %v1323 = vld [vmem:[%s1295 + $0xc0] sm:$0x1]
  %v1352 = vunpack.c.l.b16 %v1296
  %v1353 = vunpack.c.h.b16 %v1296
  %v1354 = vunpack.c.l.b16 %v1297
  %v1355 = vunpack.c.h.b16 %v1297
  %v1356 = vunpack.c.l.b16 %v1298
  %v1357 = vunpack.c.h.b16 %v1298
  %v1358 = vunpack.c.l.b16 %v1299
  %v1359 = vunpack.c.l.b16 %v1300
  %v1360 = vunpack.c.h.b16 %v1300
  %v1361 = vunpack.c.l.b16 %v1301
  %v1362 = vunpack.c.h.b16 %v1301
  %v1363 = vunpack.c.l.b16 %v1302
  %v1364 = vunpack.c.h.b16 %v1302
  %v1365 = vunpack.c.l.b16 %v1303
  %v1366 = vunpack.c.l.b16 %v1304
  %v1367 = vunpack.c.h.b16 %v1304
  %v1368 = vunpack.c.l.b16 %v1305
  %v1369 = vunpack.c.h.b16 %v1305
  %v1370 = vunpack.c.l.b16 %v1306
  %v1371 = vunpack.c.h.b16 %v1306
  %v1372 = vunpack.c.l.b16 %v1307
  %v1373 = vunpack.c.l.b16 %v1308
  %v1374 = vunpack.c.h.b16 %v1308
  %v1375 = vunpack.c.l.b16 %v1309
  %v1376 = vunpack.c.h.b16 %v1309
  %v1377 = vunpack.c.l.b16 %v1310
  %v1378 = vunpack.c.h.b16 %v1310
  %v1379 = vunpack.c.l.b16 %v1311
  %v1380 = vunpack.c.l.b16 %v1312
  %v1381 = vunpack.c.h.b16 %v1312
  %v1382 = vunpack.c.l.b16 %v1313
  %v1383 = vunpack.c.h.b16 %v1313
  %v1384 = vunpack.c.l.b16 %v1314
  %v1385 = vunpack.c.h.b16 %v1314
  %v1386 = vunpack.c.l.b16 %v1315
  %v1387 = vunpack.c.l.b16 %v1316
  %v1388 = vunpack.c.h.b16 %v1316
  %v1389 = vunpack.c.l.b16 %v1317
  %v1390 = vunpack.c.h.b16 %v1317
  %v1391 = vunpack.c.l.b16 %v1318
  %v1392 = vunpack.c.h.b16 %v1318
  %v1393 = vunpack.c.l.b16 %v1319
  %v1394 = vunpack.c.l.b16 %v1320
  %v1395 = vunpack.c.h.b16 %v1320
  %v1396 = vunpack.c.l.b16 %v1321
  %v1397 = vunpack.c.h.b16 %v1321
  %v1398 = vunpack.c.l.b16 %v1322
  %v1399 = vunpack.c.h.b16 %v1322
  %v1400 = vunpack.c.l.b16 %v1323
  %v1401 = vpack.c.b16 %v1359, %v1352
  %v1402 = vpack.c.b16 %v1360, %v1353
  %v1403 = vpack.c.b16 %v1361, %v1354
  %v1404 = vpack.c.b16 %v1362, %v1355
  %v1405 = vpack.c.b16 %v1363, %v1356
  %v1406 = vpack.c.b16 %v1364, %v1357
  %v1407 = vpack.c.b16 %v1365, %v1358
  %v1408 = vpack.c.b16 %v1373, %v1366
  %v1409 = vpack.c.b16 %v1374, %v1367
  %v1410 = vpack.c.b16 %v1375, %v1368
  %v1411 = vpack.c.b16 %v1376, %v1369
  %v1412 = vpack.c.b16 %v1377, %v1370
  %v1413 = vpack.c.b16 %v1378, %v1371
  %v1414 = vpack.c.b16 %v1379, %v1372
  %v1415 = vpack.c.b16 %v1387, %v1380
  %v1416 = vpack.c.b16 %v1388, %v1381
  %v1417 = vpack.c.b16 %v1389, %v1382
  %v1418 = vpack.c.b16 %v1390, %v1383
  %v1419 = vpack.c.b16 %v1391, %v1384
  %v1420 = vpack.c.b16 %v1392, %v1385
  %v1421 = vpack.c.b16 %v1393, %v1386
  %v1422 = vpack.c.b16 %v1394, %v1394
  %v1423 = vpack.c.b16 %v1395, %v1395
  %v1424 = vpack.c.b16 %v1396, %v1396
  %v1425 = vpack.c.b16 %v1397, %v1397
  %v1426 = vpack.c.b16 %v1398, %v1398
  %v1427 = vpack.c.b16 %v1399, %v1399
  %v1428 = vpack.c.b16 %v1400, %v1400
  %v1454 = vsel %vm579, %v1407, 0
  %v1457 = vsel %vm579, %v1414, 0
  %v1460 = vsel %vm579, %v1421, 0
  %v1463 = vsel %vm579, %v1428, 0
  %1465 = vmatprep.subr.bf16.mxu0 0
  %1466 = vmatpush1.bf16.msra.mxu0 %v479
  %1467 = vmatprep.subr.bf16.mxu0 0
  %1468 = vmatpush1.bf16.msra.mxu0 %v480
  %1469 = vmatprep.subr.bf16.mxu0 0
  %1470 = vmatpush1.bf16.msra.mxu0 %v481
  %1471 = vmatprep.subr.bf16.mxu0 0
  %1472 = vmatpush1.bf16.msra.mxu0 %v482
  %1473 = vmatprep.subr.bf16.mxu0 0
  %1474 = vmatpush1.bf16.msra.mxu0 %v483
  %1475 = vmatprep.subr.bf16.mxu0 0
  %1476 = vmatpush1.bf16.msra.mxu0 %v484
  %1477 = vmatprep.subr.bf16.mxu0 0
  %1478 = vmatpush1.bf16.msra.mxu0 %v485
  %1479 = vmatprep.subr.bf16.mxu0 0
  %1480 = vmatpush1.bf16.msra.mxu0 %v486
  %1481 = vmatprep.subr.bf16.mxu0 0
  %1482 = vmatpush1.bf16.msra.mxu0 %v487
  %1483 = vmatprep.subr.bf16.mxu0 0
  %1484 = vmatpush1.bf16.msra.mxu0 %v488
  %1485 = vmatprep.subr.bf16.mxu0 0
  %1486 = vmatpush1.bf16.msra.mxu0 %v489
  %1487 = vmatprep.subr.bf16.mxu0 0
  %1488 = vmatpush1.bf16.msra.mxu0 %v490
  %1489 = vmatprep.subr.bf16.mxu0 0
  %1490 = vmatpush1.bf16.msra.mxu0 %v491
  %1491 = vmatprep.subr.bf16.mxu0 0
  %1492 = vmatpush1.bf16.msra.mxu0 %v492
  %1493 = vmatprep.subr.bf16.mxu0 0
  %1494 = vmatpush1.bf16.msra.mxu0 %v493
  %1495 = vmatprep.subr.bf16.mxu0 0
  %1496 = vmatpush1.bf16.msra.mxu0 %v494
  %1497 = vmatprep.mubr.bf16.mxu0 %v1402
  %1498 = vmatmul.mubr.bf16.gmra.mrb[0].mxu0 %v1401
  %v1499 = vpop.f32.mrb[0].mxu0
  %v1500 = vadd.f32 %v148, %v1499
  %v1501 = vpop.f32.mrb[0].mxu0
  %v1502 = vpop.f32.mrb[0].mxu0
  %v1503 = vadd.f32 %v148, %v1502
  %v1504 = vpop.f32.mrb[0].mxu0
  %1505 = vmatprep.mubr.bf16.mxu0 %v1409
  %1506 = vmatmul.mubr.bf16.gmra.mrb[0].mxu0 %v1408
  %v1507 = vpop.f32.mrb[0].mxu0
  %v1508 = vadd.f32 %v148, %v1507
  %v1509 = vpop.f32.mrb[0].mxu0
  %v1510 = vpop.f32.mrb[0].mxu0
  %v1511 = vadd.f32 %v148, %v1510
  %v1512 = vpop.f32.mrb[0].mxu0
  %1513 = vmatprep.mubr.bf16.mxu0 %v1416
  %1514 = vmatmul.mubr.bf16.gmra.mrb[0].mxu0 %v1415
  %v1515 = vpop.f32.mrb[0].mxu0
  %v1516 = vadd.f32 %v148, %v1515
  %v1517 = vpop.f32.mrb[0].mxu0
  %v1518 = vpop.f32.mrb[0].mxu0
  %v1519 = vadd.f32 %v148, %v1518
  %v1520 = vpop.f32.mrb[0].mxu0
  %1521 = vmatprep.mubr.bf16.mxu0 %v1423
  %1522 = vmatmul.mubr.bf16.gmra.mrb[0].mxu0 %v1422
  %v1523 = vpop.f32.mrb[0].mxu0
  %v1524 = vadd.f32 %v148, %v1523
  %v1525 = vpop.f32.mrb[0].mxu0
  %v1526 = vpop.f32.mrb[0].mxu0
  %v1527 = vpop.f32.mrb[0].mxu0
  %1528 = vdwg.mxu0
  %1529 = vmatprep.subr.bf16.mxu0 0
  %1530 = vmatpush1.bf16.msra.mxu0 %v495
  %1531 = vmatprep.subr.bf16.mxu0 0
  %1532 = vmatpush1.bf16.msra.mxu0 %v496
  %1533 = vmatprep.subr.bf16.mxu0 0
  %1534 = vmatpush1.bf16.msra.mxu0 %v497
  %1535 = vmatprep.subr.bf16.mxu0 0
  %1536 = vmatpush1.bf16.msra.mxu0 %v498
  %1537 = vmatprep.subr.bf16.mxu0 0
  %1538 = vmatpush1.bf16.msra.mxu0 %v499
  %1539 = vmatprep.subr.bf16.mxu0 0
  %1540 = vmatpush1.bf16.msra.mxu0 %v500
  %1541 = vmatprep.subr.bf16.mxu0 0
  %1542 = vmatpush1.bf16.msra.mxu0 %v501
  %1543 = vmatprep.subr.bf16.mxu0 0
  %1544 = vmatpush1.bf16.msra.mxu0 %v502
  %1545 = vmatprep.subr.bf16.mxu0 0
  %1546 = vmatpush1.bf16.msra.mxu0 %v503
  %1547 = vmatprep.subr.bf16.mxu0 0
  %1548 = vmatpush1.bf16.msra.mxu0 %v504
  %1549 = vmatprep.subr.bf16.mxu0 0
  %1550 = vmatpush1.bf16.msra.mxu0 %v505
  %1551 = vmatprep.subr.bf16.mxu0 0
  %1552 = vmatpush1.bf16.msra.mxu0 %v506
  %1553 = vmatprep.subr.bf16.mxu0 0
  %1554 = vmatpush1.bf16.msra.mxu0 %v507
  %1555 = vmatprep.subr.bf16.mxu0 0
  %1556 = vmatpush1.bf16.msra.mxu0 %v508
  %1557 = vmatprep.subr.bf16.mxu0 0
  %1558 = vmatpush1.bf16.msra.mxu0 %v509
  %1559 = vmatprep.subr.bf16.mxu0 0
  %1560 = vmatpush1.bf16.msra.mxu0 %v510
  %1561 = vmatprep.mubr.bf16.mxu0 %v1404
  %1562 = vmatmul.mubr.bf16.gmra.mrb[0].mxu0 %v1403
  %v1563 = vpop.f32.mrb[0].mxu0
  %v1564 = vadd.f32 %v1500, %v1563
  %v1565 = vpop.f32.mrb[0].mxu0
  %v1566 = vpop.f32.mrb[0].mxu0
  %v1567 = vadd.f32 %v1503, %v1566
  %v1568 = vpop.f32.mrb[0].mxu0
  %1569 = vmatprep.mubr.bf16.mxu0 %v1411
  %1570 = vmatmul.mubr.bf16.gmra.mrb[0].mxu0 %v1410
  %v1571 = vpop.f32.mrb[0].mxu0
  %v1572 = vadd.f32 %v1508, %v1571
  %v1573 = vpop.f32.mrb[0].mxu0
  %v1574 = vpop.f32.mrb[0].mxu0
  %v1575 = vadd.f32 %v1511, %v1574
  %v1576 = vpop.f32.mrb[0].mxu0
  %1577 = vmatprep.mubr.bf16.mxu0 %v1418
  %1578 = vmatmul.mubr.bf16.gmra.mrb[0].mxu0 %v1417
  %v1579 = vpop.f32.mrb[0].mxu0
  %v1580 = vadd.f32 %v1516, %v1579
  %v1581 = vpop.f32.mrb[0].mxu0
  %v1582 = vpop.f32.mrb[0].mxu0
  %v1583 = vadd.f32 %v1519, %v1582
  %v1584 = vpop.f32.mrb[0].mxu0
  %1585 = vmatprep.mubr.bf16.mxu0 %v1425
  %1586 = vmatmul.mubr.bf16.gmra.mrb[0].mxu0 %v1424
  %v1587 = vpop.f32.mrb[0].mxu0
  %v1588 = vadd.f32 %v1524, %v1587
  %v1589 = vpop.f32.mrb[0].mxu0
  %v1590 = vpop.f32.mrb[0].mxu0
  %v1591 = vpop.f32.mrb[0].mxu0
  %1592 = vdwg.mxu0
  %1593 = vmatprep.subr.bf16.mxu0 0
  %1594 = vmatpush1.bf16.msra.mxu0 %v511
  %1595 = vmatprep.subr.bf16.mxu0 0
  %1596 = vmatpush1.bf16.msra.mxu0 %v512
  %1597 = vmatprep.subr.bf16.mxu0 0
  %1598 = vmatpush1.bf16.msra.mxu0 %v513
  %1599 = vmatprep.subr.bf16.mxu0 0
  %1600 = vmatpush1.bf16.msra.mxu0 %v514
  %1601 = vmatprep.subr.bf16.mxu0 0
  %1602 = vmatpush1.bf16.msra.mxu0 %v515
  %1603 = vmatprep.subr.bf16.mxu0 0
  %1604 = vmatpush1.bf16.msra.mxu0 %v516
  %1605 = vmatprep.subr.bf16.mxu0 0
  %1606 = vmatpush1.bf16.msra.mxu0 %v517
  %1607 = vmatprep.subr.bf16.mxu0 0
  %1608 = vmatpush1.bf16.msra.mxu0 %v518
  %1609 = vmatprep.subr.bf16.mxu0 0
  %1610 = vmatpush1.bf16.msra.mxu0 %v519
  %1611 = vmatprep.subr.bf16.mxu0 0
  %1612 = vmatpush1.bf16.msra.mxu0 %v520
  %1613 = vmatprep.subr.bf16.mxu0 0
  %1614 = vmatpush1.bf16.msra.mxu0 %v521
  %1615 = vmatprep.subr.bf16.mxu0 0
  %1616 = vmatpush1.bf16.msra.mxu0 %v522
  %1617 = vmatprep.subr.bf16.mxu0 0
  %1618 = vmatpush1.bf16.msra.mxu0 %v523
  %1619 = vmatprep.subr.bf16.mxu0 0
  %1620 = vmatpush1.bf16.msra.mxu0 %v524
  %1621 = vmatprep.subr.bf16.mxu0 0
  %1622 = vmatpush1.bf16.msra.mxu0 %v525
  %1623 = vmatprep.subr.bf16.mxu0 0
  %1624 = vmatpush1.bf16.msra.mxu0 %v526
  %1625 = vmatprep.mubr.bf16.mxu0 %v1406
  %1626 = vmatmul.mubr.bf16.gmra.mrb[0].mxu0 %v1405
  %v1627 = vpop.f32.mrb[0].mxu0
  %v1628 = vadd.f32 %v1564, %v1627
  %v1629 = vpop.f32.mrb[0].mxu0
  %v1630 = vpop.f32.mrb[0].mxu0
  %v1631 = vadd.f32 %v1567, %v1630
  %v1632 = vpop.f32.mrb[0].mxu0
  %1633 = vmatprep.mubr.bf16.mxu0 %v1413
  %1634 = vmatmul.mubr.bf16.gmra.mrb[0].mxu0 %v1412
  %v1635 = vpop.f32.mrb[0].mxu0
  %v1636 = vadd.f32 %v1572, %v1635
  %v1637 = vpop.f32.mrb[0].mxu0
  %v1638 = vpop.f32.mrb[0].mxu0
  %v1639 = vadd.f32 %v1575, %v1638
  %v1640 = vpop.f32.mrb[0].mxu0
  %1641 = vmatprep.mubr.bf16.mxu0 %v1420
  %1642 = vmatmul.mubr.bf16.gmra.mrb[0].mxu0 %v1419
  %v1643 = vpop.f32.mrb[0].mxu0
  %v1644 = vadd.f32 %v1580, %v1643
  %v1645 = vpop.f32.mrb[0].mxu0
  %v1646 = vpop.f32.mrb[0].mxu0
  %v1647 = vadd.f32 %v1583, %v1646
  %v1648 = vpop.f32.mrb[0].mxu0
  %1649 = vmatprep.mubr.bf16.mxu0 %v1427
  %1650 = vmatmul.mubr.bf16.gmra.mrb[0].mxu0 %v1426
  %v1651 = vpop.f32.mrb[0].mxu0
  %v1652 = vadd.f32 %v1588, %v1651
  %v1653 = vpop.f32.mrb[0].mxu0
  %v1654 = vpop.f32.mrb[0].mxu0
  %v1655 = vpop.f32.mrb[0].mxu0
  %1656 = vdwg.mxu0
  %1657 = vmatprep.subr.bf16.mxu0 0
  %1658 = vmatpush1.bf16.msra.mxu0 %v527
  %1659 = vmatprep.subr.bf16.mxu0 0
  %1660 = vmatpush1.bf16.msra.mxu0 %v528
  %1661 = vmatprep.subr.bf16.mxu0 0
  %1662 = vmatpush1.bf16.msra.mxu0 0
  %1663 = vmatprep.subr.bf16.mxu0 0
  %1664 = vmatpush1.bf16.msra.mxu0 0
  %1665 = vmatprep.subr.bf16.mxu0 0
  %1666 = vmatpush1.bf16.msra.mxu0 0
  %1667 = vmatprep.subr.bf16.mxu0 0
  %1668 = vmatpush1.bf16.msra.mxu0 0
  %1669 = vmatprep.subr.bf16.mxu0 0
  %1670 = vmatpush1.bf16.msra.mxu0 0
  %1671 = vmatprep.subr.bf16.mxu0 0
  %1672 = vmatpush1.bf16.msra.mxu0 0
  %1673 = vmatprep.subr.bf16.mxu0 0
  %1674 = vmatpush1.bf16.msra.mxu0 0
  %1675 = vmatprep.subr.bf16.mxu0 0
  %1676 = vmatpush1.bf16.msra.mxu0 0
  %1677 = vmatprep.subr.bf16.mxu0 0
  %1678 = vmatpush1.bf16.msra.mxu0 0
  %1679 = vmatprep.subr.bf16.mxu0 0
  %1680 = vmatpush1.bf16.msra.mxu0 0
  %1681 = vmatprep.subr.bf16.mxu0 0
  %1682 = vmatpush1.bf16.msra.mxu0 0
  %1683 = vmatprep.subr.bf16.mxu0 0
  %1684 = vmatpush1.bf16.msra.mxu0 0
  %1685 = vmatprep.subr.bf16.mxu0 0
  %1686 = vmatpush1.bf16.msra.mxu0 0
  %1687 = vmatprep.subr.bf16.mxu0 0
  %1688 = vmatpush1.bf16.msra.mxu0 0
  %1689 = vmatprep.mubr.bf16.mxu0 0
  %1690 = vmatmul.mubr.bf16.gmra.mrb[0].mxu0 %v1454
  %v1691 = vpop.f32.mrb[0].mxu0
  %v1692 = vadd.f32 %v1628, %v1691
  %v1693 = vpop.f32.mrb[0].mxu0
  %v1694 = vpop.f32.mrb[0].mxu0
  %v1695 = vadd.f32 %v1631, %v1694
  %v1696 = vpop.f32.mrb[0].mxu0
  %1697 = vmatprep.mubr.bf16.mxu0 0
  %1698 = vmatmul.mubr.bf16.gmra.mrb[0].mxu0 %v1457
  %v1699 = vpop.f32.mrb[0].mxu0
  %v1700 = vadd.f32 %v1636, %v1699
  %v1701 = vpop.f32.mrb[0].mxu0
  %v1702 = vpop.f32.mrb[0].mxu0
  %v1703 = vadd.f32 %v1639, %v1702
  %v1704 = vpop.f32.mrb[0].mxu0
  %1705 = vmatprep.mubr.bf16.mxu0 0
  %1706 = vmatmul.mubr.bf16.gmra.mrb[0].mxu0 %v1460
  %v1707 = vpop.f32.mrb[0].mxu0
  %v1708 = vadd.f32 %v1644, %v1707
  %v1709 = vpop.f32.mrb[0].mxu0
  %v1710 = vpop.f32.mrb[0].mxu0
  %v1711 = vadd.f32 %v1647, %v1710
  %v1712 = vpop.f32.mrb[0].mxu0
  %1713 = vmatprep.mubr.bf16.mxu0 0
  %1714 = vmatmul.mubr.bf16.gmra.mrb[0].mxu0 %v1463
  %v1715 = vpop.f32.mrb[0].mxu0
  %v1716 = vadd.f32 %v1652, %v1715
  %v1717 = vpop.f32.mrb[0].mxu0
  %v1718 = vpop.f32.mrb[0].mxu0
  %v1719 = vpop.f32.mrb[0].mxu0
  %1720 = vdwg.mxu0
  %v1721 = vmax.f32 %v1692, 0.0
  %v1722 = vmax.f32 %v1695, 0.0
  %v1723 = vmax.f32 %v1700, 0.0
  %v1724 = vmax.f32 %v1703, 0.0
  %v1725 = vmax.f32 %v1708, 0.0
  %v1726 = vmax.f32 %v1711, 0.0
  %v1727 = vmax.f32 %v1716, 0.0
  %s1728 = scalar_lea.vmem %s0, 588
  %v1729 = vld [vmem:[%s1728] sm:$0xff]
  %v1730 = vld [vmem:[%s1728 + $0x8] sm:$0xff]
  %v1731 = vld [vmem:[%s1728 + $0x10] sm:$0xff]
  %v1732 = vld [vmem:[%s1728 + $0x18] sm:$0xf]
  %v1733 = vld [vmem:[%s1728 + $0x1c] sm:$0xff]
  %v1734 = vld [vmem:[%s1728 + $0x24] sm:$0xff]
  %v1735 = vld [vmem:[%s1728 + $0x2c] sm:$0xff]
  %v1736 = vld [vmem:[%s1728 + $0x34] sm:$0xf]
  %v1737 = vld [vmem:[%s1728 + $0x38] sm:$0xff]
  %v1738 = vld [vmem:[%s1728 + $0x40] sm:$0xff]
  %v1739 = vld [vmem:[%s1728 + $0x48] sm:$0xff]
  %v1740 = vld [vmem:[%s1728 + $0x50] sm:$0xf]
  %v1741 = vld [vmem:[%s1728 + $0x54] sm:$0xff]
  %v1742 = vld [vmem:[%s1728 + $0x5c] sm:$0xff]
  %v1743 = vld [vmem:[%s1728 + $0x64] sm:$0xff]
  %v1744 = vld [vmem:[%s1728 + $0x6c] sm:$0xf]
  %v1745 = vld [vmem:[%s1728 + $0x70] sm:$0xff]
  %v1746 = vld [vmem:[%s1728 + $0x78] sm:$0xff]
  %v1747 = vld [vmem:[%s1728 + $0x80] sm:$0xff]
  %v1748 = vld [vmem:[%s1728 + $0x88] sm:$0xf]
  %v1749 = vld [vmem:[%s1728 + $0x8c] sm:$0xff]
  %v1750 = vld [vmem:[%s1728 + $0x94] sm:$0xff]
  %v1751 = vld [vmem:[%s1728 + $0x9c] sm:$0xff]
  %v1752 = vld [vmem:[%s1728 + $0xa4] sm:$0xf]
  %v1753 = vld [vmem:[%s1728 + $0xa8] sm:$0x11]
  %v1754 = vld [vmem:[%s1728 + $0xb0] sm:$0x11]
  %v1755 = vld [vmem:[%s1728 + $0xb8] sm:$0x11]
  %v1756 = vld [vmem:[%s1728 + $0xc0] sm:$0x1]
  %v1785 = vunpack.c.l.b16 %v1729
  %v1786 = vunpack.c.h.b16 %v1729
  %v1787 = vunpack.c.l.b16 %v1730
  %v1788 = vunpack.c.h.b16 %v1730
  %v1789 = vunpack.c.l.b16 %v1731
  %v1790 = vunpack.c.h.b16 %v1731
  %v1791 = vunpack.c.l.b16 %v1732
  %v1792 = vunpack.c.l.b16 %v1733
  %v1793 = vunpack.c.h.b16 %v1733
  %v1794 = vunpack.c.l.b16 %v1734
  %v1795 = vunpack.c.h.b16 %v1734
  %v1796 = vunpack.c.l.b16 %v1735
  %v1797 = vunpack.c.h.b16 %v1735
  %v1798 = vunpack.c.l.b16 %v1736
  %v1799 = vunpack.c.l.b16 %v1737
  %v1800 = vunpack.c.h.b16 %v1737
  %v1801 = vunpack.c.l.b16 %v1738
  %v1802 = vunpack.c.h.b16 %v1738
  %v1803 = vunpack.c.l.b16 %v1739
  %v1804 = vunpack.c.h.b16 %v1739
  %v1805 = vunpack.c.l.b16 %v1740
  %v1806 = vunpack.c.l.b16 %v1741
  %v1807 = vunpack.c.h.b16 %v1741
  %v1808 = vunpack.c.l.b16 %v1742
  %v1809 = vunpack.c.h.b16 %v1742
  %v1810 = vunpack.c.l.b16 %v1743
  %v1811 = vunpack.c.h.b16 %v1743
  %v1812 = vunpack.c.l.b16 %v1744
  %v1813 = vunpack.c.l.b16 %v1745
  %v1814 = vunpack.c.h.b16 %v1745
  %v1815 = vunpack.c.l.b16 %v1746
  %v1816 = vunpack.c.h.b16 %v1746
  %v1817 = vunpack.c.l.b16 %v1747
  %v1818 = vunpack.c.h.b16 %v1747
  %v1819 = vunpack.c.l.b16 %v1748
  %v1820 = vunpack.c.l.b16 %v1749
  %v1821 = vunpack.c.h.b16 %v1749
  %v1822 = vunpack.c.l.b16 %v1750
  %v1823 = vunpack.c.h.b16 %v1750
  %v1824 = vunpack.c.l.b16 %v1751
  %v1825 = vunpack.c.h.b16 %v1751
  %v1826 = vunpack.c.l.b16 %v1752
  %v1827 = vunpack.c.l.b16 %v1753
  %v1828 = vunpack.c.h.b16 %v1753
  %v1829 = vunpack.c.l.b16 %v1754
  %v1830 = vunpack.c.h.b16 %v1754
  %v1831 = vunpack.c.l.b16 %v1755
  %v1832 = vunpack.c.h.b16 %v1755
  %v1833 = vunpack.c.l.b16 %v1756
  %v1834 = vpack.c.b16 %v1792, %v1785
  %v1835 = vpack.c.b16 %v1793, %v1786
  %v1836 = vpack.c.b16 %v1794, %v1787
  %v1837 = vpack.c.b16 %v1795, %v1788
  %v1838 = vpack.c.b16 %v1796, %v1789
  %v1839 = vpack.c.b16 %v1797, %v1790
  %v1840 = vpack.c.b16 %v1798, %v1791
  %v1841 = vpack.c.b16 %v1806, %v1799
  %v1842 = vpack.c.b16 %v1807, %v1800
  %v1843 = vpack.c.b16 %v1808, %v1801
  %v1844 = vpack.c.b16 %v1809, %v1802
  %v1845 = vpack.c.b16 %v1810, %v1803
  %v1846 = vpack.c.b16 %v1811, %v1804
  %v1847 = vpack.c.b16 %v1812, %v1805
  %v1848 = vpack.c.b16 %v1820, %v1813
  %v1849 = vpack.c.b16 %v1821, %v1814
  %v1850 = vpack.c.b16 %v1822, %v1815
  %v1851 = vpack.c.b16 %v1823, %v1816
  %v1852 = vpack.c.b16 %v1824, %v1817
  %v1853 = vpack.c.b16 %v1825, %v1818
  %v1854 = vpack.c.b16 %v1826, %v1819
  %v1855 = vpack.c.b16 %v1827, %v1827
  %v1856 = vpack.c.b16 %v1828, %v1828
  %v1857 = vpack.c.b16 %v1829, %v1829
  %v1858 = vpack.c.b16 %v1830, %v1830
  %v1859 = vpack.c.b16 %v1831, %v1831
  %v1860 = vpack.c.b16 %v1832, %v1832
  %v1861 = vpack.c.b16 %v1833, %v1833
  %v1887 = vsel %vm579, %v1840, 0
  %v1890 = vsel %vm579, %v1847, 0
  %v1893 = vsel %vm579, %v1854, 0
  %v1896 = vsel %vm579, %v1861, 0
  %1898 = vmatprep.subr.bf16.mxu0 0
  %1899 = vmatpush1.bf16.msra.mxu0 %v479
  %1900 = vmatprep.subr.bf16.mxu0 0
  %1901 = vmatpush1.bf16.msra.mxu0 %v480
  %1902 = vmatprep.subr.bf16.mxu0 0
  %1903 = vmatpush1.bf16.msra.mxu0 %v481
  %1904 = vmatprep.subr.bf16.mxu0 0
  %1905 = vmatpush1.bf16.msra.mxu0 %v482
  %1906 = vmatprep.subr.bf16.mxu0 0
  %1907 = vmatpush1.bf16.msra.mxu0 %v483
  %1908 = vmatprep.subr.bf16.mxu0 0
  %1909 = vmatpush1.bf16.msra.mxu0 %v484
  %1910 = vmatprep.subr.bf16.mxu0 0
  %1911 = vmatpush1.bf16.msra.mxu0 %v485
  %1912 = vmatprep.subr.bf16.mxu0 0
  %1913 = vmatpush1.bf16.msra.mxu0 %v486
  %1914 = vmatprep.subr.bf16.mxu0 0
  %1915 = vmatpush1.bf16.msra.mxu0 %v487
  %1916 = vmatprep.subr.bf16.mxu0 0
  %1917 = vmatpush1.bf16.msra.mxu0 %v488
  %1918 = vmatprep.subr.bf16.mxu0 0
  %1919 = vmatpush1.bf16.msra.mxu0 %v489
  %1920 = vmatprep.subr.bf16.mxu0 0
  %1921 = vmatpush1.bf16.msra.mxu0 %v490
  %1922 = vmatprep.subr.bf16.mxu0 0
  %1923 = vmatpush1.bf16.msra.mxu0 %v491
  %1924 = vmatprep.subr.bf16.mxu0 0
  %1925 = vmatpush1.bf16.msra.mxu0 %v492
  %1926 = vmatprep.subr.bf16.mxu0 0
  %1927 = vmatpush1.bf16.msra.mxu0 %v493
  %1928 = vmatprep.subr.bf16.mxu0 0
  %1929 = vmatpush1.bf16.msra.mxu0 %v494
  %1930 = vmatprep.mubr.bf16.mxu0 %v1835
  %1931 = vmatmul.mubr.bf16.gmra.mrb[0].mxu0 %v1834
  %v1932 = vpop.f32.mrb[0].mxu0
  %v1933 = vadd.f32 %v148, %v1932
  %v1934 = vpop.f32.mrb[0].mxu0
  %v1935 = vpop.f32.mrb[0].mxu0
  %v1936 = vadd.f32 %v148, %v1935
  %v1937 = vpop.f32.mrb[0].mxu0
  %1938 = vmatprep.mubr.bf16.mxu0 %v1842
  %1939 = vmatmul.mubr.bf16.gmra.mrb[0].mxu0 %v1841
  %v1940 = vpop.f32.mrb[0].mxu0
  %v1941 = vadd.f32 %v148, %v1940
  %v1942 = vpop.f32.mrb[0].mxu0
  %v1943 = vpop.f32.mrb[0].mxu0
  %v1944 = vadd.f32 %v148, %v1943
  %v1945 = vpop.f32.mrb[0].mxu0
  %1946 = vmatprep.mubr.bf16.mxu0 %v1849
  %1947 = vmatmul.mubr.bf16.gmra.mrb[0].mxu0 %v1848
  %v1948 = vpop.f32.mrb[0].mxu0
  %v1949 = vadd.f32 %v148, %v1948
  %v1950 = vpop.f32.mrb[0].mxu0
  %v1951 = vpop.f32.mrb[0].mxu0
  %v1952 = vadd.f32 %v148, %v1951
  %v1953 = vpop.f32.mrb[0].mxu0
  %1954 = vmatprep.mubr.bf16.mxu0 %v1856
  %1955 = vmatmul.mubr.bf16.gmra.mrb[0].mxu0 %v1855
  %v1956 = vpop.f32.mrb[0].mxu0
  %v1957 = vadd.f32 %v148, %v1956
  %v1958 = vpop.f32.mrb[0].mxu0
  %v1959 = vpop.f32.mrb[0].mxu0
  %v1960 = vpop.f32.mrb[0].mxu0
  %1961 = vdwg.mxu0
  %1962 = vmatprep.subr.bf16.mxu0 0
  %1963 = vmatpush1.bf16.msra.mxu0 %v495
  %1964 = vmatprep.subr.bf16.mxu0 0
  %1965 = vmatpush1.bf16.msra.mxu0 %v496
  %1966 = vmatprep.subr.bf16.mxu0 0
  %1967 = vmatpush1.bf16.msra.mxu0 %v497
  %1968 = vmatprep.subr.bf16.mxu0 0
  %1969 = vmatpush1.bf16.msra.mxu0 %v498
  %1970 = vmatprep.subr.bf16.mxu0 0
  %1971 = vmatpush1.bf16.msra.mxu0 %v499
  %1972 = vmatprep.subr.bf16.mxu0 0
  %1973 = vmatpush1.bf16.msra.mxu0 %v500
  %1974 = vmatprep.subr.bf16.mxu0 0
  %1975 = vmatpush1.bf16.msra.mxu0 %v501
  %1976 = vmatprep.subr.bf16.mxu0 0
  %1977 = vmatpush1.bf16.msra.mxu0 %v502
  %1978 = vmatprep.subr.bf16.mxu0 0
  %1979 = vmatpush1.bf16.msra.mxu0 %v503
  %1980 = vmatprep.subr.bf16.mxu0 0
  %1981 = vmatpush1.bf16.msra.mxu0 %v504
  %1982 = vmatprep.subr.bf16.mxu0 0
  %1983 = vmatpush1.bf16.msra.mxu0 %v505
  %1984 = vmatprep.subr.bf16.mxu0 0
  %1985 = vmatpush1.bf16.msra.mxu0 %v506
  %1986 = vmatprep.subr.bf16.mxu0 0
  %1987 = vmatpush1.bf16.msra.mxu0 %v507
  %1988 = vmatprep.subr.bf16.mxu0 0
  %1989 = vmatpush1.bf16.msra.mxu0 %v508
  %1990 = vmatprep.subr.bf16.mxu0 0
  %1991 = vmatpush1.bf16.msra.mxu0 %v509
  %1992 = vmatprep.subr.bf16.mxu0 0
  %1993 = vmatpush1.bf16.msra.mxu0 %v510
  %1994 = vmatprep.mubr.bf16.mxu0 %v1837
  %1995 = vmatmul.mubr.bf16.gmra.mrb[0].mxu0 %v1836
  %v1996 = vpop.f32.mrb[0].mxu0
  %v1997 = vadd.f32 %v1933, %v1996
  %v1998 = vpop.f32.mrb[0].mxu0
  %v1999 = vpop.f32.mrb[0].mxu0
  %v2000 = vadd.f32 %v1936, %v1999
  %v2001 = vpop.f32.mrb[0].mxu0
  %2002 = vmatprep.mubr.bf16.mxu0 %v1844
  %2003 = vmatmul.mubr.bf16.gmra.mrb[0].mxu0 %v1843
  %v2004 = vpop.f32.mrb[0].mxu0
  %v2005 = vadd.f32 %v1941, %v2004
  %v2006 = vpop.f32.mrb[0].mxu0
  %v2007 = vpop.f32.mrb[0].mxu0
  %v2008 = vadd.f32 %v1944, %v2007
  %v2009 = vpop.f32.mrb[0].mxu0
  %2010 = vmatprep.mubr.bf16.mxu0 %v1851
  %2011 = vmatmul.mubr.bf16.gmra.mrb[0].mxu0 %v1850
  %v2012 = vpop.f32.mrb[0].mxu0
  %v2013 = vadd.f32 %v1949, %v2012
  %v2014 = vpop.f32.mrb[0].mxu0
  %v2015 = vpop.f32.mrb[0].mxu0
  %v2016 = vadd.f32 %v1952, %v2015
  %v2017 = vpop.f32.mrb[0].mxu0
  %2018 = vmatprep.mubr.bf16.mxu0 %v1858
  %2019 = vmatmul.mubr.bf16.gmra.mrb[0].mxu0 %v1857
  %v2020 = vpop.f32.mrb[0].mxu0
  %v2021 = vadd.f32 %v1957, %v2020
  %v2022 = vpop.f32.mrb[0].mxu0
  %v2023 = vpop.f32.mrb[0].mxu0
  %v2024 = vpop.f32.mrb[0].mxu0
  %2025 = vdwg.mxu0
  %2026 = vmatprep.subr.bf16.mxu0 0
  %2027 = vmatpush1.bf16.msra.mxu0 %v511
  %2028 = vmatprep.subr.bf16.mxu0 0
  %2029 = vmatpush1.bf16.msra.mxu0 %v512
  %2030 = vmatprep.subr.bf16.mxu0 0
  %2031 = vmatpush1.bf16.msra.mxu0 %v513
  %2032 = vmatprep.subr.bf16.mxu0 0
  %2033 = vmatpush1.bf16.msra.mxu0 %v514
  %2034 = vmatprep.subr.bf16.mxu0 0
  %2035 = vmatpush1.bf16.msra.mxu0 %v515
  %2036 = vmatprep.subr.bf16.mxu0 0
  %2037 = vmatpush1.bf16.msra.mxu0 %v516
  %2038 = vmatprep.subr.bf16.mxu0 0
  %2039 = vmatpush1.bf16.msra.mxu0 %v517
  %2040 = vmatprep.subr.bf16.mxu0 0
  %2041 = vmatpush1.bf16.msra.mxu0 %v518
  %2042 = vmatprep.subr.bf16.mxu0 0
  %2043 = vmatpush1.bf16.msra.mxu0 %v519
  %2044 = vmatprep.subr.bf16.mxu0 0
  %2045 = vmatpush1.bf16.msra.mxu0 %v520
  %2046 = vmatprep.subr.bf16.mxu0 0
  %2047 = vmatpush1.bf16.msra.mxu0 %v521
  %2048 = vmatprep.subr.bf16.mxu0 0
  %2049 = vmatpush1.bf16.msra.mxu0 %v522
  %2050 = vmatprep.subr.bf16.mxu0 0
  %2051 = vmatpush1.bf16.msra.mxu0 %v523
  %2052 = vmatprep.subr.bf16.mxu0 0
  %2053 = vmatpush1.bf16.msra.mxu0 %v524
  %2054 = vmatprep.subr.bf16.mxu0 0
  %2055 = vmatpush1.bf16.msra.mxu0 %v525
  %2056 = vmatprep.subr.bf16.mxu0 0
  %2057 = vmatpush1.bf16.msra.mxu0 %v526
  %2058 = vmatprep.mubr.bf16.mxu0 %v1839
  %2059 = vmatmul.mubr.bf16.gmra.mrb[0].mxu0 %v1838
  %v2060 = vpop.f32.mrb[0].mxu0
  %v2061 = vadd.f32 %v1997, %v2060
  %v2062 = vpop.f32.mrb[0].mxu0
  %v2063 = vpop.f32.mrb[0].mxu0
  %v2064 = vadd.f32 %v2000, %v2063
  %v2065 = vpop.f32.mrb[0].mxu0
  %2066 = vmatprep.mubr.bf16.mxu0 %v1846
  %2067 = vmatmul.mubr.bf16.gmra.mrb[0].mxu0 %v1845
  %v2068 = vpop.f32.mrb[0].mxu0
  %v2069 = vadd.f32 %v2005, %v2068
  %v2070 = vpop.f32.mrb[0].mxu0
  %v2071 = vpop.f32.mrb[0].mxu0
  %v2072 = vadd.f32 %v2008, %v2071
  %v2073 = vpop.f32.mrb[0].mxu0
  %2074 = vmatprep.mubr.bf16.mxu0 %v1853
  %2075 = vmatmul.mubr.bf16.gmra.mrb[0].mxu0 %v1852
  %v2076 = vpop.f32.mrb[0].mxu0
  %v2077 = vadd.f32 %v2013, %v2076
  %v2078 = vpop.f32.mrb[0].mxu0
  %v2079 = vpop.f32.mrb[0].mxu0
  %v2080 = vadd.f32 %v2016, %v2079
  %v2081 = vpop.f32.mrb[0].mxu0
  %2082 = vmatprep.mubr.bf16.mxu0 %v1860
  %2083 = vmatmul.mubr.bf16.gmra.mrb[0].mxu0 %v1859
  %v2084 = vpop.f32.mrb[0].mxu0
  %v2085 = vadd.f32 %v2021, %v2084
  %v2086 = vpop.f32.mrb[0].mxu0
  %v2087 = vpop.f32.mrb[0].mxu0
  %v2088 = vpop.f32.mrb[0].mxu0
  %2089 = vdwg.mxu0
  %2090 = vmatprep.subr.bf16.mxu0 0
  %2091 = vmatpush1.bf16.msra.mxu0 %v527
  %2092 = vmatprep.subr.bf16.mxu0 0
  %2093 = vmatpush1.bf16.msra.mxu0 %v528
  %2094 = vmatprep.subr.bf16.mxu0 0
  %2095 = vmatpush1.bf16.msra.mxu0 0
  %2096 = vmatprep.subr.bf16.mxu0 0
  %2097 = vmatpush1.bf16.msra.mxu0 0
  %2098 = vmatprep.subr.bf16.mxu0 0
  %2099 = vmatpush1.bf16.msra.mxu0 0
  %2100 = vmatprep.subr.bf16.mxu0 0
  %2101 = vmatpush1.bf16.msra.mxu0 0
  %2102 = vmatprep.subr.bf16.mxu0 0
  %2103 = vmatpush1.bf16.msra.mxu0 0
  %2104 = vmatprep.subr.bf16.mxu0 0
  %2105 = vmatpush1.bf16.msra.mxu0 0
  %2106 = vmatprep.subr.bf16.mxu0 0
  %2107 = vmatpush1.bf16.msra.mxu0 0
  %2108 = vmatprep.subr.bf16.mxu0 0
  %2109 = vmatpush1.bf16.msra.mxu0 0
  %2110 = vmatprep.subr.bf16.mxu0 0
  %2111 = vmatpush1.bf16.msra.mxu0 0
  %2112 = vmatprep.subr.bf16.mxu0 0
  %2113 = vmatpush1.bf16.msra.mxu0 0
  %2114 = vmatprep.subr.bf16.mxu0 0
  %2115 = vmatpush1.bf16.msra.mxu0 0
  %2116 = vmatprep.subr.bf16.mxu0 0
  %2117 = vmatpush1.bf16.msra.mxu0 0
  %2118 = vmatprep.subr.bf16.mxu0 0
  %2119 = vmatpush1.bf16.msra.mxu0 0
  %2120 = vmatprep.subr.bf16.mxu0 0
  %2121 = vmatpush1.bf16.msra.mxu0 0
  %2122 = vmatprep.mubr.bf16.mxu0 0
  %2123 = vmatmul.mubr.bf16.gmra.mrb[0].mxu0 %v1887
  %v2124 = vpop.f32.mrb[0].mxu0
  %v2125 = vadd.f32 %v2061, %v2124
  %v2126 = vpop.f32.mrb[0].mxu0
  %v2127 = vpop.f32.mrb[0].mxu0
  %v2128 = vadd.f32 %v2064, %v2127
  %v2129 = vpop.f32.mrb[0].mxu0
  %2130 = vmatprep.mubr.bf16.mxu0 0
  %2131 = vmatmul.mubr.bf16.gmra.mrb[0].mxu0 %v1890
  %v2132 = vpop.f32.mrb[0].mxu0
  %v2133 = vadd.f32 %v2069, %v2132
  %v2134 = vpop.f32.mrb[0].mxu0
  %v2135 = vpop.f32.mrb[0].mxu0
  %v2136 = vadd.f32 %v2072, %v2135
  %v2137 = vpop.f32.mrb[0].mxu0
  %2138 = vmatprep.mubr.bf16.mxu0 0
  %2139 = vmatmul.mubr.bf16.gmra.mrb[0].mxu0 %v1893
  %v2140 = vpop.f32.mrb[0].mxu0
  %v2141 = vadd.f32 %v2077, %v2140
  %v2142 = vpop.f32.mrb[0].mxu0
  %v2143 = vpop.f32.mrb[0].mxu0
  %v2144 = vadd.f32 %v2080, %v2143
  %v2145 = vpop.f32.mrb[0].mxu0
  %2146 = vmatprep.mubr.bf16.mxu0 0
  %2147 = vmatmul.mubr.bf16.gmra.mrb[0].mxu0 %v1896
  %v2148 = vpop.f32.mrb[0].mxu0
  %v2149 = vadd.f32 %v2085, %v2148
  %v2150 = vpop.f32.mrb[0].mxu0
  %v2151 = vpop.f32.mrb[0].mxu0
  %v2152 = vpop.f32.mrb[0].mxu0
  %2153 = vdwg.mxu0
  %v2154 = vmax.f32 %v2125, 0.0
  %v2155 = vmax.f32 %v2128, 0.0
  %v2156 = vmax.f32 %v2133, 0.0
  %v2157 = vmax.f32 %v2136, 0.0
  %v2158 = vmax.f32 %v2141, 0.0
  %v2159 = vmax.f32 %v2144, 0.0
  %v2160 = vmax.f32 %v2149, 0.0
  %v2161 = vmax.f32 %v1721, %v2154
  %v2162 = vmax.f32 %v1722, %v2155
  %v2163 = vmax.f32 %v1723, %v2156
  %v2164 = vmax.f32 %v1724, %v2157
  %v2165 = vmax.f32 %v1725, %v2158
  %v2166 = vmax.f32 %v1726, %v2159
  %v2167 = vmax.f32 %v1727, %v2160
  %v2168 = vmax.f32 %v1288, %v2161
  %v2169 = vmax.f32 %v1289, %v2162
  %v2170 = vmax.f32 %v1290, %v2163
  %v2171 = vmax.f32 %v1291, %v2164
  %v2172 = vmax.f32 %v1292, %v2165
  %v2173 = vmax.f32 %v1293, %v2166
  %v2174 = vmax.f32 %v1294, %v2167
  %v2175 = vpack.c.bf16 %v2169, %v2168
  %v2176 = vpack.c.bf16 %v2171, %v2170
  %v2177 = vpack.c.bf16 %v2173, %v2172
  %v2178 = vpack.c.bf16 %v2174, %v2174
  %v2183 = vunpack.c.l.b16 %v2175
  %v2184 = vunpack.c.h.b16 %v2175
  %v2185 = vunpack.c.l.b16 %v2176
  %v2186 = vunpack.c.h.b16 %v2176
  %v2187 = vunpack.c.l.b16 %v2177
  %v2188 = vunpack.c.h.b16 %v2177
  %v2189 = vunpack.c.l.b16 %v2178
  %v2190 = vpack.c.b16 %v2183, %v2183
  %v2191 = vpack.c.b16 %v2184, %v2184
  %v2192 = vpack.c.b16 %v2185, %v2185
  %v2193 = vpack.c.b16 %v2186, %v2186
  %v2194 = vpack.c.b16 %v2187, %v2187
  %v2195 = vpack.c.b16 %v2188, %v2188
  %v2196 = vpack.c.b16 %v2189, %v2189
  %vm2204 = vcmask 257024
  %2205 = vst.msk [vmem:[%s3] sm:$0xf] %vm2204, %v2190
  %2206 = vst.msk [vmem:[%s3 + $0x4] sm:$0xf] %vm2204, %v2191
  %2207 = vst.msk [vmem:[%s3 + $0x8] sm:$0xf] %vm2204, %v2192
  %2208 = vst.msk [vmem:[%s3 + $0xc] sm:$0xf] %vm2204, %v2193
  %2209 = vst.msk [vmem:[%s3 + $0x10] sm:$0xf] %vm2204, %v2194
  %2210 = vst.msk [vmem:[%s3 + $0x14] sm:$0xf] %vm2204, %v2195
  %vm2211 = vcmask 253952
  %2212 = vst.msk [vmem:[%s3 + $0x18] sm:$0x1] %vm2211, %v2196
  // Predicated region
  $region14: #{_lambda_.4} parent=0 // pred_check
    _
  $region15: #{_lambda_.4} parent=0 // pred_check_branch
    %2214 = sbr.rel (0) target = $region17
  $region16: #{_lambda_.4} parent=0 // pred_region
    _
  $region17: #{_lambda_.4} parent=0 // pred_fallthru
    _
  // Predicated region
  $region18: #{_lambda_.4} parent=0 // pred_check
    _
  $region19: #{_lambda_.4} parent=0 // pred_check_branch
    %2216 = sbr.rel (0) target = $region21
  $region20: #{_lambda_.4} parent=0 // pred_region
    _
  $region21: #{_lambda_.4} parent=0 // pred_fallthru
    _

// kernel: _lambda_.5
$region0: #{_lambda_.5}
  #allocation0 [shape = 'u32[]', space=smem, size = 0x4, offset = 0x4, fixed_abs, tag = 'smem constant byte address 0x4 - core index']
  #allocation1 [shape = 'u32[144,128]{1,0:T(1,128)}', space=vmem, size = 0x12000, scoped, tag = 'internal scratch']
  %s0 = inlined_call_operand.vmem [shape: bf16[2,800], index: 0, kind: input, shape index: {}]
  %s1 = inlined_call_operand.vmem [shape: bf16[800,256], index: 1, kind: input, shape index: {}]
  %s2 = inlined_call_operand.vmem [shape: f32[1,256], index: 2, kind: input, shape index: {}]
  %s3 = inlined_call_operand.vmem [shape: bf16[256,10], index: 3, kind: input, shape index: {}]
  %s4 = inlined_call_operand.vmem [shape: f32[1,10], index: 4, kind: input, shape index: {}]
  %s5 = inlined_call_operand.hbm [shape: f32[2,10], index: 5, kind: output, shape index: {}]
  %s6 = sld [smem:[#allocation0]]
  $region30: #{_lambda_.5} parent=0
    _
  %s8 = ssub.s32 1, %s6
  %s9 = scalar_select 0, %s8, %s6
  $region1: #{_lambda_.5} parent=0
    #allocation2 [shape = 'u8[1024]{0}', space=vmem, size = 0x400, scoped, tag = 'output window, operand 0, single buffered']
    #allocation3 [shape = 's32[1]{0}', space=sflag, size = 0x4, scoped, tag = 'scoped memory for _lambda_.5']
    %10 = vsyncpa [#allocation3], 0
    // Predicated region
    $region2: #{_lambda_.5} parent=1 // pred_check
      _
    $region3: #{_lambda_.5} parent=1 // pred_check_branch
      %12 = sbr.rel (0) target = $region5
    $region4: #{_lambda_.5} parent=1 // pred_region
      _
    $region5: #{_lambda_.5} parent=1 // pred_fallthru
      _
    // Predicated region
    $region6: #{_lambda_.5} parent=1 // pred_check
      _
    $region7: #{_lambda_.5} parent=1 // pred_check_branch
      %14 = sbr.rel (0) target = $region9
    $region8: #{_lambda_.5} parent=1 // pred_region
      _
    $region9: #{_lambda_.5} parent=1 // pred_fallthru
      _
    // Predicated region
    $region10: #{_lambda_.5} parent=1 // pred_check
      _
    $region11: #{_lambda_.5} parent=1 // pred_check_branch
      %16 = sbr.rel (0) target = $region13
    $region12: #{_lambda_.5} parent=1 // pred_region
      _
    $region13: #{_lambda_.5} parent=1 // pred_fallthru
      _
    // Predicated region
    $region14: #{_lambda_.5} parent=1 // pred_check
      _
    $region15: #{_lambda_.5} parent=1 // pred_check_branch
      %18 = sbr.rel (0) target = $region17
    $region16: #{_lambda_.5} parent=1 // pred_region
      _
    $region17: #{_lambda_.5} parent=1 // pred_fallthru
      _
    // Predicated region
    $region18: #{_lambda_.5} parent=1 // pred_check
      _
    $region19: #{_lambda_.5} parent=1 // pred_check_branch
      %20 = sbr.rel (0) target = $region21
    $region20: #{_lambda_.5} parent=1 // pred_region
      _
    $region21: #{_lambda_.5} parent=1 // pred_fallthru
      _
    %v22 = vld [vmem:[%s0] sm:$0x7f]
    %v23 = vld [vmem:[%s1] sm:$0xff]
    %v24 = vld [vmem:[%s1 + $0x8] sm:$0xff]
    %v25 = vld [vmem:[%s1 + $0x10] sm:$0xff]
    %v26 = vld [vmem:[%s1 + $0x18] sm:$0xff]
    %v27 = vld [vmem:[%s1 + $0x20] sm:$0xff]
    %v28 = vld [vmem:[%s1 + $0x28] sm:$0xff]
    %v29 = vld [vmem:[%s1 + $0x30] sm:$0xff]
    %v30 = vld [vmem:[%s1 + $0x38] sm:$0xff]
    %v31 = vld [vmem:[%s1 + $0x40] sm:$0xff]
    %v32 = vld [vmem:[%s1 + $0x48] sm:$0xff]
    %v33 = vld [vmem:[%s1 + $0x50] sm:$0xff]
    %v34 = vld [vmem:[%s1 + $0x58] sm:$0xff]
    %v35 = vld [vmem:[%s1 + $0x60] sm:$0xff]
    %v36 = vld [vmem:[%s1 + $0x68] sm:$0xff]
    %v37 = vld [vmem:[%s1 + $0x70] sm:$0xff]
    %v38 = vld [vmem:[%s1 + $0x78] sm:$0xff]
    %v39 = vld [vmem:[%s1 + $0x80] sm:$0xff]
    %v40 = vld [vmem:[%s1 + $0x88] sm:$0xff]
    %v41 = vld [vmem:[%s1 + $0x90] sm:$0xff]
    %v42 = vld [vmem:[%s1 + $0x98] sm:$0xff]
    %v43 = vld [vmem:[%s1 + $0xa0] sm:$0xff]
    %v44 = vld [vmem:[%s1 + $0xa8] sm:$0xff]
    %v45 = vld [vmem:[%s1 + $0xb0] sm:$0xff]
    %v46 = vld [vmem:[%s1 + $0xb8] sm:$0xff]
    %v47 = vld [vmem:[%s1 + $0xc0] sm:$0xff]
    %v48 = vld [vmem:[%s1 + $0xc8] sm:$0xff]
    %v49 = vld [vmem:[%s1 + $0xd0] sm:$0xff]
    %v50 = vld [vmem:[%s1 + $0xd8] sm:$0xff]
    %v51 = vld [vmem:[%s1 + $0xe0] sm:$0xff]
    %v52 = vld [vmem:[%s1 + $0xe8] sm:$0xff]
    %v53 = vld [vmem:[%s1 + $0xf0] sm:$0xff]
    %v54 = vld [vmem:[%s1 + $0xf8] sm:$0xff]
    %v55 = vld [vmem:[%s1 + $0x100] sm:$0xff]
    %v56 = vld [vmem:[%s1 + $0x108] sm:$0xff]
    %v57 = vld [vmem:[%s1 + $0x110] sm:$0xff]
    %v58 = vld [vmem:[%s1 + $0x118] sm:$0xff]
    %v59 = vld [vmem:[%s1 + $0x120] sm:$0xff]
    %v60 = vld [vmem:[%s1 + $0x128] sm:$0xff]
    %v61 = vld [vmem:[%s1 + $0x130] sm:$0xff]
    %v62 = vld [vmem:[%s1 + $0x138] sm:$0xff]
    %v63 = vld [vmem:[%s1 + $0x140] sm:$0xff]
    %v64 = vld [vmem:[%s1 + $0x148] sm:$0xff]
    %v65 = vld [vmem:[%s1 + $0x150] sm:$0xff]
    %v66 = vld [vmem:[%s1 + $0x158] sm:$0xff]
    %v67 = vld [vmem:[%s1 + $0x160] sm:$0xff]
    %v68 = vld [vmem:[%s1 + $0x168] sm:$0xff]
    %v69 = vld [vmem:[%s1 + $0x170] sm:$0xff]
    %v70 = vld [vmem:[%s1 + $0x178] sm:$0xff]
    %v71 = vld [vmem:[%s1 + $0x180] sm:$0xff]
    %v72 = vld [vmem:[%s1 + $0x188] sm:$0xff]
    %v73 = vld [vmem:[%s1 + $0x190] sm:$0xff]
    %v74 = vld [vmem:[%s1 + $0x198] sm:$0xff]
    %v75 = vld [vmem:[%s1 + $0x1a0] sm:$0xff]
    %v76 = vld [vmem:[%s1 + $0x1a8] sm:$0xff]
    %v77 = vld [vmem:[%s1 + $0x1b0] sm:$0xff]
    %v78 = vld [vmem:[%s1 + $0x1b8] sm:$0xff]
    %v79 = vld [vmem:[%s1 + $0x1c0] sm:$0xff]
    %v80 = vld [vmem:[%s1 + $0x1c8] sm:$0xff]
    %v81 = vld [vmem:[%s1 + $0x1d0] sm:$0xff]
    %v82 = vld [vmem:[%s1 + $0x1d8] sm:$0xff]
    %v83 = vld [vmem:[%s1 + $0x1e0] sm:$0xff]
    %v84 = vld [vmem:[%s1 + $0x1e8] sm:$0xff]
    %v85 = vld [vmem:[%s1 + $0x1f0] sm:$0xff]
    %v86 = vld [vmem:[%s1 + $0x1f8] sm:$0xff]
    %v87 = vld [vmem:[%s1 + $0x200] sm:$0xff]
    %v88 = vld [vmem:[%s1 + $0x208] sm:$0xff]
    %v89 = vld [vmem:[%s1 + $0x210] sm:$0xff]
    %v90 = vld [vmem:[%s1 + $0x218] sm:$0xff]
    %v91 = vld [vmem:[%s1 + $0x220] sm:$0xff]
    %v92 = vld [vmem:[%s1 + $0x228] sm:$0xff]
    %v93 = vld [vmem:[%s1 + $0x230] sm:$0xff]
    %v94 = vld [vmem:[%s1 + $0x238] sm:$0xff]
    %v95 = vld [vmem:[%s1 + $0x240] sm:$0xff]
    %v96 = vld [vmem:[%s1 + $0x248] sm:$0xff]
    %v97 = vld [vmem:[%s1 + $0x250] sm:$0xff]
    %v98 = vld [vmem:[%s1 + $0x258] sm:$0xff]
    %v99 = vld [vmem:[%s1 + $0x260] sm:$0xff]
    %v100 = vld [vmem:[%s1 + $0x268] sm:$0xff]
    %v101 = vld [vmem:[%s1 + $0x270] sm:$0xff]
    %v102 = vld [vmem:[%s1 + $0x278] sm:$0xff]
    %v103 = vld [vmem:[%s1 + $0x280] sm:$0xff]
    %v104 = vld [vmem:[%s1 + $0x288] sm:$0xff]
    %v105 = vld [vmem:[%s1 + $0x290] sm:$0xff]
    %v106 = vld [vmem:[%s1 + $0x298] sm:$0xff]
    %v107 = vld [vmem:[%s1 + $0x2a0] sm:$0xff]
    %v108 = vld [vmem:[%s1 + $0x2a8] sm:$0xff]
    %v109 = vld [vmem:[%s1 + $0x2b0] sm:$0xff]
    %v110 = vld [vmem:[%s1 + $0x2b8] sm:$0xff]
    %v111 = vld [vmem:[%s1 + $0x2c0] sm:$0xff]
    %v112 = vld [vmem:[%s1 + $0x2c8] sm:$0xff]
    %v113 = vld [vmem:[%s1 + $0x2d0] sm:$0xff]
    %v114 = vld [vmem:[%s1 + $0x2d8] sm:$0xff]
    %v115 = vld [vmem:[%s1 + $0x2e0] sm:$0xff]
    %v116 = vld [vmem:[%s1 + $0x2e8] sm:$0xff]
    %v117 = vld [vmem:[%s1 + $0x2f0] sm:$0xff]
    %v118 = vld [vmem:[%s1 + $0x2f8] sm:$0xff]
    %v119 = vld [vmem:[%s1 + $0x300] sm:$0xff]
    %v120 = vld [vmem:[%s1 + $0x308] sm:$0xff]
    %v121 = vld [vmem:[%s1 + $0x310] sm:$0xff]
    %v122 = vld [vmem:[%s1 + $0x318] sm:$0xff]
    %v123 = vld [vmem:[%s2] sm:$0x3]
    %v125 = vlaneseq
    %v126 = vshrl.u32 %v125, 7
    %v127 = vsub.s32 0, %v126
    %v128 = vrot.slane %v123, %v127
    %v129 = vlaneseq
    %v130 = vshrl.u32 %v129, 7
    %v131 = vsub.s32 1, %v130
    %v132 = vrot.slane %v123, %v131
    %v136 = vcombine.high %v22, %v22
    %v138 = vunpack.c.l.s4 1966171168
    %v139 = vunpack.c.0.s8 %v138
    %v140 = vlaneseq
    %v141 = vshrl.u32 %v140, 7
    %v142 = vsub.s32 %v139, %v141
    %v143 = vrot.slane %v22, %v142
    %v145 = vunpack.c.l.s4 1966171168
    %v146 = vunpack.c.0.s8 %v145
    %v147 = vlaneseq
    %v148 = vshrl.u32 %v147, 7
    %v149 = vsub.s32 %v146, %v148
    %v150 = vrot.slane %v136, %v149
    %v151 = vcombine.high %v143, %v143
    %v152 = vcombine.high %v150, %v150
    %v154 = vunpack.c.l.s4 1966171168
    %v155 = vunpack.c.0.s8 %v154
    %v156 = vlaneseq
    %v157 = vshrl.u32 %v156, 7
    %v158 = vsub.s32 %v155, %v157
    %v159 = vrot.slane %v143, %v158
    %v161 = vunpack.c.l.s4 1966171168
    %v162 = vunpack.c.0.s8 %v161
    %v163 = vlaneseq
    %v164 = vshrl.u32 %v163, 7
    %v165 = vsub.s32 %v162, %v164
    %v166 = vrot.slane %v150, %v165
    %v168 = vunpack.c.l.s4 1966171168
    %v169 = vunpack.c.0.s8 %v168
    %v170 = vlaneseq
    %v171 = vshrl.u32 %v170, 7
    %v172 = vsub.s32 %v169, %v171
    %v173 = vrot.slane %v151, %v172
    %v175 = vunpack.c.l.s4 1966171168
    %v176 = vunpack.c.0.s8 %v175
    %v177 = vlaneseq
    %v178 = vshrl.u32 %v177, 7
    %v179 = vsub.s32 %v176, %v178
    %v180 = vrot.slane %v152, %v179
    %v181 = vcombine.high %v159, %v159
    %v182 = vcombine.high %v166, %v166
    %v183 = vcombine.high %v173, %v173
    %v290 = vunpack.c.l.b16 %v23
    %v291 = vunpack.c.h.b16 %v23
    %v292 = vunpack.c.l.b16 %v24
    %v293 = vunpack.c.h.b16 %v24
    %v294 = vunpack.c.l.b16 %v25
    %v295 = vunpack.c.h.b16 %v25
    %v296 = vunpack.c.l.b16 %v26
    %v297 = vunpack.c.h.b16 %v26
    %v298 = vunpack.c.l.b16 %v27
    %v299 = vunpack.c.h.b16 %v27
    %v300 = vunpack.c.l.b16 %v28
    %v301 = vunpack.c.h.b16 %v28
    %v302 = vunpack.c.l.b16 %v29
    %v303 = vunpack.c.h.b16 %v29
    %v304 = vunpack.c.l.b16 %v30
    %v305 = vunpack.c.h.b16 %v30
    %v306 = vunpack.c.l.b16 %v31
    %v307 = vunpack.c.h.b16 %v31
    %v308 = vunpack.c.l.b16 %v32
    %v309 = vunpack.c.h.b16 %v32
    %v310 = vunpack.c.l.b16 %v33
    %v311 = vunpack.c.h.b16 %v33
    %v312 = vunpack.c.l.b16 %v34
    %v313 = vunpack.c.h.b16 %v34
    %v314 = vunpack.c.l.b16 %v35
    %v315 = vunpack.c.h.b16 %v35
    %v316 = vunpack.c.l.b16 %v36
    %v317 = vunpack.c.h.b16 %v36
    %v318 = vunpack.c.l.b16 %v37
    %v319 = vunpack.c.h.b16 %v37
    %v320 = vunpack.c.l.b16 %v38
    %v321 = vunpack.c.h.b16 %v38
    %v322 = vunpack.c.l.b16 %v39
    %v323 = vunpack.c.h.b16 %v39
    %v324 = vunpack.c.l.b16 %v40
    %v325 = vunpack.c.h.b16 %v40
    %v326 = vunpack.c.l.b16 %v41
    %v327 = vunpack.c.h.b16 %v41
    %v328 = vunpack.c.l.b16 %v42
    %v329 = vunpack.c.h.b16 %v42
    %v330 = vunpack.c.l.b16 %v43
    %v331 = vunpack.c.h.b16 %v43
    %v332 = vunpack.c.l.b16 %v44
    %v333 = vunpack.c.h.b16 %v44
    %v334 = vunpack.c.l.b16 %v45
    %v335 = vunpack.c.h.b16 %v45
    %v336 = vunpack.c.l.b16 %v46
    %v337 = vunpack.c.h.b16 %v46
    %v338 = vunpack.c.l.b16 %v47
    %v339 = vunpack.c.h.b16 %v47
    %v340 = vunpack.c.l.b16 %v48
    %v341 = vunpack.c.h.b16 %v48
    %v342 = vunpack.c.l.b16 %v49
    %v343 = vunpack.c.h.b16 %v49
    %v344 = vunpack.c.l.b16 %v50
    %v345 = vunpack.c.h.b16 %v50
    %v346 = vunpack.c.l.b16 %v51
    %v347 = vunpack.c.h.b16 %v51
    %v348 = vunpack.c.l.b16 %v52
    %v349 = vunpack.c.h.b16 %v52
    %v350 = vunpack.c.l.b16 %v53
    %v351 = vunpack.c.h.b16 %v53
    %v352 = vunpack.c.l.b16 %v54
    %v353 = vunpack.c.h.b16 %v54
    %v354 = vunpack.c.l.b16 %v55
    %v355 = vunpack.c.h.b16 %v55
    %v356 = vunpack.c.l.b16 %v56
    %v357 = vunpack.c.h.b16 %v56
    %v358 = vunpack.c.l.b16 %v57
    %v359 = vunpack.c.h.b16 %v57
    %v360 = vunpack.c.l.b16 %v58
    %v361 = vunpack.c.h.b16 %v58
    %v362 = vunpack.c.l.b16 %v59
    %v363 = vunpack.c.h.b16 %v59
    %v364 = vunpack.c.l.b16 %v60
    %v365 = vunpack.c.h.b16 %v60
    %v366 = vunpack.c.l.b16 %v61
    %v367 = vunpack.c.h.b16 %v61
    %v368 = vunpack.c.l.b16 %v62
    %v369 = vunpack.c.h.b16 %v62
    %v370 = vunpack.c.l.b16 %v63
    %v371 = vunpack.c.h.b16 %v63
    %v372 = vunpack.c.l.b16 %v64
    %v373 = vunpack.c.h.b16 %v64
    %v374 = vunpack.c.l.b16 %v65
    %v375 = vunpack.c.h.b16 %v65
    %v376 = vunpack.c.l.b16 %v66
    %v377 = vunpack.c.h.b16 %v66
    %v378 = vunpack.c.l.b16 %v67
    %v379 = vunpack.c.h.b16 %v67
    %v380 = vunpack.c.l.b16 %v68
    %v381 = vunpack.c.h.b16 %v68
    %v382 = vunpack.c.l.b16 %v69
    %v383 = vunpack.c.h.b16 %v69
    %v384 = vunpack.c.l.b16 %v70
    %v385 = vunpack.c.h.b16 %v70
    %v386 = vunpack.c.l.b16 %v71
    %v387 = vunpack.c.h.b16 %v71
    %v388 = vunpack.c.l.b16 %v72
    %v389 = vunpack.c.h.b16 %v72
    %v390 = vunpack.c.l.b16 %v73
    %v391 = vunpack.c.h.b16 %v73
    %v392 = vunpack.c.l.b16 %v74
    %v393 = vunpack.c.h.b16 %v74
    %v394 = vunpack.c.l.b16 %v75
    %v395 = vunpack.c.h.b16 %v75
    %v396 = vunpack.c.l.b16 %v76
    %v397 = vunpack.c.h.b16 %v76
    %v398 = vunpack.c.l.b16 %v77
    %v399 = vunpack.c.h.b16 %v77
    %v400 = vunpack.c.l.b16 %v78
    %v401 = vunpack.c.h.b16 %v78
    %v402 = vunpack.c.l.b16 %v79
    %v403 = vunpack.c.h.b16 %v79
    %v404 = vunpack.c.l.b16 %v80
    %v405 = vunpack.c.h.b16 %v80
    %v406 = vunpack.c.l.b16 %v81
    %v407 = vunpack.c.h.b16 %v81
    %v408 = vunpack.c.l.b16 %v82
    %v409 = vunpack.c.h.b16 %v82
    %v410 = vunpack.c.l.b16 %v83
    %v411 = vunpack.c.h.b16 %v83
    %v412 = vunpack.c.l.b16 %v84
    %v413 = vunpack.c.h.b16 %v84
    %v414 = vunpack.c.l.b16 %v85
    %v415 = vunpack.c.h.b16 %v85
    %v416 = vunpack.c.l.b16 %v86
    %v417 = vunpack.c.h.b16 %v86
    %v418 = vunpack.c.l.b16 %v87
    %v419 = vunpack.c.h.b16 %v87
    %v420 = vunpack.c.l.b16 %v88
    %v421 = vunpack.c.h.b16 %v88
    %v422 = vunpack.c.l.b16 %v89
    %v423 = vunpack.c.h.b16 %v89
    %v424 = vunpack.c.l.b16 %v90
    %v425 = vunpack.c.h.b16 %v90
    %v426 = vunpack.c.l.b16 %v91
    %v427 = vunpack.c.h.b16 %v91
    %v428 = vunpack.c.l.b16 %v92
    %v429 = vunpack.c.h.b16 %v92
    %v430 = vunpack.c.l.b16 %v93
    %v431 = vunpack.c.h.b16 %v93
    %v432 = vunpack.c.l.b16 %v94
    %v433 = vunpack.c.h.b16 %v94
    %v434 = vunpack.c.l.b16 %v95
    %v435 = vunpack.c.h.b16 %v95
    %v436 = vunpack.c.l.b16 %v96
    %v437 = vunpack.c.h.b16 %v96
    %v438 = vunpack.c.l.b16 %v97
    %v439 = vunpack.c.h.b16 %v97
    %v440 = vunpack.c.l.b16 %v98
    %v441 = vunpack.c.h.b16 %v98
    %v442 = vunpack.c.l.b16 %v99
    %v443 = vunpack.c.h.b16 %v99
    %v444 = vunpack.c.l.b16 %v100
    %v445 = vunpack.c.h.b16 %v100
    %v446 = vunpack.c.l.b16 %v101
    %v447 = vunpack.c.h.b16 %v101
    %v448 = vunpack.c.l.b16 %v102
    %v449 = vunpack.c.h.b16 %v102
    %v450 = vunpack.c.l.b16 %v103
    %v451 = vunpack.c.h.b16 %v103
    %v452 = vunpack.c.l.b16 %v104
    %v453 = vunpack.c.h.b16 %v104
    %v454 = vunpack.c.l.b16 %v105
    %v455 = vunpack.c.h.b16 %v105
    %v456 = vunpack.c.l.b16 %v106
    %v457 = vunpack.c.h.b16 %v106
    %v458 = vunpack.c.l.b16 %v107
    %v459 = vunpack.c.h.b16 %v107
    %v460 = vunpack.c.l.b16 %v108
    %v461 = vunpack.c.h.b16 %v108
    %v462 = vunpack.c.l.b16 %v109
    %v463 = vunpack.c.h.b16 %v109
    %v464 = vunpack.c.l.b16 %v110
    %v465 = vunpack.c.h.b16 %v110
    %v466 = vunpack.c.l.b16 %v111
    %v467 = vunpack.c.h.b16 %v111
    %v468 = vunpack.c.l.b16 %v112
    %v469 = vunpack.c.h.b16 %v112
    %v470 = vunpack.c.l.b16 %v113
    %v471 = vunpack.c.h.b16 %v113
    %v472 = vunpack.c.l.b16 %v114
    %v473 = vunpack.c.h.b16 %v114
    %v474 = vunpack.c.l.b16 %v115
    %v475 = vunpack.c.h.b16 %v115
    %v476 = vunpack.c.l.b16 %v116
    %v477 = vunpack.c.h.b16 %v116
    %v478 = vunpack.c.l.b16 %v117
    %v479 = vunpack.c.h.b16 %v117
    %v480 = vunpack.c.l.b16 %v118
    %v481 = vunpack.c.h.b16 %v118
    %v482 = vunpack.c.l.b16 %v119
    %v483 = vunpack.c.h.b16 %v119
    %v484 = vunpack.c.l.b16 %v120
    %v485 = vunpack.c.h.b16 %v120
    %v486 = vunpack.c.l.b16 %v121
    %v487 = vunpack.c.h.b16 %v121
    %v488 = vunpack.c.l.b16 %v122
    %v489 = vunpack.c.h.b16 %v122
    %v490 = vpack.c.b16 %v292, %v290
    %v491 = vpack.c.b16 %v293, %v291
    %v492 = vpack.c.b16 %v296, %v294
    %v493 = vpack.c.b16 %v297, %v295
    %v494 = vpack.c.b16 %v300, %v298
    %v495 = vpack.c.b16 %v301, %v299
    %v496 = vpack.c.b16 %v304, %v302
    %v497 = vpack.c.b16 %v305, %v303
    %v498 = vpack.c.b16 %v308, %v306
    %v499 = vpack.c.b16 %v309, %v307
    %v500 = vpack.c.b16 %v312, %v310
    %v501 = vpack.c.b16 %v313, %v311
    %v502 = vpack.c.b16 %v316, %v314
    %v503 = vpack.c.b16 %v317, %v315
    %v504 = vpack.c.b16 %v320, %v318
    %v505 = vpack.c.b16 %v321, %v319
    %v506 = vpack.c.b16 %v324, %v322
    %v507 = vpack.c.b16 %v325, %v323
    %v508 = vpack.c.b16 %v328, %v326
    %v509 = vpack.c.b16 %v329, %v327
    %v510 = vpack.c.b16 %v332, %v330
    %v511 = vpack.c.b16 %v333, %v331
    %v512 = vpack.c.b16 %v336, %v334
    %v513 = vpack.c.b16 %v337, %v335
    %v514 = vpack.c.b16 %v340, %v338
    %v515 = vpack.c.b16 %v341, %v339
    %v516 = vpack.c.b16 %v344, %v342
    %v517 = vpack.c.b16 %v345, %v343
    %v518 = vpack.c.b16 %v348, %v346
    %v519 = vpack.c.b16 %v349, %v347
    %v520 = vpack.c.b16 %v352, %v350
    %v521 = vpack.c.b16 %v353, %v351
    %v522 = vpack.c.b16 %v356, %v354
    %v523 = vpack.c.b16 %v357, %v355
    %v524 = vpack.c.b16 %v360, %v358
    %v525 = vpack.c.b16 %v361, %v359
    %v526 = vpack.c.b16 %v364, %v362
    %v527 = vpack.c.b16 %v365, %v363
    %v528 = vpack.c.b16 %v368, %v366
    %v529 = vpack.c.b16 %v369, %v367
    %v530 = vpack.c.b16 %v372, %v370
    %v531 = vpack.c.b16 %v373, %v371
    %v532 = vpack.c.b16 %v376, %v374
    %v533 = vpack.c.b16 %v377, %v375
    %v534 = vpack.c.b16 %v380, %v378
    %v535 = vpack.c.b16 %v381, %v379
    %v536 = vpack.c.b16 %v384, %v382
    %v537 = vpack.c.b16 %v385, %v383
    %v538 = vpack.c.b16 %v388, %v386
    %v539 = vpack.c.b16 %v389, %v387
    %v540 = vpack.c.b16 %v392, %v390
    %v541 = vpack.c.b16 %v393, %v391
    %v542 = vpack.c.b16 %v396, %v394
    %v543 = vpack.c.b16 %v397, %v395
    %v544 = vpack.c.b16 %v400, %v398
    %v545 = vpack.c.b16 %v401, %v399
    %v546 = vpack.c.b16 %v404, %v402
    %v547 = vpack.c.b16 %v405, %v403
    %v548 = vpack.c.b16 %v408, %v406
    %v549 = vpack.c.b16 %v409, %v407
    %v550 = vpack.c.b16 %v412, %v410
    %v551 = vpack.c.b16 %v413, %v411
    %v552 = vpack.c.b16 %v416, %v414
    %v553 = vpack.c.b16 %v417, %v415
    %v554 = vpack.c.b16 %v420, %v418
    %v555 = vpack.c.b16 %v421, %v419
    %v556 = vpack.c.b16 %v424, %v422
    %v557 = vpack.c.b16 %v425, %v423
    %v558 = vpack.c.b16 %v428, %v426
    %v559 = vpack.c.b16 %v429, %v427
    %v560 = vpack.c.b16 %v432, %v430
    %v561 = vpack.c.b16 %v433, %v431
    %v562 = vpack.c.b16 %v436, %v434
    %v563 = vpack.c.b16 %v437, %v435
    %v564 = vpack.c.b16 %v440, %v438
    %v565 = vpack.c.b16 %v441, %v439
    %v566 = vpack.c.b16 %v444, %v442
    %v567 = vpack.c.b16 %v445, %v443
    %v568 = vpack.c.b16 %v448, %v446
    %v569 = vpack.c.b16 %v449, %v447
    %v570 = vpack.c.b16 %v452, %v450
    %v571 = vpack.c.b16 %v453, %v451
    %v572 = vpack.c.b16 %v456, %v454
    %v573 = vpack.c.b16 %v457, %v455
    %v574 = vpack.c.b16 %v460, %v458
    %v575 = vpack.c.b16 %v461, %v459
    %v576 = vpack.c.b16 %v464, %v462
    %v577 = vpack.c.b16 %v465, %v463
    %v578 = vpack.c.b16 %v468, %v466
    %v579 = vpack.c.b16 %v469, %v467
    %v580 = vpack.c.b16 %v472, %v470
    %v581 = vpack.c.b16 %v473, %v471
    %v582 = vpack.c.b16 %v476, %v474
    %v583 = vpack.c.b16 %v477, %v475
    %v584 = vpack.c.b16 %v480, %v478
    %v585 = vpack.c.b16 %v481, %v479
    %v586 = vpack.c.b16 %v484, %v482
    %v587 = vpack.c.b16 %v485, %v483
    %v588 = vpack.c.b16 %v488, %v486
    %v589 = vpack.c.b16 %v489, %v487
    %vm690 = vcmask 261120
    %v692 = vsel %vm690, %v182, 0
    %694 = vmatprep.subr.bf16.mxu0 %v491
    %695 = vmatpush1.bf16.msra.mxu0 %v490
    %696 = vmatprep.subr.bf16.mxu0 %v493
    %697 = vmatpush1.bf16.msra.mxu0 %v492
    %698 = vmatprep.subr.bf16.mxu0 %v495
    %699 = vmatpush1.bf16.msra.mxu0 %v494
    %700 = vmatprep.subr.bf16.mxu0 %v497
    %701 = vmatpush1.bf16.msra.mxu0 %v496
    %702 = vmatprep.subr.bf16.mxu0 %v499
    %703 = vmatpush1.bf16.msra.mxu0 %v498
    %704 = vmatprep.subr.bf16.mxu0 %v501
    %705 = vmatpush1.bf16.msra.mxu0 %v500
    %706 = vmatprep.subr.bf16.mxu0 %v503
    %707 = vmatpush1.bf16.msra.mxu0 %v502
    %708 = vmatprep.subr.bf16.mxu0 %v505
    %709 = vmatpush1.bf16.msra.mxu0 %v504
    %710 = vmatprep.subr.bf16.mxu0 %v507
    %711 = vmatpush1.bf16.msra.mxu0 %v506
    %712 = vmatprep.subr.bf16.mxu0 %v509
    %713 = vmatpush1.bf16.msra.mxu0 %v508
    %714 = vmatprep.subr.bf16.mxu0 %v511
    %715 = vmatpush1.bf16.msra.mxu0 %v510
    %716 = vmatprep.subr.bf16.mxu0 %v513
    %717 = vmatpush1.bf16.msra.mxu0 %v512
    %718 = vmatprep.subr.bf16.mxu0 %v515
    %719 = vmatpush1.bf16.msra.mxu0 %v514
    %720 = vmatprep.subr.bf16.mxu0 %v517
    %721 = vmatpush1.bf16.msra.mxu0 %v516
    %722 = vmatprep.subr.bf16.mxu0 %v519
    %723 = vmatpush1.bf16.msra.mxu0 %v518
    %724 = vmatprep.subr.bf16.mxu0 %v521
    %725 = vmatpush1.bf16.msra.mxu0 %v520
    %726 = vmatprep.mubr.bf16.mxu0 %v173
    %727 = vmatmul.mubr.bf16.gmra.mrb[0].mxu0 %v159
    %v728 = vpop.f32.mrb[0].mxu0
    %v729 = vadd.f32 %v128, %v728
    %v730 = vpop.f32.mrb[0].mxu0
    %v731 = vadd.f32 %v132, %v730
    %v732 = vpop.f32.mrb[0].mxu0
    %v733 = vpop.f32.mrb[0].mxu0
    %734 = vdwg.mxu0
    %735 = vmatprep.subr.bf16.mxu0 %v523
    %736 = vmatpush1.bf16.msra.mxu0 %v522
    %737 = vmatprep.subr.bf16.mxu0 %v525
    %738 = vmatpush1.bf16.msra.mxu0 %v524
    %739 = vmatprep.subr.bf16.mxu0 %v527
    %740 = vmatpush1.bf16.msra.mxu0 %v526
    %741 = vmatprep.subr.bf16.mxu0 %v529
    %742 = vmatpush1.bf16.msra.mxu0 %v528
    %743 = vmatprep.subr.bf16.mxu0 %v531
    %744 = vmatpush1.bf16.msra.mxu0 %v530
    %745 = vmatprep.subr.bf16.mxu0 %v533
    %746 = vmatpush1.bf16.msra.mxu0 %v532
    %747 = vmatprep.subr.bf16.mxu0 %v535
    %748 = vmatpush1.bf16.msra.mxu0 %v534
    %749 = vmatprep.subr.bf16.mxu0 %v537
    %750 = vmatpush1.bf16.msra.mxu0 %v536
    %751 = vmatprep.subr.bf16.mxu0 %v539
    %752 = vmatpush1.bf16.msra.mxu0 %v538
    %753 = vmatprep.subr.bf16.mxu0 %v541
    %754 = vmatpush1.bf16.msra.mxu0 %v540
    %755 = vmatprep.subr.bf16.mxu0 %v543
    %756 = vmatpush1.bf16.msra.mxu0 %v542
    %757 = vmatprep.subr.bf16.mxu0 %v545
    %758 = vmatpush1.bf16.msra.mxu0 %v544
    %759 = vmatprep.subr.bf16.mxu0 %v547
    %760 = vmatpush1.bf16.msra.mxu0 %v546
    %761 = vmatprep.subr.bf16.mxu0 %v549
    %762 = vmatpush1.bf16.msra.mxu0 %v548
    %763 = vmatprep.subr.bf16.mxu0 %v551
    %764 = vmatpush1.bf16.msra.mxu0 %v550
    %765 = vmatprep.subr.bf16.mxu0 %v553
    %766 = vmatpush1.bf16.msra.mxu0 %v552
    %767 = vmatprep.mubr.bf16.mxu0 %v183
    %768 = vmatmul.mubr.bf16.gmra.mrb[0].mxu0 %v181
    %v769 = vpop.f32.mrb[0].mxu0
    %v770 = vadd.f32 %v729, %v769
    %v771 = vpop.f32.mrb[0].mxu0
    %v772 = vadd.f32 %v731, %v771
    %v773 = vpop.f32.mrb[0].mxu0
    %v774 = vpop.f32.mrb[0].mxu0
    %775 = vdwg.mxu0
    %776 = vmatprep.subr.bf16.mxu0 %v555
    %777 = vmatpush1.bf16.msra.mxu0 %v554
    %778 = vmatprep.subr.bf16.mxu0 %v557
    %779 = vmatpush1.bf16.msra.mxu0 %v556
    %780 = vmatprep.subr.bf16.mxu0 %v559
    %781 = vmatpush1.bf16.msra.mxu0 %v558
    %782 = vmatprep.subr.bf16.mxu0 %v561
    %783 = vmatpush1.bf16.msra.mxu0 %v560
    %784 = vmatprep.subr.bf16.mxu0 %v563
    %785 = vmatpush1.bf16.msra.mxu0 %v562
    %786 = vmatprep.subr.bf16.mxu0 %v565
    %787 = vmatpush1.bf16.msra.mxu0 %v564
    %788 = vmatprep.subr.bf16.mxu0 %v567
    %789 = vmatpush1.bf16.msra.mxu0 %v566
    %790 = vmatprep.subr.bf16.mxu0 %v569
    %791 = vmatpush1.bf16.msra.mxu0 %v568
    %792 = vmatprep.subr.bf16.mxu0 %v571
    %793 = vmatpush1.bf16.msra.mxu0 %v570
    %794 = vmatprep.subr.bf16.mxu0 %v573
    %795 = vmatpush1.bf16.msra.mxu0 %v572
    %796 = vmatprep.subr.bf16.mxu0 %v575
    %797 = vmatpush1.bf16.msra.mxu0 %v574
    %798 = vmatprep.subr.bf16.mxu0 %v577
    %799 = vmatpush1.bf16.msra.mxu0 %v576
    %800 = vmatprep.subr.bf16.mxu0 %v579
    %801 = vmatpush1.bf16.msra.mxu0 %v578
    %802 = vmatprep.subr.bf16.mxu0 %v581
    %803 = vmatpush1.bf16.msra.mxu0 %v580
    %804 = vmatprep.subr.bf16.mxu0 %v583
    %805 = vmatpush1.bf16.msra.mxu0 %v582
    %806 = vmatprep.subr.bf16.mxu0 %v585
    %807 = vmatpush1.bf16.msra.mxu0 %v584
    %808 = vmatprep.mubr.bf16.mxu0 %v180
    %809 = vmatmul.mubr.bf16.gmra.mrb[0].mxu0 %v166
    %v810 = vpop.f32.mrb[0].mxu0
    %v811 = vadd.f32 %v770, %v810
    %v812 = vpop.f32.mrb[0].mxu0
    %v813 = vadd.f32 %v772, %v812
    %v814 = vpop.f32.mrb[0].mxu0
    %v815 = vpop.f32.mrb[0].mxu0
    %816 = vdwg.mxu0
    %817 = vmatprep.subr.bf16.mxu0 %v587
    %818 = vmatpush1.bf16.msra.mxu0 %v586
    %819 = vmatprep.subr.bf16.mxu0 %v589
    %820 = vmatpush1.bf16.msra.mxu0 %v588
    %821 = vmatprep.subr.bf16.mxu0 0
    %822 = vmatpush1.bf16.msra.mxu0 0
    %823 = vmatprep.subr.bf16.mxu0 0
    %824 = vmatpush1.bf16.msra.mxu0 0
    %825 = vmatprep.subr.bf16.mxu0 0
    %826 = vmatpush1.bf16.msra.mxu0 0
    %827 = vmatprep.subr.bf16.mxu0 0
    %828 = vmatpush1.bf16.msra.mxu0 0
    %829 = vmatprep.subr.bf16.mxu0 0
    %830 = vmatpush1.bf16.msra.mxu0 0
    %831 = vmatprep.subr.bf16.mxu0 0
    %832 = vmatpush1.bf16.msra.mxu0 0
    %833 = vmatprep.subr.bf16.mxu0 0
    %834 = vmatpush1.bf16.msra.mxu0 0
    %835 = vmatprep.subr.bf16.mxu0 0
    %836 = vmatpush1.bf16.msra.mxu0 0
    %837 = vmatprep.subr.bf16.mxu0 0
    %838 = vmatpush1.bf16.msra.mxu0 0
    %839 = vmatprep.subr.bf16.mxu0 0
    %840 = vmatpush1.bf16.msra.mxu0 0
    %841 = vmatprep.subr.bf16.mxu0 0
    %842 = vmatpush1.bf16.msra.mxu0 0
    %843 = vmatprep.subr.bf16.mxu0 0
    %844 = vmatpush1.bf16.msra.mxu0 0
    %845 = vmatprep.subr.bf16.mxu0 0
    %846 = vmatpush1.bf16.msra.mxu0 0
    %847 = vmatprep.subr.bf16.mxu0 0
    %848 = vmatpush1.bf16.msra.mxu0 0
    %849 = vmatprep.mubr.bf16.mxu0 0
    %850 = vmatmul.mubr.bf16.gmra.mrb[0].mxu0 %v692
    %v851 = vpop.f32.mrb[0].mxu0
    %v852 = vadd.f32 %v811, %v851
    %v853 = vpop.f32.mrb[0].mxu0
    %v854 = vadd.f32 %v813, %v853
    %v855 = vpop.f32.mrb[0].mxu0
    %v856 = vpop.f32.mrb[0].mxu0
    %857 = vdwg.mxu0
    %v858 = vmax.f32 %v852, 0.0
    %v859 = vmax.f32 %v854, 0.0
    %v860 = vpack.c.bf16 %v858, %v858
    %v861 = vpack.c.bf16 %v859, %v859
    %v862 = vld [vmem:[%s3] sm:$0xf]
    %v863 = vld [vmem:[%s3 + $0x4] sm:$0xf]
    %v864 = vld [vmem:[%s3 + $0x8] sm:$0xf]
    %v865 = vld [vmem:[%s3 + $0xc] sm:$0xf]
    %v866 = vld [vmem:[%s3 + $0x10] sm:$0xf]
    %v867 = vld [vmem:[%s3 + $0x14] sm:$0xf]
    %v868 = vld [vmem:[%s3 + $0x18] sm:$0xf]
    %v869 = vld [vmem:[%s3 + $0x1c] sm:$0xf]
    %v870 = vld [vmem:[%s3 + $0x20] sm:$0xf]
    %v871 = vld [vmem:[%s3 + $0x24] sm:$0xf]
    %v872 = vld [vmem:[%s3 + $0x28] sm:$0xf]
    %v873 = vld [vmem:[%s3 + $0x2c] sm:$0xf]
    %v874 = vld [vmem:[%s3 + $0x30] sm:$0xf]
    %v875 = vld [vmem:[%s3 + $0x34] sm:$0xf]
    %v876 = vld [vmem:[%s3 + $0x38] sm:$0xf]
    %v877 = vld [vmem:[%s3 + $0x3c] sm:$0xf]
    %v878 = vld [vmem:[%s3 + $0x40] sm:$0xf]
    %v879 = vld [vmem:[%s3 + $0x44] sm:$0xf]
    %v880 = vld [vmem:[%s3 + $0x48] sm:$0xf]
    %v881 = vld [vmem:[%s3 + $0x4c] sm:$0xf]
    %v882 = vld [vmem:[%s3 + $0x50] sm:$0xf]
    %v883 = vld [vmem:[%s3 + $0x54] sm:$0xf]
    %v884 = vld [vmem:[%s3 + $0x58] sm:$0xf]
    %v885 = vld [vmem:[%s3 + $0x5c] sm:$0xf]
    %v886 = vld [vmem:[%s3 + $0x60] sm:$0xf]
    %v887 = vld [vmem:[%s3 + $0x64] sm:$0xf]
    %v888 = vld [vmem:[%s3 + $0x68] sm:$0xf]
    %v889 = vld [vmem:[%s3 + $0x6c] sm:$0xf]
    %v890 = vld [vmem:[%s3 + $0x70] sm:$0xf]
    %v891 = vld [vmem:[%s3 + $0x74] sm:$0xf]
    %v892 = vld [vmem:[%s3 + $0x78] sm:$0xf]
    %v893 = vld [vmem:[%s3 + $0x7c] sm:$0xf]
    %v894 = vld [vmem:[%s4] sm:$0x1]
    %v896 = vlaneseq
    %v897 = vshrl.u32 %v896, 7
    %v898 = vsub.s32 0, %v897
    %v899 = vrot.slane %v894, %v898
    %v933 = vunpack.c.l.b16 %v862
    %v934 = vunpack.c.l.b16 %v863
    %v935 = vunpack.c.l.b16 %v864
    %v936 = vunpack.c.l.b16 %v865
    %v937 = vunpack.c.l.b16 %v866
    %v938 = vunpack.c.l.b16 %v867
    %v939 = vunpack.c.l.b16 %v868
    %v940 = vunpack.c.l.b16 %v869
    %v941 = vunpack.c.l.b16 %v870
    %v942 = vunpack.c.l.b16 %v871
    %v943 = vunpack.c.l.b16 %v872
    %v944 = vunpack.c.l.b16 %v873
    %v945 = vunpack.c.l.b16 %v874
    %v946 = vunpack.c.l.b16 %v875
    %v947 = vunpack.c.l.b16 %v876
    %v948 = vunpack.c.l.b16 %v877
    %v949 = vunpack.c.l.b16 %v878
    %v950 = vunpack.c.l.b16 %v879
    %v951 = vunpack.c.l.b16 %v880
    %v952 = vunpack.c.l.b16 %v881
    %v953 = vunpack.c.l.b16 %v882
    %v954 = vunpack.c.l.b16 %v883
    %v955 = vunpack.c.l.b16 %v884
    %v956 = vunpack.c.l.b16 %v885
    %v957 = vunpack.c.l.b16 %v886
    %v958 = vunpack.c.l.b16 %v887
    %v959 = vunpack.c.l.b16 %v888
    %v960 = vunpack.c.l.b16 %v889
    %v961 = vunpack.c.l.b16 %v890
    %v962 = vunpack.c.l.b16 %v891
    %v963 = vunpack.c.l.b16 %v892
    %v964 = vunpack.c.l.b16 %v893
    %v965 = vpack.c.b16 %v934, %v933
    %v966 = vpack.c.b16 %v936, %v935
    %v967 = vpack.c.b16 %v938, %v937
    %v968 = vpack.c.b16 %v940, %v939
    %v969 = vpack.c.b16 %v942, %v941
    %v970 = vpack.c.b16 %v944, %v943
    %v971 = vpack.c.b16 %v946, %v945
    %v972 = vpack.c.b16 %v948, %v947
    %v973 = vpack.c.b16 %v950, %v949
    %v974 = vpack.c.b16 %v952, %v951
    %v975 = vpack.c.b16 %v954, %v953
    %v976 = vpack.c.b16 %v956, %v955
    %v977 = vpack.c.b16 %v958, %v957
    %v978 = vpack.c.b16 %v960, %v959
    %v979 = vpack.c.b16 %v962, %v961
    %v980 = vpack.c.b16 %v964, %v963
    %997 = vmatprep.subr.bf16.mxu0 0
    %998 = vmatpush1.bf16.msra.mxu0 %v965
    %999 = vmatprep.subr.bf16.mxu0 0
    %1000 = vmatpush1.bf16.msra.mxu0 %v966
    %1001 = vmatprep.subr.bf16.mxu0 0
    %1002 = vmatpush1.bf16.msra.mxu0 %v967
    %1003 = vmatprep.subr.bf16.mxu0 0
    %1004 = vmatpush1.bf16.msra.mxu0 %v968
    %1005 = vmatprep.subr.bf16.mxu0 0
    %1006 = vmatpush1.bf16.msra.mxu0 %v969
    %1007 = vmatprep.subr.bf16.mxu0 0
    %1008 = vmatpush1.bf16.msra.mxu0 %v970
    %1009 = vmatprep.subr.bf16.mxu0 0
    %1010 = vmatpush1.bf16.msra.mxu0 %v971
    %1011 = vmatprep.subr.bf16.mxu0 0
    %1012 = vmatpush1.bf16.msra.mxu0 %v972
    %1013 = vmatprep.subr.bf16.mxu0 0
    %1014 = vmatpush1.bf16.msra.mxu0 %v973
    %1015 = vmatprep.subr.bf16.mxu0 0
    %1016 = vmatpush1.bf16.msra.mxu0 %v974
    %1017 = vmatprep.subr.bf16.mxu0 0
    %1018 = vmatpush1.bf16.msra.mxu0 %v975
    %1019 = vmatprep.subr.bf16.mxu0 0
    %1020 = vmatpush1.bf16.msra.mxu0 %v976
    %1021 = vmatprep.subr.bf16.mxu0 0
    %1022 = vmatpush1.bf16.msra.mxu0 %v977
    %1023 = vmatprep.subr.bf16.mxu0 0
    %1024 = vmatpush1.bf16.msra.mxu0 %v978
    %1025 = vmatprep.subr.bf16.mxu0 0
    %1026 = vmatpush1.bf16.msra.mxu0 %v979
    %1027 = vmatprep.subr.bf16.mxu0 0
    %1028 = vmatpush1.bf16.msra.mxu0 %v980
    %1029 = vmatprep.mubr.bf16.mxu0 %v861
    %1030 = vmatmul.mubr.bf16.gmra.mrb[0].mxu0 %v860
    %v1031 = vpop.f32.mrb[0].mxu0
    %v1032 = vadd.f32 %v899, %v1031
    %v1033 = vpop.f32.mrb[0].mxu0
    %v1034 = vpop.f32.mrb[0].mxu0
    %v1035 = vpop.f32.mrb[0].mxu0
    %1036 = vdwg.mxu0
    %vm1037 = vcmask 74752
    %1038 = vst.msk [vmem:[#allocation2] sm:$0x3] %vm1037, %v1032
    // Predicated region
    $region22: #{_lambda_.5} parent=1 // pred_check
      _
    $region23: #{_lambda_.5} parent=1 // pred_check_branch
      %1040 = sbr.rel (0) target = $region25
    $region24: #{_lambda_.5} parent=1 // pred_region
      %s1042 = ssub.s32 32, 32
      %1043 = vsyncadd [#allocation3], %s1042
      %s1045 = sshll.u32 [#allocation2], 4
      %s1046 = int_to_ptr.vmem [resolvable:$true] %s1045
      %1048 = dma.vmem_to_hbm [thread:$0]  %s1046, 32, %s5, [#allocation3]
    $region25: #{_lambda_.5} parent=1 // pred_fallthru
      _
    // Predicated region
    $region26: #{_lambda_.5} parent=1 // pred_check
      _
    $region27: #{_lambda_.5} parent=1 // pred_check_branch
      %1050 = sbr.rel (0) target = $region29
    $region28: #{_lambda_.5} parent=1 // pred_region
      %1051 = dma.done [#allocation3], 32
    $region29: #{_lambda_.5} parent=1 // pred_fallthru
      _
    %1052 = vsyncpa [#allocation3], 1

</llo_original>
